<compile_context>
chip_gen: v7x
topology: tpu7x:2x2x1
jax: 0.10.0
libtpu: 0.0.40
codegen_flags: <defaults>
</compile_context>

<pallas_src>
import functools

import jax
import jax.numpy as jnp
from jax import lax
from jax.experimental import pallas as pl
from jax.experimental.pallas import tpu as pltpu


# ----------------------------------------------------------------------------
# Layout constants (spatial size fixed at 28x28 by fc1 = Linear(16*7*7, .)).
# ----------------------------------------------------------------------------
_H1, _W1 = 28, 28            # conv1 output spatial size
_PW1 = _W1 + 2               # row stride of conv1's zero-padded input (30)
_NIN = 1024                  # lane-padded flat length of the 30x30 padded input
_NC1 = _H1 * _PW1            # conv1 output columns: 28 rows x stride 30 = 840
_H2, _W2 = 14, 14            # conv2 output spatial size
_PW2 = 16                    # row stride of conv2's zero-padded input (16)
_NP2 = 384                   # lane length of conv2's padded input slab (>= 258)
_NC2 = _H2 * _PW2            # conv2 output columns: 14 rows x stride 16 = 224
_C1, _C2 = 8, 16             # conv1 / conv2 output channels
_NPOOL = 64                  # lane-padded 7x7 = 49 pooled positions per channel
_NCLS_PAD = 128              # lane-padded number of classes


# ----------------------------------------------------------------------------
# Fused Pallas kernel: whole forward pass for one image per grid step.
# ----------------------------------------------------------------------------
def _fused_forward_kernel(x_ref, w1_ref, b1_ref, s1_ref, w2_ref, b2_ref,
                          s2_ref, wfc_ref, bfc_ref, o_ref, *, cin):
    """x_ref:   (1, cin, 1024) zero-padded 30x30 image, flat with row stride 30
       w1_ref:  (9, 8, cin)    conv1 weight, tap-major (t = kh*3 + kw)
       b1_ref:  (8, 1)
       s1_ref:  (840, 384)     fuzzy-pool1 mean (x0.25) + re-pad to conv2 layout
       w2_ref:  (9, 16, 8)     conv2 weight, tap-major
       b2_ref:  (16, 1)
       s2_ref:  (224, 64)      fuzzy-pool2 mean (x0.25) into 7x7 pooled lanes
       wfc_ref: (16, 64, 128)  fc1 weight, per channel (feature = c*49 + p)
       bfc_ref: (1, 128)       fc1 bias, zero-padded to 128 lanes
       o_ref:   (1, 1, 128)    logits for this image (first num_classes lanes)"""
    f32 = jnp.float32
    x = x_ref[0].astype(f32)                                    # (cin, 1024)

    # ---- conv1 (3x3, stride 1, pad 1) + ReLU -------------------------------
    # Output column j = oh*30 + ow; columns with ow >= 28 are don't-care.
    acc1 = jnp.zeros((_C1, _NC1), f32)
    for kh in range(3):
        for kw in range(3):
            t = kh * 3 + kw
            off = kh * _PW1 + kw
            xs = x[:, off:off + _NC1]                           # (cin, 840)
            if cin == 1:
                acc1 = acc1 + w1_ref[t] * xs                    # (8,1)*(1,840) VPU
            else:
                acc1 = acc1 + jnp.dot(w1_ref[t], xs,
                                      preferred_element_type=f32)
    z1 = jnp.maximum(acc1 + b1_ref[...], 0.0)

    # ---- fuzzy pooling #1: EUP/VPU epilogue + one scatter matmul ------------
    g1 = jnp.exp(-0.5 * z1 * z1) * z1                           # membership * x
    # S1 averages each 2x2 window and scatters straight into conv2's
    # zero-padded stride-16 flat layout; don't-care columns hit zero rows.
    xp2 = jnp.dot(g1, s1_ref[...], preferred_element_type=f32)  # (8, 384)

    # ---- conv2 (3x3, stride 1, pad 1) + ReLU -------------------------------
    acc2 = jnp.zeros((_C2, _NC2), f32)
    for kh in range(3):
        for kw in range(3):
            t = kh * 3 + kw
            off = kh * _PW2 + kw
            acc2 = acc2 + jnp.dot(w2_ref[t], xp2[:, off:off + _NC2],
                                  preferred_element_type=f32)
    z2 = jnp.maximum(acc2 + b2_ref[...], 0.0)

    # ---- fuzzy pooling #2 (one matmul) + fc1 (per-channel matmuls) ---------
    g2 = jnp.exp(-0.5 * z2 * z2) * z2                           # (16, 224)
    pooled = jnp.dot(g2, s2_ref[...], preferred_element_type=f32)  # (16, 64)
    logits = bfc_ref[...].astype(f32)                           # (1, 128)
    for c in range(_C2):
        logits = logits + jnp.dot(pooled[c:c + 1, :], wfc_ref[c],
                                  preferred_element_type=f32)
    o_ref[0] = logits.astype(o_ref.dtype)


# ----------------------------------------------------------------------------
# Wrapper
# ----------------------------------------------------------------------------
@functools.partial(jax.jit, static_argnames=("num_classes",))
def cnn_with_fuzzy_pooling(x, params, *, num_classes=10):
    """x: (B, Cin, 28, 28) NCHW float -> logits (B, num_classes)."""
    B, cin, H, W = x.shape
    assert (H, W) == (_H1, _W1), "fc1 = Linear(16*7*7, .) requires 28x28 input"

    # Only XLA-side prep: zero-pad to 30x30, flatten rows (stride 30), pad the
    # lane dim to 1024.  im2col / pooling / transposes all live in the kernel.
    xp = jnp.pad(x.astype(jnp.float32), ((0, 0), (0, 0), (1, 1), (1, 1)))
    xp = xp.reshape(B, cin, (_H1 + 2) * _PW1)
    xp = jnp.pad(xp, ((0, 0), (0, 0), (0, _NIN - (_H1 + 2) * _PW1)))

    out = pl.pallas_call(
        functools.partial(_fused_forward_kernel, cin=cin),
        out_shape=jax.ShapeDtypeStruct((B, 1, _NCLS_PAD), jnp.float32),
        grid=(B,),
        in_specs=[
            pl.BlockSpec((1, cin, _NIN), lambda b: (b, 0, 0)),
            pl.BlockSpec((9, _C1, cin), lambda b: (0, 0, 0)),
            pl.BlockSpec((_C1, 1), lambda b: (0, 0)),
            pl.BlockSpec((_NC1, _NP2), lambda b: (0, 0)),
            pl.BlockSpec((9, _C2, _C1), lambda b: (0, 0, 0)),
            pl.BlockSpec((_C2, 1), lambda b: (0, 0)),
            pl.BlockSpec((_NC2, _NPOOL), lambda b: (0, 0)),
            pl.BlockSpec((_C2, _NPOOL, _NCLS_PAD), lambda b: (0, 0, 0)),
            pl.BlockSpec((1, _NCLS_PAD), lambda b: (0, 0)),
        ],
        out_specs=pl.BlockSpec((1, 1, _NCLS_PAD), lambda b: (b, 0, 0)),
        compiler_params=pltpu.CompilerParams(
            dimension_semantics=("parallel",),   # v7x: batch splits across TCs
            vmem_limit_bytes=32 * 1024 * 1024,
        ),
    )(xp, params["w1"], params["b1"], params["s1"], params["w2"],
      params["b2"], params["s2"], params["wfc"], params["bfc"])
    return out[:, 0, :num_classes]


# ----------------------------------------------------------------------------
# One-time parameter repacking (hoisted out of the per-inference path).
# ----------------------------------------------------------------------------
def prepare_params(torch_params):
    conv1_w = torch_params["conv1_w"].astype(jnp.float32)      # (8, cin, 3, 3)
    conv2_w = torch_params["conv2_w"].astype(jnp.float32)      # (16, 8, 3, 3)
    fc1_w = torch_params["fc1_w"].astype(jnp.float32)          # (ncls, 784)
    cin = conv1_w.shape[1]
    ncls = fc1_w.shape[0]

    # Conv weights, tap-major: w[t] = conv_w[:, :, kh, kw], t = kh*3 + kw.
    w1 = jnp.transpose(conv1_w, (2, 3, 0, 1)).reshape(9, _C1, cin)
    w2 = jnp.transpose(conv2_w, (2, 3, 0, 1)).reshape(9, _C2, _C1)
    b1 = torch_params["conv1_b"].astype(jnp.float32).reshape(_C1, 1)
    b2 = torch_params["conv2_b"].astype(jnp.float32).reshape(_C2, 1)

    # S1: conv1 column j = oh*30 + ow -> conv2 padded column q = (i+1)*16+(j+1),
    # 0.25 per 2x2-window member; don't-care / border entries stay zero.
    j1 = jnp.arange(_NC1)
    oh, ow = j1 // _PW1, j1 % _PW1
    valid1 = ow < _W1
    q = (oh // 2 + 1) * _PW2 + (ow // 2 + 1)
    s1 = jnp.zeros((_NC1, _NP2), jnp.float32).at[
        j1, jnp.where(valid1, q, 0)].add(jnp.where(valid1, 0.25, 0.0))

    # S2: conv2 column j = oh2*16 + ow2 -> pooled index p = (oh2//2)*7 + ow2//2,
    # 0.25 per 2x2-window member; don't-care columns stay zero rows.
    j2 = jnp.arange(_NC2)
    oh2, ow2 = j2 // _PW2, j2 % _PW2
    valid2 = ow2 < _W2
    p = (oh2 // 2) * 7 + (ow2 // 2)
    s2 = jnp.zeros((_NC2, _NPOOL), jnp.float32).at[
        j2, jnp.where(valid2, p, 0)].add(jnp.where(valid2, 0.25, 0.0))

    # wfc: per-channel (64, 128) fc1 weight; NCHW flatten => feature = c*49 + p.
    wfc = jnp.zeros((_C2, _NPOOL, _NCLS_PAD), jnp.float32)
    wfc = wfc.at[:, :49, :ncls].set(
        jnp.transpose(fc1_w.reshape(ncls, _C2, 49), (1, 2, 0)))
    bfc = jnp.zeros((1, _NCLS_PAD), jnp.float32).at[0, :ncls].set(
        torch_params["fc1_b"].astype(jnp.float32))

    return {"w1": w1, "b1": b1, "s1": s1, "w2": w2, "b2": b2,
            "s2": s2, "wfc": wfc, "bfc": bfc}


# ----------------------------------------------------------------------------
# Pure-JAX reference of the PyTorch module (for a sanity check).
# ----------------------------------------------------------------------------
def _fuzzy_pool_ref(x):
    B, C, H, W = x.shape
    xr = x.reshape(B, C, H // 2, 2, W // 2, 2)
    return (jnp.exp(-xr * xr / 2.0) * xr).mean(axis=(3, 5))


def _reference_forward(x, tp):
    hi = lax.Precision.HIGHEST
    y = lax.conv_general_dilated(x, tp["conv1_w"], (1, 1), ((1, 1), (1, 1)),
                                 dimension_numbers=("NCHW", "OIHW", "NCHW"),
                                 precision=hi)
    y = jnp.maximum(y + tp["conv1_b"][None, :, None, None], 0.0)
    y = _fuzzy_pool_ref(y)
    y = lax.conv_general_dilated(y, tp["conv2_w"], (1, 1), ((1, 1), (1, 1)),
                                 dimension_numbers=("NCHW", "OIHW", "NCHW"),
                                 precision=hi)
    y = jnp.maximum(y + tp["conv2_b"][None, :, None, None], 0.0)
    y = _fuzzy_pool_ref(y)
    y = y.reshape(y.shape[0], -1)
    return jnp.dot(y, tp["fc1_w"].T, precision=hi) + tp["fc1_b"]


# ----------------------------------------------------------------------------
# Deterministic parameter init (shapes from the nn.Module __init__).
# ----------------------------------------------------------------------------
def init_torch_params(key, in_channels=1, num_classes=10):
    ks = jax.random.split(key, 6)
    return {
        "conv1_w": 0.1 * jax.random.normal(ks[0], (8, in_channels, 3, 3), jnp.float32),
        "conv1_b": 0.1 * jax.random.normal(ks[1], (8,), jnp.float32),
        "conv2_w": 0.1 * jax.random.normal(ks[2], (16, 8, 3, 3), jnp.float32),
        "conv2_b": 0.1 * jax.random.normal(ks[3], (16,), jnp.float32),
        "fc1_w": 0.05 * jax.random.normal(ks[4], (num_classes, 16 * 7 * 7), jnp.float32),
        "fc1_b": 0.05 * jax.random.normal(ks[5], (num_classes,), jnp.float32),
    }


if __name__ == "__main__":
    key = jax.random.PRNGKey(0)
    k_params, k_x = jax.random.split(key)
    torch_params = init_torch_params(k_params, in_channels=1, num_classes=10)
    params = prepare_params(torch_params)
    # fc1 expects 16*7*7 features -> input spatial must be 28x28 (MNIST-like).
    x = jax.random.normal(k_x, (2, 1, 28, 28), jnp.float32)

    logits = cnn_with_fuzzy_pooling(x, params, num_classes=10)
    jax.block_until_ready(logits)
    assert logits.shape == (2, 10), logits.shape

    # Sanity check against the pure-JAX reference of the PyTorch module.
    ref = _reference_forward(x, torch_params)
    max_err = float(jnp.max(jnp.abs(logits - ref)))
    assert max_err < 1e-2, max_err

    print("KERNEL_OK")
</pallas_src>

<mosaic_0001>
module attributes {stable_mosaic.version = 11 : i64} {
  func.func @_fused_forward_kernel(%arg0: i32, %arg1: memref<1x1x1024xf32, #tpu.memory_space<vmem>>, %arg2: memref<9x8x1xf32, #tpu.memory_space<vmem>>, %arg3: memref<8x1xf32, #tpu.memory_space<vmem>>, %arg4: memref<840x384xf32, #tpu.memory_space<vmem>>, %arg5: memref<9x16x8xf32, #tpu.memory_space<vmem>>, %arg6: memref<16x1xf32, #tpu.memory_space<vmem>>, %arg7: memref<224x64xf32, #tpu.memory_space<vmem>>, %arg8: memref<16x64x128xf32, #tpu.memory_space<vmem>>, %arg9: memref<1x128xf32, #tpu.memory_space<vmem>>, %arg10: memref<1x1x128xf32, #tpu.memory_space<vmem>>) attributes {dimension_semantics = [#tpu.dimension_semantics<parallel>], iteration_bounds = array<i64: 2>, scalar_prefetch = 0 : i64, scratch_operands = 0 : i64, tpu.core_type = #tpu.core_type<tc>, window_params = [{transform_indices = @transform_0, window_bounds = array<i64: 1, 1, 1024>}, {pipeline_mode = #tpu.pipeline_mode<synchronous>, transform_indices = @transform_1, window_bounds = array<i64: 9, 8, 1>}, {pipeline_mode = #tpu.pipeline_mode<synchronous>, transform_indices = @transform_2, window_bounds = array<i64: 8, 1>}, {pipeline_mode = #tpu.pipeline_mode<synchronous>, transform_indices = @transform_3, window_bounds = array<i64: 840, 384>}, {pipeline_mode = #tpu.pipeline_mode<synchronous>, transform_indices = @transform_4, window_bounds = array<i64: 9, 16, 8>}, {pipeline_mode = #tpu.pipeline_mode<synchronous>, transform_indices = @transform_5, window_bounds = array<i64: 16, 1>}, {pipeline_mode = #tpu.pipeline_mode<synchronous>, transform_indices = @transform_6, window_bounds = array<i64: 224, 64>}, {pipeline_mode = #tpu.pipeline_mode<synchronous>, transform_indices = @transform_7, window_bounds = array<i64: 16, 64, 128>}, {pipeline_mode = #tpu.pipeline_mode<synchronous>, transform_indices = @transform_8, window_bounds = array<i64: 1, 128>}, {transform_indices = @transform_9, window_bounds = array<i64: 1, 1, 128>}]} {
    %c0 = arith.constant 0 : index
    %c0_0 = arith.constant 0 : index
    %c0_1 = arith.constant 0 : index
    %0 = vector.load %arg1[%c0, %c0_0, %c0_1] : memref<1x1x1024xf32, #tpu.memory_space<vmem>>, vector<1x1x1024xf32>
    %1 = vector.shape_cast %0 : vector<1x1x1024xf32> to vector<1x1024xf32>
    %cst = arith.constant 0.000000e+00 : f32
    %2 = vector.broadcast %cst : f32 to vector<8x840xf32>
    %3 = vector.extract_strided_slice %1 {offsets = [0, 0], sizes = [1, 840], strides = [1, 1]} : vector<1x1024xf32> to vector<1x840xf32>
    %c0_2 = arith.constant 0 : index
    %c0_3 = arith.constant 0 : index
    %c0_4 = arith.constant 0 : index
    %4 = vector.load %arg2[%c0_2, %c0_3, %c0_4] : memref<9x8x1xf32, #tpu.memory_space<vmem>>, vector<1x8x1xf32>
    %5 = vector.shape_cast %4 : vector<1x8x1xf32> to vector<8x1xf32>
    %6 = vector.broadcast %5 : vector<8x1xf32> to vector<8x840xf32>
    %7 = vector.broadcast %3 : vector<1x840xf32> to vector<8x840xf32>
    %8 = arith.mulf %6, %7 : vector<8x840xf32>
    %9 = arith.addf %2, %8 : vector<8x840xf32>
    %10 = vector.extract_strided_slice %1 {offsets = [0, 1], sizes = [1, 840], strides = [1, 1]} : vector<1x1024xf32> to vector<1x840xf32>
    %c1 = arith.constant 1 : index
    %c0_5 = arith.constant 0 : index
    %c0_6 = arith.constant 0 : index
    %11 = vector.load %arg2[%c1, %c0_5, %c0_6] : memref<9x8x1xf32, #tpu.memory_space<vmem>>, vector<1x8x1xf32>
    %12 = vector.shape_cast %11 : vector<1x8x1xf32> to vector<8x1xf32>
    %13 = vector.broadcast %12 : vector<8x1xf32> to vector<8x840xf32>
    %14 = vector.broadcast %10 : vector<1x840xf32> to vector<8x840xf32>
    %15 = arith.mulf %13, %14 : vector<8x840xf32>
    %16 = arith.addf %9, %15 : vector<8x840xf32>
    %17 = vector.extract_strided_slice %1 {offsets = [0, 2], sizes = [1, 840], strides = [1, 1]} : vector<1x1024xf32> to vector<1x840xf32>
    %c2 = arith.constant 2 : index
    %c0_7 = arith.constant 0 : index
    %c0_8 = arith.constant 0 : index
    %18 = vector.load %arg2[%c2, %c0_7, %c0_8] : memref<9x8x1xf32, #tpu.memory_space<vmem>>, vector<1x8x1xf32>
    %19 = vector.shape_cast %18 : vector<1x8x1xf32> to vector<8x1xf32>
    %20 = vector.broadcast %19 : vector<8x1xf32> to vector<8x840xf32>
    %21 = vector.broadcast %17 : vector<1x840xf32> to vector<8x840xf32>
    %22 = arith.mulf %20, %21 : vector<8x840xf32>
    %23 = arith.addf %16, %22 : vector<8x840xf32>
    %24 = vector.extract_strided_slice %1 {offsets = [0, 30], sizes = [1, 840], strides = [1, 1]} : vector<1x1024xf32> to vector<1x840xf32>
    %c3 = arith.constant 3 : index
    %c0_9 = arith.constant 0 : index
    %c0_10 = arith.constant 0 : index
    %25 = vector.load %arg2[%c3, %c0_9, %c0_10] : memref<9x8x1xf32, #tpu.memory_space<vmem>>, vector<1x8x1xf32>
    %26 = vector.shape_cast %25 : vector<1x8x1xf32> to vector<8x1xf32>
    %27 = vector.broadcast %26 : vector<8x1xf32> to vector<8x840xf32>
    %28 = vector.broadcast %24 : vector<1x840xf32> to vector<8x840xf32>
    %29 = arith.mulf %27, %28 : vector<8x840xf32>
    %30 = arith.addf %23, %29 : vector<8x840xf32>
    %31 = vector.extract_strided_slice %1 {offsets = [0, 31], sizes = [1, 840], strides = [1, 1]} : vector<1x1024xf32> to vector<1x840xf32>
    %c4 = arith.constant 4 : index
    %c0_11 = arith.constant 0 : index
    %c0_12 = arith.constant 0 : index
    %32 = vector.load %arg2[%c4, %c0_11, %c0_12] : memref<9x8x1xf32, #tpu.memory_space<vmem>>, vector<1x8x1xf32>
    %33 = vector.shape_cast %32 : vector<1x8x1xf32> to vector<8x1xf32>
    %34 = vector.broadcast %33 : vector<8x1xf32> to vector<8x840xf32>
    %35 = vector.broadcast %31 : vector<1x840xf32> to vector<8x840xf32>
    %36 = arith.mulf %34, %35 : vector<8x840xf32>
    %37 = arith.addf %30, %36 : vector<8x840xf32>
    %38 = vector.extract_strided_slice %1 {offsets = [0, 32], sizes = [1, 840], strides = [1, 1]} : vector<1x1024xf32> to vector<1x840xf32>
    %c5 = arith.constant 5 : index
    %c0_13 = arith.constant 0 : index
    %c0_14 = arith.constant 0 : index
    %39 = vector.load %arg2[%c5, %c0_13, %c0_14] : memref<9x8x1xf32, #tpu.memory_space<vmem>>, vector<1x8x1xf32>
    %40 = vector.shape_cast %39 : vector<1x8x1xf32> to vector<8x1xf32>
    %41 = vector.broadcast %40 : vector<8x1xf32> to vector<8x840xf32>
    %42 = vector.broadcast %38 : vector<1x840xf32> to vector<8x840xf32>
    %43 = arith.mulf %41, %42 : vector<8x840xf32>
    %44 = arith.addf %37, %43 : vector<8x840xf32>
    %45 = vector.extract_strided_slice %1 {offsets = [0, 60], sizes = [1, 840], strides = [1, 1]} : vector<1x1024xf32> to vector<1x840xf32>
    %c6 = arith.constant 6 : index
    %c0_15 = arith.constant 0 : index
    %c0_16 = arith.constant 0 : index
    %46 = vector.load %arg2[%c6, %c0_15, %c0_16] : memref<9x8x1xf32, #tpu.memory_space<vmem>>, vector<1x8x1xf32>
    %47 = vector.shape_cast %46 : vector<1x8x1xf32> to vector<8x1xf32>
    %48 = vector.broadcast %47 : vector<8x1xf32> to vector<8x840xf32>
    %49 = vector.broadcast %45 : vector<1x840xf32> to vector<8x840xf32>
    %50 = arith.mulf %48, %49 : vector<8x840xf32>
    %51 = arith.addf %44, %50 : vector<8x840xf32>
    %52 = vector.extract_strided_slice %1 {offsets = [0, 61], sizes = [1, 840], strides = [1, 1]} : vector<1x1024xf32> to vector<1x840xf32>
    %c7 = arith.constant 7 : index
    %c0_17 = arith.constant 0 : index
    %c0_18 = arith.constant 0 : index
    %53 = vector.load %arg2[%c7, %c0_17, %c0_18] : memref<9x8x1xf32, #tpu.memory_space<vmem>>, vector<1x8x1xf32>
    %54 = vector.shape_cast %53 : vector<1x8x1xf32> to vector<8x1xf32>
    %55 = vector.broadcast %54 : vector<8x1xf32> to vector<8x840xf32>
    %56 = vector.broadcast %52 : vector<1x840xf32> to vector<8x840xf32>
    %57 = arith.mulf %55, %56 : vector<8x840xf32>
    %58 = arith.addf %51, %57 : vector<8x840xf32>
    %59 = vector.extract_strided_slice %1 {offsets = [0, 62], sizes = [1, 840], strides = [1, 1]} : vector<1x1024xf32> to vector<1x840xf32>
    %c8 = arith.constant 8 : index
    %c0_19 = arith.constant 0 : index
    %c0_20 = arith.constant 0 : index
    %60 = vector.load %arg2[%c8, %c0_19, %c0_20] : memref<9x8x1xf32, #tpu.memory_space<vmem>>, vector<1x8x1xf32>
    %61 = vector.shape_cast %60 : vector<1x8x1xf32> to vector<8x1xf32>
    %62 = vector.broadcast %61 : vector<8x1xf32> to vector<8x840xf32>
    %63 = vector.broadcast %59 : vector<1x840xf32> to vector<8x840xf32>
    %64 = arith.mulf %62, %63 : vector<8x840xf32>
    %65 = arith.addf %58, %64 : vector<8x840xf32>
    %c0_21 = arith.constant 0 : index
    %c0_22 = arith.constant 0 : index
    %66 = vector.load %arg3[%c0_21, %c0_22] : memref<8x1xf32, #tpu.memory_space<vmem>>, vector<8x1xf32>
    %67 = vector.broadcast %66 : vector<8x1xf32> to vector<8x840xf32>
    %68 = arith.addf %65, %67 : vector<8x840xf32>
    %cst_23 = arith.constant 0.000000e+00 : f32
    %69 = vector.broadcast %cst_23 : f32 to vector<8x840xf32>
    %70 = arith.maximumf %68, %69 : vector<8x840xf32>
    %cst_24 = arith.constant -5.000000e-01 : f32
    %71 = vector.broadcast %cst_24 : f32 to vector<8x840xf32>
    %72 = arith.mulf %71, %70 : vector<8x840xf32>
    %73 = arith.mulf %72, %70 : vector<8x840xf32>
    %74 = math.exp %73 : vector<8x840xf32>
    %75 = arith.mulf %74, %70 : vector<8x840xf32>
    %c0_25 = arith.constant 0 : index
    %c0_26 = arith.constant 0 : index
    %76 = vector.load %arg4[%c0_25, %c0_26] : memref<840x384xf32, #tpu.memory_space<vmem>>, vector<840x384xf32>
    %cst_27 = arith.constant dense<0.000000e+00> : vector<8x384xf32>
    %77 = tpu.matmul %75, %76, %cst_27 {dimension_numbers = #tpu.dot_dimension_numbers<[1], [0], [0], [1], [0, 0, 1, 1], [], []>} : vector<8x840xf32>, vector<840x384xf32>, vector<8x384xf32> -> vector<8x384xf32>
    %cst_28 = arith.constant 0.000000e+00 : f32
    %78 = vector.broadcast %cst_28 : f32 to vector<16x224xf32>
    %c0_29 = arith.constant 0 : index
    %c0_30 = arith.constant 0 : index
    %c0_31 = arith.constant 0 : index
    %79 = vector.load %arg5[%c0_29, %c0_30, %c0_31] : memref<9x16x8xf32, #tpu.memory_space<vmem>>, vector<1x16x8xf32>
    %80 = vector.shape_cast %79 : vector<1x16x8xf32> to vector<16x8xf32>
    %81 = vector.extract_strided_slice %77 {offsets = [0, 0], sizes = [8, 224], strides = [1, 1]} : vector<8x384xf32> to vector<8x224xf32>
    %cst_32 = arith.constant dense<0.000000e+00> : vector<16x224xf32>
    %82 = tpu.matmul %80, %81, %cst_32 {dimension_numbers = #tpu.dot_dimension_numbers<[1], [0], [0], [1], [0, 0, 1, 1], [], []>} : vector<16x8xf32>, vector<8x224xf32>, vector<16x224xf32> -> vector<16x224xf32>
    %83 = arith.addf %78, %82 : vector<16x224xf32>
    %c1_33 = arith.constant 1 : index
    %c0_34 = arith.constant 0 : index
    %c0_35 = arith.constant 0 : index
    %84 = vector.load %arg5[%c1_33, %c0_34, %c0_35] : memref<9x16x8xf32, #tpu.memory_space<vmem>>, vector<1x16x8xf32>
    %85 = vector.shape_cast %84 : vector<1x16x8xf32> to vector<16x8xf32>
    %86 = vector.extract_strided_slice %77 {offsets = [0, 1], sizes = [8, 224], strides = [1, 1]} : vector<8x384xf32> to vector<8x224xf32>
    %cst_36 = arith.constant dense<0.000000e+00> : vector<16x224xf32>
    %87 = tpu.matmul %85, %86, %cst_36 {dimension_numbers = #tpu.dot_dimension_numbers<[1], [0], [0], [1], [0, 0, 1, 1], [], []>} : vector<16x8xf32>, vector<8x224xf32>, vector<16x224xf32> -> vector<16x224xf32>
    %88 = arith.addf %83, %87 : vector<16x224xf32>
    %c2_37 = arith.constant 2 : index
    %c0_38 = arith.constant 0 : index
    %c0_39 = arith.constant 0 : index
    %89 = vector.load %arg5[%c2_37, %c0_38, %c0_39] : memref<9x16x8xf32, #tpu.memory_space<vmem>>, vector<1x16x8xf32>
    %90 = vector.shape_cast %89 : vector<1x16x8xf32> to vector<16x8xf32>
    %91 = vector.extract_strided_slice %77 {offsets = [0, 2], sizes = [8, 224], strides = [1, 1]} : vector<8x384xf32> to vector<8x224xf32>
    %cst_40 = arith.constant dense<0.000000e+00> : vector<16x224xf32>
    %92 = tpu.matmul %90, %91, %cst_40 {dimension_numbers = #tpu.dot_dimension_numbers<[1], [0], [0], [1], [0, 0, 1, 1], [], []>} : vector<16x8xf32>, vector<8x224xf32>, vector<16x224xf32> -> vector<16x224xf32>
    %93 = arith.addf %88, %92 : vector<16x224xf32>
    %c3_41 = arith.constant 3 : index
    %c0_42 = arith.constant 0 : index
    %c0_43 = arith.constant 0 : index
    %94 = vector.load %arg5[%c3_41, %c0_42, %c0_43] : memref<9x16x8xf32, #tpu.memory_space<vmem>>, vector<1x16x8xf32>
    %95 = vector.shape_cast %94 : vector<1x16x8xf32> to vector<16x8xf32>
    %96 = vector.extract_strided_slice %77 {offsets = [0, 16], sizes = [8, 224], strides = [1, 1]} : vector<8x384xf32> to vector<8x224xf32>
    %cst_44 = arith.constant dense<0.000000e+00> : vector<16x224xf32>
    %97 = tpu.matmul %95, %96, %cst_44 {dimension_numbers = #tpu.dot_dimension_numbers<[1], [0], [0], [1], [0, 0, 1, 1], [], []>} : vector<16x8xf32>, vector<8x224xf32>, vector<16x224xf32> -> vector<16x224xf32>
    %98 = arith.addf %93, %97 : vector<16x224xf32>
    %c4_45 = arith.constant 4 : index
    %c0_46 = arith.constant 0 : index
    %c0_47 = arith.constant 0 : index
    %99 = vector.load %arg5[%c4_45, %c0_46, %c0_47] : memref<9x16x8xf32, #tpu.memory_space<vmem>>, vector<1x16x8xf32>
    %100 = vector.shape_cast %99 : vector<1x16x8xf32> to vector<16x8xf32>
    %101 = vector.extract_strided_slice %77 {offsets = [0, 17], sizes = [8, 224], strides = [1, 1]} : vector<8x384xf32> to vector<8x224xf32>
    %cst_48 = arith.constant dense<0.000000e+00> : vector<16x224xf32>
    %102 = tpu.matmul %100, %101, %cst_48 {dimension_numbers = #tpu.dot_dimension_numbers<[1], [0], [0], [1], [0, 0, 1, 1], [], []>} : vector<16x8xf32>, vector<8x224xf32>, vector<16x224xf32> -> vector<16x224xf32>
    %103 = arith.addf %98, %102 : vector<16x224xf32>
    %c5_49 = arith.constant 5 : index
    %c0_50 = arith.constant 0 : index
    %c0_51 = arith.constant 0 : index
    %104 = vector.load %arg5[%c5_49, %c0_50, %c0_51] : memref<9x16x8xf32, #tpu.memory_space<vmem>>, vector<1x16x8xf32>
    %105 = vector.shape_cast %104 : vector<1x16x8xf32> to vector<16x8xf32>
    %106 = vector.extract_strided_slice %77 {offsets = [0, 18], sizes = [8, 224], strides = [1, 1]} : vector<8x384xf32> to vector<8x224xf32>
    %cst_52 = arith.constant dense<0.000000e+00> : vector<16x224xf32>
    %107 = tpu.matmul %105, %106, %cst_52 {dimension_numbers = #tpu.dot_dimension_numbers<[1], [0], [0], [1], [0, 0, 1, 1], [], []>} : vector<16x8xf32>, vector<8x224xf32>, vector<16x224xf32> -> vector<16x224xf32>
    %108 = arith.addf %103, %107 : vector<16x224xf32>
    %c6_53 = arith.constant 6 : index
    %c0_54 = arith.constant 0 : index
    %c0_55 = arith.constant 0 : index
    %109 = vector.load %arg5[%c6_53, %c0_54, %c0_55] : memref<9x16x8xf32, #tpu.memory_space<vmem>>, vector<1x16x8xf32>
    %110 = vector.shape_cast %109 : vector<1x16x8xf32> to vector<16x8xf32>
    %111 = vector.extract_strided_slice %77 {offsets = [0, 32], sizes = [8, 224], strides = [1, 1]} : vector<8x384xf32> to vector<8x224xf32>
    %cst_56 = arith.constant dense<0.000000e+00> : vector<16x224xf32>
    %112 = tpu.matmul %110, %111, %cst_56 {dimension_numbers = #tpu.dot_dimension_numbers<[1], [0], [0], [1], [0, 0, 1, 1], [], []>} : vector<16x8xf32>, vector<8x224xf32>, vector<16x224xf32> -> vector<16x224xf32>
    %113 = arith.addf %108, %112 : vector<16x224xf32>
    %c7_57 = arith.constant 7 : index
    %c0_58 = arith.constant 0 : index
    %c0_59 = arith.constant 0 : index
    %114 = vector.load %arg5[%c7_57, %c0_58, %c0_59] : memref<9x16x8xf32, #tpu.memory_space<vmem>>, vector<1x16x8xf32>
    %115 = vector.shape_cast %114 : vector<1x16x8xf32> to vector<16x8xf32>
    %116 = vector.extract_strided_slice %77 {offsets = [0, 33], sizes = [8, 224], strides = [1, 1]} : vector<8x384xf32> to vector<8x224xf32>
    %cst_60 = arith.constant dense<0.000000e+00> : vector<16x224xf32>
    %117 = tpu.matmul %115, %116, %cst_60 {dimension_numbers = #tpu.dot_dimension_numbers<[1], [0], [0], [1], [0, 0, 1, 1], [], []>} : vector<16x8xf32>, vector<8x224xf32>, vector<16x224xf32> -> vector<16x224xf32>
    %118 = arith.addf %113, %117 : vector<16x224xf32>
    %c8_61 = arith.constant 8 : index
    %c0_62 = arith.constant 0 : index
    %c0_63 = arith.constant 0 : index
    %119 = vector.load %arg5[%c8_61, %c0_62, %c0_63] : memref<9x16x8xf32, #tpu.memory_space<vmem>>, vector<1x16x8xf32>
    %120 = vector.shape_cast %119 : vector<1x16x8xf32> to vector<16x8xf32>
    %121 = vector.extract_strided_slice %77 {offsets = [0, 34], sizes = [8, 224], strides = [1, 1]} : vector<8x384xf32> to vector<8x224xf32>
    %cst_64 = arith.constant dense<0.000000e+00> : vector<16x224xf32>
    %122 = tpu.matmul %120, %121, %cst_64 {dimension_numbers = #tpu.dot_dimension_numbers<[1], [0], [0], [1], [0, 0, 1, 1], [], []>} : vector<16x8xf32>, vector<8x224xf32>, vector<16x224xf32> -> vector<16x224xf32>
    %123 = arith.addf %118, %122 : vector<16x224xf32>
    %c0_65 = arith.constant 0 : index
    %c0_66 = arith.constant 0 : index
    %124 = vector.load %arg6[%c0_65, %c0_66] : memref<16x1xf32, #tpu.memory_space<vmem>>, vector<16x1xf32>
    %125 = vector.broadcast %124 : vector<16x1xf32> to vector<16x224xf32>
    %126 = arith.addf %123, %125 : vector<16x224xf32>
    %cst_67 = arith.constant 0.000000e+00 : f32
    %127 = vector.broadcast %cst_67 : f32 to vector<16x224xf32>
    %128 = arith.maximumf %126, %127 : vector<16x224xf32>
    %cst_68 = arith.constant -5.000000e-01 : f32
    %129 = vector.broadcast %cst_68 : f32 to vector<16x224xf32>
    %130 = arith.mulf %129, %128 : vector<16x224xf32>
    %131 = arith.mulf %130, %128 : vector<16x224xf32>
    %132 = math.exp %131 : vector<16x224xf32>
    %133 = arith.mulf %132, %128 : vector<16x224xf32>
    %c0_69 = arith.constant 0 : index
    %c0_70 = arith.constant 0 : index
    %134 = vector.load %arg7[%c0_69, %c0_70] : memref<224x64xf32, #tpu.memory_space<vmem>>, vector<224x64xf32>
    %cst_71 = arith.constant dense<0.000000e+00> : vector<16x64xf32>
    %135 = tpu.matmul %133, %134, %cst_71 {dimension_numbers = #tpu.dot_dimension_numbers<[1], [0], [0], [1], [0, 0, 1, 1], [], []>} : vector<16x224xf32>, vector<224x64xf32>, vector<16x64xf32> -> vector<16x64xf32>
    %c0_72 = arith.constant 0 : index
    %c0_73 = arith.constant 0 : index
    %136 = vector.load %arg9[%c0_72, %c0_73] : memref<1x128xf32, #tpu.memory_space<vmem>>, vector<1x128xf32>
    %137 = vector.extract_strided_slice %135 {offsets = [0, 0], sizes = [1, 64], strides = [1, 1]} : vector<16x64xf32> to vector<1x64xf32>
    %c0_74 = arith.constant 0 : index
    %c0_75 = arith.constant 0 : index
    %c0_76 = arith.constant 0 : index
    %138 = vector.load %arg8[%c0_74, %c0_75, %c0_76] : memref<16x64x128xf32, #tpu.memory_space<vmem>>, vector<1x64x128xf32>
    %139 = vector.shape_cast %138 : vector<1x64x128xf32> to vector<64x128xf32>
    %cst_77 = arith.constant dense<0.000000e+00> : vector<1x128xf32>
    %140 = tpu.matmul %137, %139, %cst_77 {dimension_numbers = #tpu.dot_dimension_numbers<[1], [0], [0], [1], [0, 0, 1, 1], [], []>} : vector<1x64xf32>, vector<64x128xf32>, vector<1x128xf32> -> vector<1x128xf32>
    %141 = arith.addf %136, %140 : vector<1x128xf32>
    %142 = vector.extract_strided_slice %135 {offsets = [1, 0], sizes = [1, 64], strides = [1, 1]} : vector<16x64xf32> to vector<1x64xf32>
    %c1_78 = arith.constant 1 : index
    %c0_79 = arith.constant 0 : index
    %c0_80 = arith.constant 0 : index
    %143 = vector.load %arg8[%c1_78, %c0_79, %c0_80] : memref<16x64x128xf32, #tpu.memory_space<vmem>>, vector<1x64x128xf32>
    %144 = vector.shape_cast %143 : vector<1x64x128xf32> to vector<64x128xf32>
    %cst_81 = arith.constant dense<0.000000e+00> : vector<1x128xf32>
    %145 = tpu.matmul %142, %144, %cst_81 {dimension_numbers = #tpu.dot_dimension_numbers<[1], [0], [0], [1], [0, 0, 1, 1], [], []>} : vector<1x64xf32>, vector<64x128xf32>, vector<1x128xf32> -> vector<1x128xf32>
    %146 = arith.addf %141, %145 : vector<1x128xf32>
    %147 = vector.extract_strided_slice %135 {offsets = [2, 0], sizes = [1, 64], strides = [1, 1]} : vector<16x64xf32> to vector<1x64xf32>
    %c2_82 = arith.constant 2 : index
    %c0_83 = arith.constant 0 : index
    %c0_84 = arith.constant 0 : index
    %148 = vector.load %arg8[%c2_82, %c0_83, %c0_84] : memref<16x64x128xf32, #tpu.memory_space<vmem>>, vector<1x64x128xf32>
    %149 = vector.shape_cast %148 : vector<1x64x128xf32> to vector<64x128xf32>
    %cst_85 = arith.constant dense<0.000000e+00> : vector<1x128xf32>
    %150 = tpu.matmul %147, %149, %cst_85 {dimension_numbers = #tpu.dot_dimension_numbers<[1], [0], [0], [1], [0, 0, 1, 1], [], []>} : vector<1x64xf32>, vector<64x128xf32>, vector<1x128xf32> -> vector<1x128xf32>
    %151 = arith.addf %146, %150 : vector<1x128xf32>
    %152 = vector.extract_strided_slice %135 {offsets = [3, 0], sizes = [1, 64], strides = [1, 1]} : vector<16x64xf32> to vector<1x64xf32>
    %c3_86 = arith.constant 3 : index
    %c0_87 = arith.constant 0 : index
    %c0_88 = arith.constant 0 : index
    %153 = vector.load %arg8[%c3_86, %c0_87, %c0_88] : memref<16x64x128xf32, #tpu.memory_space<vmem>>, vector<1x64x128xf32>
    %154 = vector.shape_cast %153 : vector<1x64x128xf32> to vector<64x128xf32>
    %cst_89 = arith.constant dense<0.000000e+00> : vector<1x128xf32>
    %155 = tpu.matmul %152, %154, %cst_89 {dimension_numbers = #tpu.dot_dimension_numbers<[1], [0], [0], [1], [0, 0, 1, 1], [], []>} : vector<1x64xf32>, vector<64x128xf32>, vector<1x128xf32> -> vector<1x128xf32>
    %156 = arith.addf %151, %155 : vector<1x128xf32>
    %157 = vector.extract_strided_slice %135 {offsets = [4, 0], sizes = [1, 64], strides = [1, 1]} : vector<16x64xf32> to vector<1x64xf32>
    %c4_90 = arith.constant 4 : index
    %c0_91 = arith.constant 0 : index
    %c0_92 = arith.constant 0 : index
    %158 = vector.load %arg8[%c4_90, %c0_91, %c0_92] : memref<16x64x128xf32, #tpu.memory_space<vmem>>, vector<1x64x128xf32>
    %159 = vector.shape_cast %158 : vector<1x64x128xf32> to vector<64x128xf32>
    %cst_93 = arith.constant dense<0.000000e+00> : vector<1x128xf32>
    %160 = tpu.matmul %157, %159, %cst_93 {dimension_numbers = #tpu.dot_dimension_numbers<[1], [0], [0], [1], [0, 0, 1, 1], [], []>} : vector<1x64xf32>, vector<64x128xf32>, vector<1x128xf32> -> vector<1x128xf32>
    %161 = arith.addf %156, %160 : vector<1x128xf32>
    %162 = vector.extract_strided_slice %135 {offsets = [5, 0], sizes = [1, 64], strides = [1, 1]} : vector<16x64xf32> to vector<1x64xf32>
    %c5_94 = arith.constant 5 : index
    %c0_95 = arith.constant 0 : index
    %c0_96 = arith.constant 0 : index
    %163 = vector.load %arg8[%c5_94, %c0_95, %c0_96] : memref<16x64x128xf32, #tpu.memory_space<vmem>>, vector<1x64x128xf32>
    %164 = vector.shape_cast %163 : vector<1x64x128xf32> to vector<64x128xf32>
    %cst_97 = arith.constant dense<0.000000e+00> : vector<1x128xf32>
    %165 = tpu.matmul %162, %164, %cst_97 {dimension_numbers = #tpu.dot_dimension_numbers<[1], [0], [0], [1], [0, 0, 1, 1], [], []>} : vector<1x64xf32>, vector<64x128xf32>, vector<1x128xf32> -> vector<1x128xf32>
    %166 = arith.addf %161, %165 : vector<1x128xf32>
    %167 = vector.extract_strided_slice %135 {offsets = [6, 0], sizes = [1, 64], strides = [1, 1]} : vector<16x64xf32> to vector<1x64xf32>
    %c6_98 = arith.constant 6 : index
    %c0_99 = arith.constant 0 : index
    %c0_100 = arith.constant 0 : index
    %168 = vector.load %arg8[%c6_98, %c0_99, %c0_100] : memref<16x64x128xf32, #tpu.memory_space<vmem>>, vector<1x64x128xf32>
    %169 = vector.shape_cast %168 : vector<1x64x128xf32> to vector<64x128xf32>
    %cst_101 = arith.constant dense<0.000000e+00> : vector<1x128xf32>
    %170 = tpu.matmul %167, %169, %cst_101 {dimension_numbers = #tpu.dot_dimension_numbers<[1], [0], [0], [1], [0, 0, 1, 1], [], []>} : vector<1x64xf32>, vector<64x128xf32>, vector<1x128xf32> -> vector<1x128xf32>
    %171 = arith.addf %166, %170 : vector<1x128xf32>
    %172 = vector.extract_strided_slice %135 {offsets = [7, 0], sizes = [1, 64], strides = [1, 1]} : vector<16x64xf32> to vector<1x64xf32>
    %c7_102 = arith.constant 7 : index
    %c0_103 = arith.constant 0 : index
    %c0_104 = arith.constant 0 : index
    %173 = vector.load %arg8[%c7_102, %c0_103, %c0_104] : memref<16x64x128xf32, #tpu.memory_space<vmem>>, vector<1x64x128xf32>
    %174 = vector.shape_cast %173 : vector<1x64x128xf32> to vector<64x128xf32>
    %cst_105 = arith.constant dense<0.000000e+00> : vector<1x128xf32>
    %175 = tpu.matmul %172, %174, %cst_105 {dimension_numbers = #tpu.dot_dimension_numbers<[1], [0], [0], [1], [0, 0, 1, 1], [], []>} : vector<1x64xf32>, vector<64x128xf32>, vector<1x128xf32> -> vector<1x128xf32>
    %176 = arith.addf %171, %175 : vector<1x128xf32>
    %177 = vector.extract_strided_slice %135 {offsets = [8, 0], sizes = [1, 64], strides = [1, 1]} : vector<16x64xf32> to vector<1x64xf32>
    %c8_106 = arith.constant 8 : index
    %c0_107 = arith.constant 0 : index
    %c0_108 = arith.constant 0 : index
    %178 = vector.load %arg8[%c8_106, %c0_107, %c0_108] : memref<16x64x128xf32, #tpu.memory_space<vmem>>, vector<1x64x128xf32>
    %179 = vector.shape_cast %178 : vector<1x64x128xf32> to vector<64x128xf32>
    %cst_109 = arith.constant dense<0.000000e+00> : vector<1x128xf32>
    %180 = tpu.matmul %177, %179, %cst_109 {dimension_numbers = #tpu.dot_dimension_numbers<[1], [0], [0], [1], [0, 0, 1, 1], [], []>} : vector<1x64xf32>, vector<64x128xf32>, vector<1x128xf32> -> vector<1x128xf32>
    %181 = arith.addf %176, %180 : vector<1x128xf32>
    %182 = vector.extract_strided_slice %135 {offsets = [9, 0], sizes = [1, 64], strides = [1, 1]} : vector<16x64xf32> to vector<1x64xf32>
    %c9 = arith.constant 9 : index
    %c0_110 = arith.constant 0 : index
    %c0_111 = arith.constant 0 : index
    %183 = vector.load %arg8[%c9, %c0_110, %c0_111] : memref<16x64x128xf32, #tpu.memory_space<vmem>>, vector<1x64x128xf32>
    %184 = vector.shape_cast %183 : vector<1x64x128xf32> to vector<64x128xf32>
    %cst_112 = arith.constant dense<0.000000e+00> : vector<1x128xf32>
    %185 = tpu.matmul %182, %184, %cst_112 {dimension_numbers = #tpu.dot_dimension_numbers<[1], [0], [0], [1], [0, 0, 1, 1], [], []>} : vector<1x64xf32>, vector<64x128xf32>, vector<1x128xf32> -> vector<1x128xf32>
    %186 = arith.addf %181, %185 : vector<1x128xf32>
    %187 = vector.extract_strided_slice %135 {offsets = [10, 0], sizes = [1, 64], strides = [1, 1]} : vector<16x64xf32> to vector<1x64xf32>
    %c10 = arith.constant 10 : index
    %c0_113 = arith.constant 0 : index
    %c0_114 = arith.constant 0 : index
    %188 = vector.load %arg8[%c10, %c0_113, %c0_114] : memref<16x64x128xf32, #tpu.memory_space<vmem>>, vector<1x64x128xf32>
    %189 = vector.shape_cast %188 : vector<1x64x128xf32> to vector<64x128xf32>
    %cst_115 = arith.constant dense<0.000000e+00> : vector<1x128xf32>
    %190 = tpu.matmul %187, %189, %cst_115 {dimension_numbers = #tpu.dot_dimension_numbers<[1], [0], [0], [1], [0, 0, 1, 1], [], []>} : vector<1x64xf32>, vector<64x128xf32>, vector<1x128xf32> -> vector<1x128xf32>
    %191 = arith.addf %186, %190 : vector<1x128xf32>
    %192 = vector.extract_strided_slice %135 {offsets = [11, 0], sizes = [1, 64], strides = [1, 1]} : vector<16x64xf32> to vector<1x64xf32>
    %c11 = arith.constant 11 : index
    %c0_116 = arith.constant 0 : index
    %c0_117 = arith.constant 0 : index
    %193 = vector.load %arg8[%c11, %c0_116, %c0_117] : memref<16x64x128xf32, #tpu.memory_space<vmem>>, vector<1x64x128xf32>
    %194 = vector.shape_cast %193 : vector<1x64x128xf32> to vector<64x128xf32>
    %cst_118 = arith.constant dense<0.000000e+00> : vector<1x128xf32>
    %195 = tpu.matmul %192, %194, %cst_118 {dimension_numbers = #tpu.dot_dimension_numbers<[1], [0], [0], [1], [0, 0, 1, 1], [], []>} : vector<1x64xf32>, vector<64x128xf32>, vector<1x128xf32> -> vector<1x128xf32>
    %196 = arith.addf %191, %195 : vector<1x128xf32>
    %197 = vector.extract_strided_slice %135 {offsets = [12, 0], sizes = [1, 64], strides = [1, 1]} : vector<16x64xf32> to vector<1x64xf32>
    %c12 = arith.constant 12 : index
    %c0_119 = arith.constant 0 : index
    %c0_120 = arith.constant 0 : index
    %198 = vector.load %arg8[%c12, %c0_119, %c0_120] : memref<16x64x128xf32, #tpu.memory_space<vmem>>, vector<1x64x128xf32>
    %199 = vector.shape_cast %198 : vector<1x64x128xf32> to vector<64x128xf32>
    %cst_121 = arith.constant dense<0.000000e+00> : vector<1x128xf32>
    %200 = tpu.matmul %197, %199, %cst_121 {dimension_numbers = #tpu.dot_dimension_numbers<[1], [0], [0], [1], [0, 0, 1, 1], [], []>} : vector<1x64xf32>, vector<64x128xf32>, vector<1x128xf32> -> vector<1x128xf32>
    %201 = arith.addf %196, %200 : vector<1x128xf32>
    %202 = vector.extract_strided_slice %135 {offsets = [13, 0], sizes = [1, 64], strides = [1, 1]} : vector<16x64xf32> to vector<1x64xf32>
    %c13 = arith.constant 13 : index
    %c0_122 = arith.constant 0 : index
    %c0_123 = arith.constant 0 : index
    %203 = vector.load %arg8[%c13, %c0_122, %c0_123] : memref<16x64x128xf32, #tpu.memory_space<vmem>>, vector<1x64x128xf32>
    %204 = vector.shape_cast %203 : vector<1x64x128xf32> to vector<64x128xf32>
    %cst_124 = arith.constant dense<0.000000e+00> : vector<1x128xf32>
    %205 = tpu.matmul %202, %204, %cst_124 {dimension_numbers = #tpu.dot_dimension_numbers<[1], [0], [0], [1], [0, 0, 1, 1], [], []>} : vector<1x64xf32>, vector<64x128xf32>, vector<1x128xf32> -> vector<1x128xf32>
    %206 = arith.addf %201, %205 : vector<1x128xf32>
    %207 = vector.extract_strided_slice %135 {offsets = [14, 0], sizes = [1, 64], strides = [1, 1]} : vector<16x64xf32> to vector<1x64xf32>
    %c14 = arith.constant 14 : index
    %c0_125 = arith.constant 0 : index
    %c0_126 = arith.constant 0 : index
    %208 = vector.load %arg8[%c14, %c0_125, %c0_126] : memref<16x64x128xf32, #tpu.memory_space<vmem>>, vector<1x64x128xf32>
    %209 = vector.shape_cast %208 : vector<1x64x128xf32> to vector<64x128xf32>
    %cst_127 = arith.constant dense<0.000000e+00> : vector<1x128xf32>
    %210 = tpu.matmul %207, %209, %cst_127 {dimension_numbers = #tpu.dot_dimension_numbers<[1], [0], [0], [1], [0, 0, 1, 1], [], []>} : vector<1x64xf32>, vector<64x128xf32>, vector<1x128xf32> -> vector<1x128xf32>
    %211 = arith.addf %206, %210 : vector<1x128xf32>
    %212 = vector.extract_strided_slice %135 {offsets = [15, 0], sizes = [1, 64], strides = [1, 1]} : vector<16x64xf32> to vector<1x64xf32>
    %c15 = arith.constant 15 : index
    %c0_128 = arith.constant 0 : index
    %c0_129 = arith.constant 0 : index
    %213 = vector.load %arg8[%c15, %c0_128, %c0_129] : memref<16x64x128xf32, #tpu.memory_space<vmem>>, vector<1x64x128xf32>
    %214 = vector.shape_cast %213 : vector<1x64x128xf32> to vector<64x128xf32>
    %cst_130 = arith.constant dense<0.000000e+00> : vector<1x128xf32>
    %215 = tpu.matmul %212, %214, %cst_130 {dimension_numbers = #tpu.dot_dimension_numbers<[1], [0], [0], [1], [0, 0, 1, 1], [], []>} : vector<1x64xf32>, vector<64x128xf32>, vector<1x128xf32> -> vector<1x128xf32>
    %216 = arith.addf %211, %215 : vector<1x128xf32>
    %c0_131 = arith.constant 0 : index
    %c0_132 = arith.constant 0 : index
    %c0_133 = arith.constant 0 : index
    %217 = vector.load %arg10[%c0_131, %c0_132, %c0_133] : memref<1x1x128xf32, #tpu.memory_space<vmem>>, vector<1x1x128xf32>
    %218 = vector.shape_cast %217 : vector<1x1x128xf32> to vector<1x128xf32>
    %219 = vector.shape_cast %216 : vector<1x128xf32> to vector<1x1x128xf32>
    tpu.vector_store %arg10[%c0_131, %c0_132, %c0_133], %219 {strides = array<i32>} : memref<1x1x128xf32, #tpu.memory_space<vmem>>, vector<1x1x128xf32>,
    return
  }
  func.func @transform_0(%arg0: i32) -> (i32, i32, i32) {
    %c0_i32 = arith.constant 0 : i32
    %c0_i32_0 = arith.constant 0 : i32
    %c0_i32_1 = arith.constant 0 : i32
    return %arg0, %c0_i32, %c0_i32_0 : i32, i32, i32
  }
  func.func @transform_1(%arg0: i32) -> (i32, i32, i32) {
    %c0_i32 = arith.constant 0 : i32
    %c0_i32_0 = arith.constant 0 : i32
    %c0_i32_1 = arith.constant 0 : i32
    %c0_i32_2 = arith.constant 0 : i32
    return %c0_i32, %c0_i32_0, %c0_i32_1 : i32, i32, i32
  }
  func.func @transform_2(%arg0: i32) -> (i32, i32) {
    %c0_i32 = arith.constant 0 : i32
    %c0_i32_0 = arith.constant 0 : i32
    %c0_i32_1 = arith.constant 0 : i32
    return %c0_i32, %c0_i32_0 : i32, i32
  }
  func.func @transform_3(%arg0: i32) -> (i32, i32) {
    %c0_i32 = arith.constant 0 : i32
    %c0_i32_0 = arith.constant 0 : i32
    %c0_i32_1 = arith.constant 0 : i32
    return %c0_i32, %c0_i32_0 : i32, i32
  }
  func.func @transform_4(%arg0: i32) -> (i32, i32, i32) {
    %c0_i32 = arith.constant 0 : i32
    %c0_i32_0 = arith.constant 0 : i32
    %c0_i32_1 = arith.constant 0 : i32
    %c0_i32_2 = arith.constant 0 : i32
    return %c0_i32, %c0_i32_0, %c0_i32_1 : i32, i32, i32
  }
  func.func @transform_5(%arg0: i32) -> (i32, i32) {
    %c0_i32 = arith.constant 0 : i32
    %c0_i32_0 = arith.constant 0 : i32
    %c0_i32_1 = arith.constant 0 : i32
    return %c0_i32, %c0_i32_0 : i32, i32
  }
  func.func @transform_6(%arg0: i32) -> (i32, i32) {
    %c0_i32 = arith.constant 0 : i32
    %c0_i32_0 = arith.constant 0 : i32
    %c0_i32_1 = arith.constant 0 : i32
    return %c0_i32, %c0_i32_0 : i32, i32
  }
  func.func @transform_7(%arg0: i32) -> (i32, i32, i32) {
    %c0_i32 = arith.constant 0 : i32
    %c0_i32_0 = arith.constant 0 : i32
    %c0_i32_1 = arith.constant 0 : i32
    %c0_i32_2 = arith.constant 0 : i32
    return %c0_i32, %c0_i32_0, %c0_i32_1 : i32, i32, i32
  }
  func.func @transform_8(%arg0: i32) -> (i32, i32) {
    %c0_i32 = arith.constant 0 : i32
    %c0_i32_0 = arith.constant 0 : i32
    %c0_i32_1 = arith.constant 0 : i32
    return %c0_i32, %c0_i32_0 : i32, i32
  }
  func.func @transform_9(%arg0: i32) -> (i32, i32, i32) {
    %c0_i32 = arith.constant 0 : i32
    %c0_i32_0 = arith.constant 0 : i32
    %c0_i32_1 = arith.constant 0 : i32
    return %arg0, %c0_i32, %c0_i32_0 : i32, i32, i32
  }
}

</mosaic_0001>

<llo_original>
// kernel: cnn_with_fuzzy_pooling.1
$region0: #{cnn_with_fuzzy_pooling.1}
  #allocation0 [shape = 'u32[]', space=smem, size = 0x4, offset = 0x4, fixed_abs, tag = 'smem constant byte address 0x4 - core index']
  #allocation1 [shape = 'u32[144,128]{1,0:T(1,128)}', space=vmem, size = 0x12000, scoped, tag = 'internal scratch']
  %s0 = inlined_call_operand.vmem [shape: f32[2,1,1024], index: 0, kind: input, shape index: {}]
  %s1 = inlined_call_operand.vmem [shape: f32[9,8,1], index: 1, kind: input, shape index: {}]
  %s2 = inlined_call_operand.vmem [shape: f32[8,1], index: 2, kind: input, shape index: {}]
  %s3 = inlined_call_operand.hbm [shape: f32[840,384], index: 3, kind: input, shape index: {}]
  %s4 = inlined_call_operand.vmem [shape: f32[9,16,8], index: 4, kind: input, shape index: {}]
  %s5 = inlined_call_operand.vmem [shape: f32[16,1], index: 5, kind: input, shape index: {}]
  %s6 = inlined_call_operand.vmem [shape: f32[224,64], index: 6, kind: input, shape index: {}]
  %s7 = inlined_call_operand.hbm [shape: f32[16,64,128], index: 7, kind: input, shape index: {}]
  %s8 = inlined_call_operand.hbm [shape: f32[1,128], index: 8, kind: input, shape index: {}]
  %s9 = inlined_call_operand.hbm [shape: f32[2,1,128], index: 9, kind: output, shape index: {}]
  %s10 = sld [smem:[#allocation0]]
  $region81: #{cnn_with_fuzzy_pooling.1} parent=0
    _
  %s12 = ssub.s32 1, %s10
  %s13 = scalar_select 0, %s12, %s10
  $region1: #{cnn_with_fuzzy_pooling.1} parent=0
    #allocation2 [shape = 'u8[1290240]{0}', space=vmem, size = 0x13b000, scoped, tag = 'input window, operand 3, single buffered']
    #allocation3 [shape = 's32[2]{0}', space=sflag, size = 0x8, scoped, tag = 'scoped memory for cnn_with_fuzzy_pooling.1']
    #allocation4 [shape = 's32[2]{0}', space=sflag, size = 0x8, scoped, tag = 'scoped memory for cnn_with_fuzzy_pooling.1']
    #allocation5 [shape = 'u8[524288]{0}', space=vmem, size = 0x80000, scoped, tag = 'input window, operand 7, single buffered']
    #allocation6 [shape = 's32[1]{0}', space=sflag, size = 0x4, scoped, tag = 'scoped memory for cnn_with_fuzzy_pooling.1']
    #allocation7 [shape = 'u8[512]{0}', space=vmem, size = 0x400, scoped, tag = 'input window, operand 8, single buffered']
    #allocation8 [shape = 'u8[1024]{0}', space=vmem, size = 0x400, scoped, tag = 'output window, operand 0']
    %14 = vsyncpa [#allocation3], 0
    %15 = vsyncpa [#allocation6], 0
    %16 = vsyncpa [#allocation4], 0
    %s17 = scalar_lea.sflag [#allocation4], 1
    %18 = vsyncpa %s17, 0
    loop: start=0, step=1, limit=4
    $region2: #{cnn_with_fuzzy_pooling.1} parent=1 // loop_pre_header
      _
    $region3: #{cnn_with_fuzzy_pooling.1} parent=1 // loop_header
      %s20 = sphi 0, %s24
      %p21 = scmp.ge.s32.totalorder %s20, 4
      %s30 = sphi 0, %s32
      %s33 = sphi 0, %s30
      %s34 = sphi 0, %s33
      %s50 = sphi 0, %s34
      %s54 = sphi 0, %s54
      %s56 = sphi 0, %s54
      %s57 = sphi 0, %s56
      %s71 = sphi 0, %s57
      %s75 = sphi 0, %s75
      %s77 = sphi 0, %s75
      %s78 = sphi 0, %s77
      %s92 = sphi 0, %s78
      %s96 = sphi 0, %s96
      %s98 = sphi 0, %s96
      %s99 = sphi 0, %s98
      %s113 = sphi 0, %s99
      %s117 = sphi 0, %s117
      %s119 = sphi 0, %s117
      %s120 = sphi 0, %s119
      %s134 = sphi 0, %s120
      %s138 = sphi 0, %s138
      %s140 = sphi 0, %s138
      %s141 = sphi 0, %s140
      %s155 = sphi 0, %s141
      %s159 = sphi 0, %s159
      %s161 = sphi 0, %s159
      %s162 = sphi 0, %s161
      %s176 = sphi 0, %s162
      %s180 = sphi 0, %s180
      %s182 = sphi 0, %s180
      %s183 = sphi 0, %s182
      %s197 = sphi 0, %s183
      %s201 = sphi 0, %s201
      %s203 = sphi 0, %s201
      %s204 = sphi 0, %s203
      %s218 = sphi 0, %s204
      %s224 = sphi 0, %s226
      %s227 = sphi 0, %s224
      %s228 = sphi 0, %s227
      %s244 = sphi 0, %s228
    $region4: #{cnn_with_fuzzy_pooling.1} parent=1 // loop_header_branch
      %23 = sbr.rel (%p21) target = $region8
    $region5: #{cnn_with_fuzzy_pooling.1} parent=1 // loop_body
      %s25 = ssub.s32 %s20, 1
      %s26 = ssub.s32 %s20, 2
      %s27 = sadd.s32 %s20, 1
      %s28 = ssub.s32 %s20, %s27
      %p29 = scmp.eq.s32.totalorder %s28, 0
      %s31 = sadd.s32 %s30, 1
      %s32 = scalar_select %p29, %s30, %s31
      %p35 = pneg %p29
      %p36 = scmp.eq.s32.totalorder %s20, 1
      %p37 = por %p35, %p36
      %p38 = scmp.ne.s32.totalorder %s30, %s33
      %p39 = scmp.eq.s32.totalorder %s20, 0
      %p40 = por %p38, %p39
      %p41 = scmp.ne.s32.totalorder %s30, %s33
      %p42 = scmp.eq.s32.totalorder %s25, 1
      %p43 = por %p41, %p42
      %p44 = scmp.ne.s32.totalorder %s33, %s34
      %p45 = scmp.eq.s32.totalorder %s25, 0
      %p46 = por %p44, %p45
      %p47 = scmp.ne.s32.totalorder %s33, %s34
      %p48 = scmp.eq.s32.totalorder %s26, 1
      %p49 = por %p47, %p48
      %p51 = scmp.ne.s32.totalorder %s34, %s50
      %p52 = scmp.eq.s32.totalorder %s26, 0
      %p53 = por %p51, %p52
      %s55 = sadd.s32 %s54, 1
      %p58 = scmp.eq.s32.totalorder %s20, 1
      %p59 = scmp.ne.s32.totalorder %s54, %s56
      %p60 = scmp.eq.s32.totalorder %s20, 0
      %p61 = por %p59, %p60
      %p62 = scmp.ne.s32.totalorder %s54, %s56
      %p63 = scmp.eq.s32.totalorder %s25, 1
      %p64 = por %p62, %p63
      %p65 = scmp.ne.s32.totalorder %s56, %s57
      %p66 = scmp.eq.s32.totalorder %s25, 0
      %p67 = por %p65, %p66
      %p68 = scmp.ne.s32.totalorder %s56, %s57
      %p69 = scmp.eq.s32.totalorder %s26, 1
      %p70 = por %p68, %p69
      %p72 = scmp.ne.s32.totalorder %s57, %s71
      %p73 = scmp.eq.s32.totalorder %s26, 0
      %p74 = por %p72, %p73
      %s76 = sadd.s32 %s75, 1
      %p79 = scmp.eq.s32.totalorder %s20, 1
      %p80 = scmp.ne.s32.totalorder %s75, %s77
      %p81 = scmp.eq.s32.totalorder %s20, 0
      %p82 = por %p80, %p81
      %p83 = scmp.ne.s32.totalorder %s75, %s77
      %p84 = scmp.eq.s32.totalorder %s25, 1
      %p85 = por %p83, %p84
      %p86 = scmp.ne.s32.totalorder %s77, %s78
      %p87 = scmp.eq.s32.totalorder %s25, 0
      %p88 = por %p86, %p87
      %p89 = scmp.ne.s32.totalorder %s77, %s78
      %p90 = scmp.eq.s32.totalorder %s26, 1
      %p91 = por %p89, %p90
      %p93 = scmp.ne.s32.totalorder %s78, %s92
      %p94 = scmp.eq.s32.totalorder %s26, 0
      %p95 = por %p93, %p94
      %s97 = sadd.s32 %s96, 1
      %p100 = scmp.eq.s32.totalorder %s20, 1
      %p101 = scmp.ne.s32.totalorder %s96, %s98
      %p102 = scmp.eq.s32.totalorder %s20, 0
      %p103 = por %p101, %p102
      %p104 = scmp.ne.s32.totalorder %s96, %s98
      %p105 = scmp.eq.s32.totalorder %s25, 1
      %p106 = por %p104, %p105
      %p107 = scmp.ne.s32.totalorder %s98, %s99
      %p108 = scmp.eq.s32.totalorder %s25, 0
      %p109 = por %p107, %p108
      %p110 = scmp.ne.s32.totalorder %s98, %s99
      %p111 = scmp.eq.s32.totalorder %s26, 1
      %p112 = por %p110, %p111
      %p114 = scmp.ne.s32.totalorder %s99, %s113
      %p115 = scmp.eq.s32.totalorder %s26, 0
      %p116 = por %p114, %p115
      %s118 = sadd.s32 %s117, 1
      %p121 = scmp.eq.s32.totalorder %s20, 1
      %p122 = scmp.ne.s32.totalorder %s117, %s119
      %p123 = scmp.eq.s32.totalorder %s20, 0
      %p124 = por %p122, %p123
      %p125 = scmp.ne.s32.totalorder %s117, %s119
      %p126 = scmp.eq.s32.totalorder %s25, 1
      %p127 = por %p125, %p126
      %p128 = scmp.ne.s32.totalorder %s119, %s120
      %p129 = scmp.eq.s32.totalorder %s25, 0
      %p130 = por %p128, %p129
      %p131 = scmp.ne.s32.totalorder %s119, %s120
      %p132 = scmp.eq.s32.totalorder %s26, 1
      %p133 = por %p131, %p132
      %p135 = scmp.ne.s32.totalorder %s120, %s134
      %p136 = scmp.eq.s32.totalorder %s26, 0
      %p137 = por %p135, %p136
      %s139 = sadd.s32 %s138, 1
      %p142 = scmp.eq.s32.totalorder %s20, 1
      %p143 = scmp.ne.s32.totalorder %s138, %s140
      %p144 = scmp.eq.s32.totalorder %s20, 0
      %p145 = por %p143, %p144
      %p146 = scmp.ne.s32.totalorder %s138, %s140
      %p147 = scmp.eq.s32.totalorder %s25, 1
      %p148 = por %p146, %p147
      %p149 = scmp.ne.s32.totalorder %s140, %s141
      %p150 = scmp.eq.s32.totalorder %s25, 0
      %p151 = por %p149, %p150
      %p152 = scmp.ne.s32.totalorder %s140, %s141
      %p153 = scmp.eq.s32.totalorder %s26, 1
      %p154 = por %p152, %p153
      %p156 = scmp.ne.s32.totalorder %s141, %s155
      %p157 = scmp.eq.s32.totalorder %s26, 0
      %p158 = por %p156, %p157
      %s160 = sadd.s32 %s159, 1
      %p163 = scmp.eq.s32.totalorder %s20, 1
      %p164 = scmp.ne.s32.totalorder %s159, %s161
      %p165 = scmp.eq.s32.totalorder %s20, 0
      %p166 = por %p164, %p165
      %p167 = scmp.ne.s32.totalorder %s159, %s161
      %p168 = scmp.eq.s32.totalorder %s25, 1
      %p169 = por %p167, %p168
      %p170 = scmp.ne.s32.totalorder %s161, %s162
      %p171 = scmp.eq.s32.totalorder %s25, 0
      %p172 = por %p170, %p171
      %p173 = scmp.ne.s32.totalorder %s161, %s162
      %p174 = scmp.eq.s32.totalorder %s26, 1
      %p175 = por %p173, %p174
      %p177 = scmp.ne.s32.totalorder %s162, %s176
      %p178 = scmp.eq.s32.totalorder %s26, 0
      %p179 = por %p177, %p178
      %s181 = sadd.s32 %s180, 1
      %p184 = scmp.eq.s32.totalorder %s20, 1
      %p185 = scmp.ne.s32.totalorder %s180, %s182
      %p186 = scmp.eq.s32.totalorder %s20, 0
      %p187 = por %p185, %p186
      %p188 = scmp.ne.s32.totalorder %s180, %s182
      %p189 = scmp.eq.s32.totalorder %s25, 1
      %p190 = por %p188, %p189
      %p191 = scmp.ne.s32.totalorder %s182, %s183
      %p192 = scmp.eq.s32.totalorder %s25, 0
      %p193 = por %p191, %p192
      %p194 = scmp.ne.s32.totalorder %s182, %s183
      %p195 = scmp.eq.s32.totalorder %s26, 1
      %p196 = por %p194, %p195
      %p198 = scmp.ne.s32.totalorder %s183, %s197
      %p199 = scmp.eq.s32.totalorder %s26, 0
      %p200 = por %p198, %p199
      %s202 = sadd.s32 %s201, 1
      %p205 = scmp.eq.s32.totalorder %s20, 1
      %p206 = scmp.ne.s32.totalorder %s201, %s203
      %p207 = scmp.eq.s32.totalorder %s20, 0
      %p208 = por %p206, %p207
      %p209 = scmp.ne.s32.totalorder %s201, %s203
      %p210 = scmp.eq.s32.totalorder %s25, 1
      %p211 = por %p209, %p210
      %p212 = scmp.ne.s32.totalorder %s203, %s204
      %p213 = scmp.eq.s32.totalorder %s25, 0
      %p214 = por %p212, %p213
      %p215 = scmp.ne.s32.totalorder %s203, %s204
      %p216 = scmp.eq.s32.totalorder %s26, 1
      %p217 = por %p215, %p216
      %p219 = scmp.ne.s32.totalorder %s204, %s218
      %p220 = scmp.eq.s32.totalorder %s26, 0
      %p221 = por %p219, %p220
      %s222 = ssub.s32 %s20, %s27
      %p223 = scmp.eq.s32.totalorder %s222, 0
      %s225 = sadd.s32 %s224, 1
      %s226 = scalar_select %p223, %s224, %s225
      %p229 = pneg %p223
      %p230 = scmp.eq.s32.totalorder %s20, 1
      %p231 = por %p229, %p230
      %p232 = scmp.ne.s32.totalorder %s224, %s227
      %p233 = scmp.eq.s32.totalorder %s20, 0
      %p234 = por %p232, %p233
      %p235 = scmp.ne.s32.totalorder %s224, %s227
      %p236 = scmp.eq.s32.totalorder %s25, 1
      %p237 = por %p235, %p236
      %p238 = scmp.ne.s32.totalorder %s227, %s228
      %p239 = scmp.eq.s32.totalorder %s25, 0
      %p240 = por %p238, %p239
      %p241 = scmp.ne.s32.totalorder %s227, %s228
      %p242 = scmp.eq.s32.totalorder %s26, 1
      %p243 = por %p241, %p242
      %p245 = scmp.ne.s32.totalorder %s228, %s244
      %p246 = scmp.eq.s32.totalorder %s26, 0
      %p247 = por %p245, %p246
      %p248 = scmp.le.s32.totalorder 1, %s20
      %p249 = scmp.lt.s32.totalorder %s20, 3
      %p250 = pnand %p248, %p249
      %p251 = pneg %p250
      // Predicated region
      $region9: #{cnn_with_fuzzy_pooling.1} parent=5 // pred_check
        _
      $region10: #{cnn_with_fuzzy_pooling.1} parent=5 // pred_check_branch
        %253 = sbr.rel (%p250) target = $region12
      $region11: #{cnn_with_fuzzy_pooling.1} parent=5 // pred_region
        %s254 = ssub.s32 %s20, 1
        // Predicated region
        $region13: #{cnn_with_fuzzy_pooling.1} parent=11 // pred_check
          %p255 = pneg %p67
        $region14: #{cnn_with_fuzzy_pooling.1} parent=11 // pred_check_branch
          %257 = sbr.rel (%p255) target = $region16
        $region15: #{cnn_with_fuzzy_pooling.1} parent=11 // pred_region
          _
        $region16: #{cnn_with_fuzzy_pooling.1} parent=11 // pred_fallthru
          _
        // Predicated region
        $region17: #{cnn_with_fuzzy_pooling.1} parent=11 // pred_check
          %p258 = pneg %p88
        $region18: #{cnn_with_fuzzy_pooling.1} parent=11 // pred_check_branch
          %260 = sbr.rel (%p258) target = $region20
        $region19: #{cnn_with_fuzzy_pooling.1} parent=11 // pred_region
          _
        $region20: #{cnn_with_fuzzy_pooling.1} parent=11 // pred_fallthru
          _
        // Predicated region
        $region21: #{cnn_with_fuzzy_pooling.1} parent=11 // pred_check
          %p261 = pneg %p109
        $region22: #{cnn_with_fuzzy_pooling.1} parent=11 // pred_check_branch
          %263 = sbr.rel (%p261) target = $region24
        $region23: #{cnn_with_fuzzy_pooling.1} parent=11 // pred_region
          %s265 = ssub.s32 40320, 40320
          %266 = vsyncadd [#allocation3], %s265
          %s267 = sshll.u32 [#allocation2], 4
          %s268 = int_to_ptr.vmem [resolvable:$true] %s267
          %273 = dma.hbm_to_vmem [thread:$0]  %s3, 40320, %s268, [#allocation3], 384, 384, 24
        $region24: #{cnn_with_fuzzy_pooling.1} parent=11 // pred_fallthru
          _
        // Predicated region
        $region25: #{cnn_with_fuzzy_pooling.1} parent=11 // pred_check
          %p274 = pneg %p130
        $region26: #{cnn_with_fuzzy_pooling.1} parent=11 // pred_check_branch
          %276 = sbr.rel (%p274) target = $region28
        $region27: #{cnn_with_fuzzy_pooling.1} parent=11 // pred_region
          _
        $region28: #{cnn_with_fuzzy_pooling.1} parent=11 // pred_fallthru
          _
        // Predicated region
        $region29: #{cnn_with_fuzzy_pooling.1} parent=11 // pred_check
          %p277 = pneg %p151
        $region30: #{cnn_with_fuzzy_pooling.1} parent=11 // pred_check_branch
          %279 = sbr.rel (%p277) target = $region32
        $region31: #{cnn_with_fuzzy_pooling.1} parent=11 // pred_region
          _
        $region32: #{cnn_with_fuzzy_pooling.1} parent=11 // pred_fallthru
          _
        // Predicated region
        $region33: #{cnn_with_fuzzy_pooling.1} parent=11 // pred_check
          %p280 = pneg %p172
        $region34: #{cnn_with_fuzzy_pooling.1} parent=11 // pred_check_branch
          %282 = sbr.rel (%p280) target = $region36
        $region35: #{cnn_with_fuzzy_pooling.1} parent=11 // pred_region
          _
        $region36: #{cnn_with_fuzzy_pooling.1} parent=11 // pred_fallthru
          _
        // Predicated region
        $region37: #{cnn_with_fuzzy_pooling.1} parent=11 // pred_check
          %p283 = pneg %p193
        $region38: #{cnn_with_fuzzy_pooling.1} parent=11 // pred_check_branch
          %285 = sbr.rel (%p283) target = $region40
        $region39: #{cnn_with_fuzzy_pooling.1} parent=11 // pred_region
          %s287 = ssub.s32 16384, 16384
          %288 = vsyncadd [#allocation6], %s287
          %s289 = sshll.u32 [#allocation5], 4
          %s290 = int_to_ptr.vmem [resolvable:$true] %s289
          %295 = dma.hbm_to_vmem [thread:$0]  %s7, 16384, %s290, [#allocation6], 128, 128, 8
        $region40: #{cnn_with_fuzzy_pooling.1} parent=11 // pred_fallthru
          _
        // Predicated region
        $region41: #{cnn_with_fuzzy_pooling.1} parent=11 // pred_check
          %p296 = pneg %p214
        $region42: #{cnn_with_fuzzy_pooling.1} parent=11 // pred_check_branch
          %298 = sbr.rel (%p296) target = $region44
        $region43: #{cnn_with_fuzzy_pooling.1} parent=11 // pred_region
          %s300 = ssub.s32 16, 16
          %301 = vsyncadd [#allocation6], %s300
          %s303 = sshll.u32 [#allocation7], 4
          %s304 = int_to_ptr.vmem [resolvable:$true] %s303
          %306 = dma.hbm_to_vmem [thread:$0]  %s8, 16, %s304, [#allocation6]
        $region44: #{cnn_with_fuzzy_pooling.1} parent=11 // pred_fallthru
          _
      $region12: #{cnn_with_fuzzy_pooling.1} parent=5 // pred_fallthru
        _
      %p307 = scmp.lt.s32.totalorder %s20, 2
      // Predicated region
      $region45: #{cnn_with_fuzzy_pooling.1} parent=5 // pred_check
        %p308 = pneg %p307
      $region46: #{cnn_with_fuzzy_pooling.1} parent=5 // pred_check_branch
        %310 = sbr.rel (%p308) target = $region48
      $region47: #{cnn_with_fuzzy_pooling.1} parent=5 // pred_region
        // Predicated region
        $region49: #{cnn_with_fuzzy_pooling.1} parent=47 // pred_check
          %p311 = pneg %p40
        $region50: #{cnn_with_fuzzy_pooling.1} parent=47 // pred_check_branch
          %313 = sbr.rel (%p311) target = $region52
        $region51: #{cnn_with_fuzzy_pooling.1} parent=47 // pred_region
          %p314 = scmp.lt.s32.totalorder %s20, 1
          %s315 = scalar_select %p314, %s20, 1
          %s316 = smul.addr %s315, 8
          %s317 = scalar_lea.vmem %s0, %s316
        $region52: #{cnn_with_fuzzy_pooling.1} parent=47 // pred_fallthru
          _
      $region48: #{cnn_with_fuzzy_pooling.1} parent=5 // pred_fallthru
        _
      %p318 = scmp.le.s32.totalorder 1, %s20
      %p319 = scmp.lt.s32.totalorder %s20, 3
      %p320 = pnand %p318, %p319
      %p321 = pneg %p320
      // Predicated region
      $region53: #{cnn_with_fuzzy_pooling.1} parent=5 // pred_check
        _
      $region54: #{cnn_with_fuzzy_pooling.1} parent=5 // pred_check_branch
        %323 = sbr.rel (%p320) target = $region56
      $region55: #{cnn_with_fuzzy_pooling.1} parent=5 // pred_region
        %s324 = ssub.s32 %s20, 1
        // Predicated region
        $region57: #{cnn_with_fuzzy_pooling.1} parent=55 // pred_check
          %p325 = pneg %p109
        $region58: #{cnn_with_fuzzy_pooling.1} parent=55 // pred_check_branch
          %327 = sbr.rel (%p325) target = $region60
        $region59: #{cnn_with_fuzzy_pooling.1} parent=55 // pred_region
          %328 = dma.done [#allocation3], 40320
        $region60: #{cnn_with_fuzzy_pooling.1} parent=55 // pred_fallthru
          _
        // Predicated region
        $region61: #{cnn_with_fuzzy_pooling.1} parent=55 // pred_check
          %p329 = pneg %p193
        $region62: #{cnn_with_fuzzy_pooling.1} parent=55 // pred_check_branch
          %331 = sbr.rel (%p329) target = $region64
        $region63: #{cnn_with_fuzzy_pooling.1} parent=55 // pred_region
          %332 = dma.done [#allocation6], 16384
        $region64: #{cnn_with_fuzzy_pooling.1} parent=55 // pred_fallthru
          _
        // Predicated region
        $region65: #{cnn_with_fuzzy_pooling.1} parent=55 // pred_check
          %p333 = pneg %p214
        $region66: #{cnn_with_fuzzy_pooling.1} parent=55 // pred_check_branch
          %335 = sbr.rel (%p333) target = $region68
        $region67: #{cnn_with_fuzzy_pooling.1} parent=55 // pred_region
          %336 = dma.done [#allocation6], 16
        $region68: #{cnn_with_fuzzy_pooling.1} parent=55 // pred_fallthru
          _
        %p337 = scmp.lt.s32.totalorder %s25, 1
        %s338 = scalar_select %p337, %s25, 1
        %s339 = smul.addr %s338, 8
        %s340 = scalar_lea.vmem %s0, %s339
        %p341 = pneg %p46
        %p342 = pneg %p43
        %p343 = pneg %p67
        %p344 = pneg %p64
        %p345 = pneg %p88
        %p346 = pneg %p85
        %p347 = pneg %p109
        %p348 = pneg %p106
        %p349 = pneg %p130
        %p350 = pneg %p127
        %p351 = pneg %p151
        %p352 = pneg %p148
        %p353 = pneg %p172
        %p354 = pneg %p169
        %p355 = pneg %p193
        %p356 = pneg %p190
        %p357 = pneg %p214
        %p358 = pneg %p211
        %p359 = pneg %p240
        %p360 = pneg %p237
        %s361 = sand.u32 %s227, 1
        %s362 = scalar_lea.sflag [#allocation4], %s361
        %s363 = sand.u32 %s227, 1
        %s364 = scalar_lea.vmem [#allocation8], %s363
        %p365 = scmp.lt.s32.totalorder %s25, 1
        %s366 = scalar_select %p365, %s25, 1
        %s367 = smul.addr %s366, 8
        %s368 = scalar_lea.vmem %s0, %s367
        %v369 = vld [vmem:[%s368] sm:$0xff]
        %v370 = vld [vmem:[%s1] sm:$0xff]
        %372 = vset.pattern.permute.xlu0 0
        %373 = vperm.xlu0 %372, %v370
        %v374 = vpop.permute.xlu0 %373
        %v377 = vlaneseq
        %v378 = vshrl.u32 %v377, 7
        %v379 = vsub.s32 0, %v378
        %v380 = vrot.slane %v369, %v379
        %v381 = vlaneseq
        %v382 = vshrl.u32 %v381, 7
        %v383 = vsub.s32 1, %v382
        %v384 = vrot.slane %v369, %v383
        %v385 = vlaneseq
        %v386 = vshrl.u32 %v385, 7
        %v387 = vsub.s32 2, %v386
        %v388 = vrot.slane %v369, %v387
        %v389 = vlaneseq
        %v390 = vshrl.u32 %v389, 7
        %v391 = vsub.s32 3, %v390
        %v392 = vrot.slane %v369, %v391
        %v393 = vlaneseq
        %v394 = vshrl.u32 %v393, 7
        %v395 = vsub.s32 4, %v394
        %v396 = vrot.slane %v369, %v395
        %v397 = vlaneseq
        %v398 = vshrl.u32 %v397, 7
        %v399 = vsub.s32 5, %v398
        %v400 = vrot.slane %v369, %v399
        %v401 = vlaneseq
        %v402 = vshrl.u32 %v401, 7
        %v403 = vsub.s32 6, %v402
        %v404 = vrot.slane %v369, %v403
        %v412 = vmul.f32 %v374, %v380
        %v413 = vmul.f32 %v374, %v384
        %v414 = vmul.f32 %v374, %v388
        %v415 = vmul.f32 %v374, %v392
        %v416 = vmul.f32 %v374, %v396
        %v417 = vmul.f32 %v374, %v400
        %v418 = vmul.f32 %v374, %v404
        %v419 = vadd.f32 %v412, 0.0
        %v420 = vadd.f32 %v413, 0.0
        %v421 = vadd.f32 %v414, 0.0
        %v422 = vadd.f32 %v415, 0.0
        %v423 = vadd.f32 %v416, 0.0
        %v424 = vadd.f32 %v417, 0.0
        %v425 = vadd.f32 %v418, 0.0
        %s426 = scalar_lea.vmem %s1, 8
        %v427 = vld [vmem:[%s426] sm:$0xff]
        %429 = vset.pattern.permute.xlu0 0
        %430 = vperm.xlu0 %429, %v427
        %v431 = vpop.permute.xlu0 %430
        %v433 = vmul.f32 %v431, %v380
        %v434 = vmul.f32 %v431, %v384
        %v435 = vmul.f32 %v431, %v388
        %v436 = vmul.f32 %v431, %v392
        %v437 = vmul.f32 %v431, %v396
        %v438 = vmul.f32 %v431, %v400
        %v439 = vmul.f32 %v431, %v404
        %447 = vrot.lane.b32.xlu0 %v433, 127
        %v448 = vpop.permute.xlu0 %447
        %449 = vrot.lane.b32.xlu0 %v434, 127
        %v450 = vpop.permute.xlu0 %449
        %451 = vrot.lane.b32.xlu0 %v435, 127
        %v452 = vpop.permute.xlu0 %451
        %453 = vrot.lane.b32.xlu0 %v436, 127
        %v454 = vpop.permute.xlu0 %453
        %455 = vrot.lane.b32.xlu0 %v437, 127
        %v456 = vpop.permute.xlu0 %455
        %457 = vrot.lane.b32.xlu0 %v438, 127
        %v458 = vpop.permute.xlu0 %457
        %459 = vrot.lane.b32.xlu0 %v439, 127
        %v460 = vpop.permute.xlu0 %459
        %vm461 = vcmask 1039360
        %v462 = vsel %vm461, %v448, %v450
        %v463 = vsel %vm461, %v450, %v452
        %v464 = vsel %vm461, %v452, %v454
        %v465 = vsel %vm461, %v454, %v456
        %v466 = vsel %vm461, %v456, %v458
        %v467 = vsel %vm461, %v458, %v460
        %v475 = vadd.f32 %v419, %v462
        %v476 = vadd.f32 %v420, %v463
        %v477 = vadd.f32 %v421, %v464
        %v478 = vadd.f32 %v422, %v465
        %v479 = vadd.f32 %v423, %v466
        %v480 = vadd.f32 %v424, %v467
        %v481 = vadd.f32 %v425, %v460
        %s482 = scalar_lea.vmem %s1, 16
        %v483 = vld [vmem:[%s482] sm:$0xff]
        %485 = vset.pattern.permute.xlu0 0
        %486 = vperm.xlu0 %485, %v483
        %v487 = vpop.permute.xlu0 %486
        %v489 = vmul.f32 %v487, %v380
        %v490 = vmul.f32 %v487, %v384
        %v491 = vmul.f32 %v487, %v388
        %v492 = vmul.f32 %v487, %v392
        %v493 = vmul.f32 %v487, %v396
        %v494 = vmul.f32 %v487, %v400
        %v495 = vmul.f32 %v487, %v404
        %503 = vrot.lane.b32.xlu0 %v489, 126
        %v504 = vpop.permute.xlu0 %503
        %505 = vrot.lane.b32.xlu0 %v490, 126
        %v506 = vpop.permute.xlu0 %505
        %507 = vrot.lane.b32.xlu0 %v491, 126
        %v508 = vpop.permute.xlu0 %507
        %509 = vrot.lane.b32.xlu0 %v492, 126
        %v510 = vpop.permute.xlu0 %509
        %511 = vrot.lane.b32.xlu0 %v493, 126
        %v512 = vpop.permute.xlu0 %511
        %513 = vrot.lane.b32.xlu0 %v494, 126
        %v514 = vpop.permute.xlu0 %513
        %515 = vrot.lane.b32.xlu0 %v495, 126
        %v516 = vpop.permute.xlu0 %515
        %vm517 = vcmask 1031168
        %v518 = vsel %vm517, %v504, %v506
        %v519 = vsel %vm517, %v506, %v508
        %v520 = vsel %vm517, %v508, %v510
        %v521 = vsel %vm517, %v510, %v512
        %v522 = vsel %vm517, %v512, %v514
        %v523 = vsel %vm517, %v514, %v516
        %v531 = vadd.f32 %v475, %v518
        %v532 = vadd.f32 %v476, %v519
        %v533 = vadd.f32 %v477, %v520
        %v534 = vadd.f32 %v478, %v521
        %v535 = vadd.f32 %v479, %v522
        %v536 = vadd.f32 %v480, %v523
        %v537 = vadd.f32 %v481, %v516
        %s538 = scalar_lea.vmem %s1, 24
        %v539 = vld [vmem:[%s538] sm:$0xff]
        %541 = vset.pattern.permute.xlu0 0
        %542 = vperm.xlu0 %541, %v539
        %v543 = vpop.permute.xlu0 %542
        %v545 = vmul.f32 %v543, %v380
        %v546 = vmul.f32 %v543, %v384
        %v547 = vmul.f32 %v543, %v388
        %v548 = vmul.f32 %v543, %v392
        %v549 = vmul.f32 %v543, %v396
        %v550 = vmul.f32 %v543, %v400
        %v551 = vmul.f32 %v543, %v404
        %559 = vrot.lane.b32.xlu0 %v545, 98
        %v560 = vpop.permute.xlu0 %559
        %561 = vrot.lane.b32.xlu0 %v546, 98
        %v562 = vpop.permute.xlu0 %561
        %563 = vrot.lane.b32.xlu0 %v547, 98
        %v564 = vpop.permute.xlu0 %563
        %565 = vrot.lane.b32.xlu0 %v548, 98
        %v566 = vpop.permute.xlu0 %565
        %567 = vrot.lane.b32.xlu0 %v549, 98
        %v568 = vpop.permute.xlu0 %567
        %569 = vrot.lane.b32.xlu0 %v550, 98
        %v570 = vpop.permute.xlu0 %569
        %571 = vrot.lane.b32.xlu0 %v551, 98
        %v572 = vpop.permute.xlu0 %571
        %vm573 = vcmask 801792
        %v574 = vsel %vm573, %v560, %v562
        %v575 = vsel %vm573, %v562, %v564
        %v576 = vsel %vm573, %v564, %v566
        %v577 = vsel %vm573, %v566, %v568
        %v578 = vsel %vm573, %v568, %v570
        %v579 = vsel %vm573, %v570, %v572
        %v587 = vadd.f32 %v531, %v574
        %v588 = vadd.f32 %v532, %v575
        %v589 = vadd.f32 %v533, %v576
        %v590 = vadd.f32 %v534, %v577
        %v591 = vadd.f32 %v535, %v578
        %v592 = vadd.f32 %v536, %v579
        %v593 = vadd.f32 %v537, %v572
        %s594 = scalar_lea.vmem %s1, 32
        %v595 = vld [vmem:[%s594] sm:$0xff]
        %597 = vset.pattern.permute.xlu0 0
        %598 = vperm.xlu0 %597, %v595
        %v599 = vpop.permute.xlu0 %598
        %v601 = vmul.f32 %v599, %v380
        %v602 = vmul.f32 %v599, %v384
        %v603 = vmul.f32 %v599, %v388
        %v604 = vmul.f32 %v599, %v392
        %v605 = vmul.f32 %v599, %v396
        %v606 = vmul.f32 %v599, %v400
        %v607 = vmul.f32 %v599, %v404
        %615 = vrot.lane.b32.xlu0 %v601, 97
        %v616 = vpop.permute.xlu0 %615
        %617 = vrot.lane.b32.xlu0 %v602, 97
        %v618 = vpop.permute.xlu0 %617
        %619 = vrot.lane.b32.xlu0 %v603, 97
        %v620 = vpop.permute.xlu0 %619
        %621 = vrot.lane.b32.xlu0 %v604, 97
        %v622 = vpop.permute.xlu0 %621
        %623 = vrot.lane.b32.xlu0 %v605, 97
        %v624 = vpop.permute.xlu0 %623
        %625 = vrot.lane.b32.xlu0 %v606, 97
        %v626 = vpop.permute.xlu0 %625
        %627 = vrot.lane.b32.xlu0 %v607, 97
        %v628 = vpop.permute.xlu0 %627
        %vm629 = vcmask 793600
        %v630 = vsel %vm629, %v616, %v618
        %v631 = vsel %vm629, %v618, %v620
        %v632 = vsel %vm629, %v620, %v622
        %v633 = vsel %vm629, %v622, %v624
        %v634 = vsel %vm629, %v624, %v626
        %v635 = vsel %vm629, %v626, %v628
        %v643 = vadd.f32 %v587, %v630
        %v644 = vadd.f32 %v588, %v631
        %v645 = vadd.f32 %v589, %v632
        %v646 = vadd.f32 %v590, %v633
        %v647 = vadd.f32 %v591, %v634
        %v648 = vadd.f32 %v592, %v635
        %v649 = vadd.f32 %v593, %v628
        %s650 = scalar_lea.vmem %s1, 40
        %v651 = vld [vmem:[%s650] sm:$0xff]
        %653 = vset.pattern.permute.xlu0 0
        %654 = vperm.xlu0 %653, %v651
        %v655 = vpop.permute.xlu0 %654
        %v657 = vmul.f32 %v655, %v380
        %v658 = vmul.f32 %v655, %v384
        %v659 = vmul.f32 %v655, %v388
        %v660 = vmul.f32 %v655, %v392
        %v661 = vmul.f32 %v655, %v396
        %v662 = vmul.f32 %v655, %v400
        %v663 = vmul.f32 %v655, %v404
        %671 = vrot.lane.b32.xlu0 %v657, 96
        %v672 = vpop.permute.xlu0 %671
        %673 = vrot.lane.b32.xlu0 %v658, 96
        %v674 = vpop.permute.xlu0 %673
        %675 = vrot.lane.b32.xlu0 %v659, 96
        %v676 = vpop.permute.xlu0 %675
        %677 = vrot.lane.b32.xlu0 %v660, 96
        %v678 = vpop.permute.xlu0 %677
        %679 = vrot.lane.b32.xlu0 %v661, 96
        %v680 = vpop.permute.xlu0 %679
        %681 = vrot.lane.b32.xlu0 %v662, 96
        %v682 = vpop.permute.xlu0 %681
        %683 = vrot.lane.b32.xlu0 %v663, 96
        %v684 = vpop.permute.xlu0 %683
        %vm685 = vcmask 785408
        %v686 = vsel %vm685, %v672, %v674
        %v687 = vsel %vm685, %v674, %v676
        %v688 = vsel %vm685, %v676, %v678
        %v689 = vsel %vm685, %v678, %v680
        %v690 = vsel %vm685, %v680, %v682
        %v691 = vsel %vm685, %v682, %v684
        %v699 = vadd.f32 %v643, %v686
        %v700 = vadd.f32 %v644, %v687
        %v701 = vadd.f32 %v645, %v688
        %v702 = vadd.f32 %v646, %v689
        %v703 = vadd.f32 %v647, %v690
        %v704 = vadd.f32 %v648, %v691
        %v705 = vadd.f32 %v649, %v684
        %s706 = scalar_lea.vmem %s1, 48
        %v707 = vld [vmem:[%s706] sm:$0xff]
        %709 = vset.pattern.permute.xlu0 0
        %710 = vperm.xlu0 %709, %v707
        %v711 = vpop.permute.xlu0 %710
        %v713 = vlaneseq
        %v714 = vshrl.u32 %v713, 7
        %v715 = vsub.s32 7, %v714
        %v716 = vrot.slane %v369, %v715
        %v718 = vmul.f32 %v711, %v380
        %v719 = vmul.f32 %v711, %v384
        %v720 = vmul.f32 %v711, %v388
        %v721 = vmul.f32 %v711, %v392
        %v722 = vmul.f32 %v711, %v396
        %v723 = vmul.f32 %v711, %v400
        %v724 = vmul.f32 %v711, %v404
        %v725 = vmul.f32 %v711, %v716
        %734 = vrot.lane.b32.xlu0 %v718, 68
        %v735 = vpop.permute.xlu0 %734
        %736 = vrot.lane.b32.xlu0 %v719, 68
        %v737 = vpop.permute.xlu0 %736
        %738 = vrot.lane.b32.xlu0 %v720, 68
        %v739 = vpop.permute.xlu0 %738
        %740 = vrot.lane.b32.xlu0 %v721, 68
        %v741 = vpop.permute.xlu0 %740
        %742 = vrot.lane.b32.xlu0 %v722, 68
        %v743 = vpop.permute.xlu0 %742
        %744 = vrot.lane.b32.xlu0 %v723, 68
        %v745 = vpop.permute.xlu0 %744
        %746 = vrot.lane.b32.xlu0 %v724, 68
        %v747 = vpop.permute.xlu0 %746
        %748 = vrot.lane.b32.xlu0 %v725, 68
        %v749 = vpop.permute.xlu0 %748
        %vm750 = vcmask 556032
        %v751 = vsel %vm750, %v735, %v737
        %v752 = vsel %vm750, %v737, %v739
        %v753 = vsel %vm750, %v739, %v741
        %v754 = vsel %vm750, %v741, %v743
        %v755 = vsel %vm750, %v743, %v745
        %v756 = vsel %vm750, %v745, %v747
        %v757 = vsel %vm750, %v747, %v749
        %v765 = vadd.f32 %v699, %v751
        %v766 = vadd.f32 %v700, %v752
        %v767 = vadd.f32 %v701, %v753
        %v768 = vadd.f32 %v702, %v754
        %v769 = vadd.f32 %v703, %v755
        %v770 = vadd.f32 %v704, %v756
        %v771 = vadd.f32 %v705, %v757
        %s772 = scalar_lea.vmem %s1, 56
        %v773 = vld [vmem:[%s772] sm:$0xff]
        %775 = vset.pattern.permute.xlu0 0
        %776 = vperm.xlu0 %775, %v773
        %v777 = vpop.permute.xlu0 %776
        %v779 = vmul.f32 %v777, %v380
        %v780 = vmul.f32 %v777, %v384
        %v781 = vmul.f32 %v777, %v388
        %v782 = vmul.f32 %v777, %v392
        %v783 = vmul.f32 %v777, %v396
        %v784 = vmul.f32 %v777, %v400
        %v785 = vmul.f32 %v777, %v404
        %v786 = vmul.f32 %v777, %v716
        %795 = vrot.lane.b32.xlu0 %v779, 67
        %v796 = vpop.permute.xlu0 %795
        %797 = vrot.lane.b32.xlu0 %v780, 67
        %v798 = vpop.permute.xlu0 %797
        %799 = vrot.lane.b32.xlu0 %v781, 67
        %v800 = vpop.permute.xlu0 %799
        %801 = vrot.lane.b32.xlu0 %v782, 67
        %v802 = vpop.permute.xlu0 %801
        %803 = vrot.lane.b32.xlu0 %v783, 67
        %v804 = vpop.permute.xlu0 %803
        %805 = vrot.lane.b32.xlu0 %v784, 67
        %v806 = vpop.permute.xlu0 %805
        %807 = vrot.lane.b32.xlu0 %v785, 67
        %v808 = vpop.permute.xlu0 %807
        %809 = vrot.lane.b32.xlu0 %v786, 67
        %v810 = vpop.permute.xlu0 %809
        %vm811 = vcmask 547840
        %v812 = vsel %vm811, %v796, %v798
        %v813 = vsel %vm811, %v798, %v800
        %v814 = vsel %vm811, %v800, %v802
        %v815 = vsel %vm811, %v802, %v804
        %v816 = vsel %vm811, %v804, %v806
        %v817 = vsel %vm811, %v806, %v808
        %v818 = vsel %vm811, %v808, %v810
        %v826 = vadd.f32 %v765, %v812
        %v827 = vadd.f32 %v766, %v813
        %v828 = vadd.f32 %v767, %v814
        %v829 = vadd.f32 %v768, %v815
        %v830 = vadd.f32 %v769, %v816
        %v831 = vadd.f32 %v770, %v817
        %v832 = vadd.f32 %v771, %v818
        %s833 = scalar_lea.vmem %s1, 64
        %v834 = vld [vmem:[%s833] sm:$0xff]
        %836 = vset.pattern.permute.xlu0 0
        %837 = vperm.xlu0 %836, %v834
        %v838 = vpop.permute.xlu0 %837
        %v840 = vmul.f32 %v838, %v380
        %v841 = vmul.f32 %v838, %v384
        %v842 = vmul.f32 %v838, %v388
        %v843 = vmul.f32 %v838, %v392
        %v844 = vmul.f32 %v838, %v396
        %v845 = vmul.f32 %v838, %v400
        %v846 = vmul.f32 %v838, %v404
        %v847 = vmul.f32 %v838, %v716
        %856 = vrot.lane.b32.xlu0 %v840, 66
        %v857 = vpop.permute.xlu0 %856
        %858 = vrot.lane.b32.xlu0 %v841, 66
        %v859 = vpop.permute.xlu0 %858
        %860 = vrot.lane.b32.xlu0 %v842, 66
        %v861 = vpop.permute.xlu0 %860
        %862 = vrot.lane.b32.xlu0 %v843, 66
        %v863 = vpop.permute.xlu0 %862
        %864 = vrot.lane.b32.xlu0 %v844, 66
        %v865 = vpop.permute.xlu0 %864
        %866 = vrot.lane.b32.xlu0 %v845, 66
        %v867 = vpop.permute.xlu0 %866
        %868 = vrot.lane.b32.xlu0 %v846, 66
        %v869 = vpop.permute.xlu0 %868
        %870 = vrot.lane.b32.xlu0 %v847, 66
        %v871 = vpop.permute.xlu0 %870
        %vm872 = vcmask 539648
        %v873 = vsel %vm872, %v857, %v859
        %v874 = vsel %vm872, %v859, %v861
        %v875 = vsel %vm872, %v861, %v863
        %v876 = vsel %vm872, %v863, %v865
        %v877 = vsel %vm872, %v865, %v867
        %v878 = vsel %vm872, %v867, %v869
        %v879 = vsel %vm872, %v869, %v871
        %v887 = vadd.f32 %v826, %v873
        %v888 = vadd.f32 %v827, %v874
        %v889 = vadd.f32 %v828, %v875
        %v890 = vadd.f32 %v829, %v876
        %v891 = vadd.f32 %v830, %v877
        %v892 = vadd.f32 %v831, %v878
        %v893 = vadd.f32 %v832, %v879
        %v894 = vld [vmem:[%s2] sm:$0xff]
        %896 = vset.pattern.permute.xlu0 0
        %897 = vperm.xlu0 %896, %v894
        %v898 = vpop.permute.xlu0 %897
        %v900 = vadd.f32 %v887, %v898
        %v901 = vadd.f32 %v888, %v898
        %v902 = vadd.f32 %v889, %v898
        %v903 = vadd.f32 %v890, %v898
        %v904 = vadd.f32 %v891, %v898
        %v905 = vadd.f32 %v892, %v898
        %v906 = vadd.f32 %v893, %v898
        %v907 = vmax.f32 %v900, 0.0
        %v908 = vmax.f32 %v901, 0.0
        %v909 = vmax.f32 %v902, 0.0
        %v910 = vmax.f32 %v903, 0.0
        %v911 = vmax.f32 %v904, 0.0
        %v912 = vmax.f32 %v905, 0.0
        %v913 = vmax.f32 %v906, 0.0
        %v914 = vmul.f32 %v907, -0.5
        %v915 = vmul.f32 %v908, -0.5
        %v916 = vmul.f32 %v909, -0.5
        %v917 = vmul.f32 %v910, -0.5
        %v918 = vmul.f32 %v911, -0.5
        %v919 = vmul.f32 %v912, -0.5
        %v920 = vmul.f32 %v913, -0.5
        %v921 = vmul.f32 %v914, %v907
        %v922 = vmul.f32 %v915, %v908
        %v923 = vmul.f32 %v916, %v909
        %v924 = vmul.f32 %v917, %v910
        %v925 = vmul.f32 %v918, %v911
        %v926 = vmul.f32 %v919, %v912
        %v927 = vmul.f32 %v920, %v913
        %v928 = vmul.f32 %v921, 1.442695
        %v929 = vpow.pop %v928
        %v930 = vmul.f32 %v922, 1.442695
        %v931 = vpow.pop %v930
        %v932 = vmul.f32 %v923, 1.442695
        %v933 = vpow.pop %v932
        %v934 = vmul.f32 %v924, 1.442695
        %v935 = vpow.pop %v934
        %v936 = vmul.f32 %v925, 1.442695
        %v937 = vpow.pop %v936
        %v938 = vmul.f32 %v926, 1.442695
        %v939 = vpow.pop %v938
        %v940 = vmul.f32 %v927, 1.442695
        %v941 = vpow.pop %v940
        %v942 = vmul.f32 %v929, %v907
        %v943 = vmul.f32 %v931, %v908
        %v944 = vmul.f32 %v933, %v909
        %v945 = vmul.f32 %v935, %v910
        %v946 = vmul.f32 %v937, %v911
        %v947 = vmul.f32 %v939, %v912
        %v948 = vmul.f32 %v941, %v913
        %v949 = vld [vmem:[#allocation2] sm:$0xff]
        %v950 = vld [vmem:[#allocation2 + $0x8] sm:$0xff]
        %v951 = vld [vmem:[#allocation2 + $0x10] sm:$0xff]
        %v952 = vld [vmem:[#allocation2 + $0x18] sm:$0xff]
        %v953 = vld [vmem:[#allocation2 + $0x20] sm:$0xff]
        %v954 = vld [vmem:[#allocation2 + $0x28] sm:$0xff]
        %v955 = vld [vmem:[#allocation2 + $0x30] sm:$0xff]
        %v956 = vld [vmem:[#allocation2 + $0x38] sm:$0xff]
        %v957 = vld [vmem:[#allocation2 + $0x40] sm:$0xff]
        %v958 = vld [vmem:[#allocation2 + $0x48] sm:$0xff]
        %v959 = vld [vmem:[#allocation2 + $0x50] sm:$0xff]
        %v960 = vld [vmem:[#allocation2 + $0x58] sm:$0xff]
        %v961 = vld [vmem:[#allocation2 + $0x60] sm:$0xff]
        %v962 = vld [vmem:[#allocation2 + $0x68] sm:$0xff]
        %v963 = vld [vmem:[#allocation2 + $0x70] sm:$0xff]
        %v964 = vld [vmem:[#allocation2 + $0x78] sm:$0xff]
        %v965 = vld [vmem:[#allocation2 + $0x80] sm:$0xff]
        %v966 = vld [vmem:[#allocation2 + $0x88] sm:$0xff]
        %v967 = vld [vmem:[#allocation2 + $0x90] sm:$0xff]
        %v968 = vld [vmem:[#allocation2 + $0x98] sm:$0xff]
        %v969 = vld [vmem:[#allocation2 + $0xa0] sm:$0xff]
        %v970 = vld [vmem:[#allocation2 + $0xa8] sm:$0xff]
        %v971 = vld [vmem:[#allocation2 + $0xb0] sm:$0xff]
        %v972 = vld [vmem:[#allocation2 + $0xb8] sm:$0xff]
        %v973 = vld [vmem:[#allocation2 + $0xc0] sm:$0xff]
        %v974 = vld [vmem:[#allocation2 + $0xc8] sm:$0xff]
        %v975 = vld [vmem:[#allocation2 + $0xd0] sm:$0xff]
        %v976 = vld [vmem:[#allocation2 + $0xd8] sm:$0xff]
        %v977 = vld [vmem:[#allocation2 + $0xe0] sm:$0xff]
        %v978 = vld [vmem:[#allocation2 + $0xe8] sm:$0xff]
        %v979 = vld [vmem:[#allocation2 + $0xf0] sm:$0xff]
        %v980 = vld [vmem:[#allocation2 + $0xf8] sm:$0xff]
        %v981 = vld [vmem:[#allocation2 + $0x100] sm:$0xff]
        %v982 = vld [vmem:[#allocation2 + $0x108] sm:$0xff]
        %v983 = vld [vmem:[#allocation2 + $0x110] sm:$0xff]
        %v984 = vld [vmem:[#allocation2 + $0x118] sm:$0xff]
        %v985 = vld [vmem:[#allocation2 + $0x120] sm:$0xff]
        %v986 = vld [vmem:[#allocation2 + $0x128] sm:$0xff]
        %v987 = vld [vmem:[#allocation2 + $0x130] sm:$0xff]
        %v988 = vld [vmem:[#allocation2 + $0x138] sm:$0xff]
        %v989 = vld [vmem:[#allocation2 + $0x140] sm:$0xff]
        %v990 = vld [vmem:[#allocation2 + $0x148] sm:$0xff]
        %v991 = vld [vmem:[#allocation2 + $0x150] sm:$0xff]
        %v992 = vld [vmem:[#allocation2 + $0x158] sm:$0xff]
        %v993 = vld [vmem:[#allocation2 + $0x160] sm:$0xff]
        %v994 = vld [vmem:[#allocation2 + $0x168] sm:$0xff]
        %v995 = vld [vmem:[#allocation2 + $0x170] sm:$0xff]
        %v996 = vld [vmem:[#allocation2 + $0x178] sm:$0xff]
        %v997 = vld [vmem:[#allocation2 + $0x180] sm:$0xff]
        %v998 = vld [vmem:[#allocation2 + $0x188] sm:$0xff]
        %v999 = vld [vmem:[#allocation2 + $0x190] sm:$0xff]
        %v1000 = vld [vmem:[#allocation2 + $0x198] sm:$0xff]
        %v1001 = vld [vmem:[#allocation2 + $0x1a0] sm:$0xff]
        %v1002 = vld [vmem:[#allocation2 + $0x1a8] sm:$0xff]
        %v1003 = vld [vmem:[#allocation2 + $0x1b0] sm:$0xff]
        %v1004 = vld [vmem:[#allocation2 + $0x1b8] sm:$0xff]
        %v1005 = vld [vmem:[#allocation2 + $0x1c0] sm:$0xff]
        %v1006 = vld [vmem:[#allocation2 + $0x1c8] sm:$0xff]
        %v1007 = vld [vmem:[#allocation2 + $0x1d0] sm:$0xff]
        %v1008 = vld [vmem:[#allocation2 + $0x1d8] sm:$0xff]
        %v1009 = vld [vmem:[#allocation2 + $0x1e0] sm:$0xff]
        %v1010 = vld [vmem:[#allocation2 + $0x1e8] sm:$0xff]
        %v1011 = vld [vmem:[#allocation2 + $0x1f0] sm:$0xff]
        %v1012 = vld [vmem:[#allocation2 + $0x1f8] sm:$0xff]
        %v1013 = vld [vmem:[#allocation2 + $0x200] sm:$0xff]
        %v1014 = vld [vmem:[#allocation2 + $0x208] sm:$0xff]
        %v1015 = vld [vmem:[#allocation2 + $0x210] sm:$0xff]
        %v1016 = vld [vmem:[#allocation2 + $0x218] sm:$0xff]
        %v1017 = vld [vmem:[#allocation2 + $0x220] sm:$0xff]
        %v1018 = vld [vmem:[#allocation2 + $0x228] sm:$0xff]
        %v1019 = vld [vmem:[#allocation2 + $0x230] sm:$0xff]
        %v1020 = vld [vmem:[#allocation2 + $0x238] sm:$0xff]
        %v1021 = vld [vmem:[#allocation2 + $0x240] sm:$0xff]
        %v1022 = vld [vmem:[#allocation2 + $0x248] sm:$0xff]
        %v1023 = vld [vmem:[#allocation2 + $0x250] sm:$0xff]
        %v1024 = vld [vmem:[#allocation2 + $0x258] sm:$0xff]
        %v1025 = vld [vmem:[#allocation2 + $0x260] sm:$0xff]
        %v1026 = vld [vmem:[#allocation2 + $0x268] sm:$0xff]
        %v1027 = vld [vmem:[#allocation2 + $0x270] sm:$0xff]
        %v1028 = vld [vmem:[#allocation2 + $0x278] sm:$0xff]
        %v1029 = vld [vmem:[#allocation2 + $0x280] sm:$0xff]
        %v1030 = vld [vmem:[#allocation2 + $0x288] sm:$0xff]
        %v1031 = vld [vmem:[#allocation2 + $0x290] sm:$0xff]
        %v1032 = vld [vmem:[#allocation2 + $0x298] sm:$0xff]
        %v1033 = vld [vmem:[#allocation2 + $0x2a0] sm:$0xff]
        %v1034 = vld [vmem:[#allocation2 + $0x2a8] sm:$0xff]
        %v1035 = vld [vmem:[#allocation2 + $0x2b0] sm:$0xff]
        %v1036 = vld [vmem:[#allocation2 + $0x2b8] sm:$0xff]
        %v1037 = vld [vmem:[#allocation2 + $0x2c0] sm:$0xff]
        %v1038 = vld [vmem:[#allocation2 + $0x2c8] sm:$0xff]
        %v1039 = vld [vmem:[#allocation2 + $0x2d0] sm:$0xff]
        %v1040 = vld [vmem:[#allocation2 + $0x2d8] sm:$0xff]
        %v1041 = vld [vmem:[#allocation2 + $0x2e0] sm:$0xff]
        %v1042 = vld [vmem:[#allocation2 + $0x2e8] sm:$0xff]
        %v1043 = vld [vmem:[#allocation2 + $0x2f0] sm:$0xff]
        %v1044 = vld [vmem:[#allocation2 + $0x2f8] sm:$0xff]
        %v1045 = vld [vmem:[#allocation2 + $0x300] sm:$0xff]
        %v1046 = vld [vmem:[#allocation2 + $0x308] sm:$0xff]
        %v1047 = vld [vmem:[#allocation2 + $0x310] sm:$0xff]
        %v1048 = vld [vmem:[#allocation2 + $0x318] sm:$0xff]
        %v1049 = vld [vmem:[#allocation2 + $0x320] sm:$0xff]
        %v1050 = vld [vmem:[#allocation2 + $0x328] sm:$0xff]
        %v1051 = vld [vmem:[#allocation2 + $0x330] sm:$0xff]
        %v1052 = vld [vmem:[#allocation2 + $0x338] sm:$0xff]
        %v1053 = vld [vmem:[#allocation2 + $0x340] sm:$0xff]
        %v1054 = vld [vmem:[#allocation2 + $0x348] sm:$0xff]
        %v1055 = vld [vmem:[#allocation2 + $0x350] sm:$0xff]
        %v1056 = vld [vmem:[#allocation2 + $0x358] sm:$0xff]
        %v1057 = vld [vmem:[#allocation2 + $0x360] sm:$0xff]
        %v1058 = vld [vmem:[#allocation2 + $0x368] sm:$0xff]
        %v1059 = vld [vmem:[#allocation2 + $0x370] sm:$0xff]
        %v1060 = vld [vmem:[#allocation2 + $0x378] sm:$0xff]
        %v1061 = vld [vmem:[#allocation2 + $0x380] sm:$0xff]
        %v1062 = vld [vmem:[#allocation2 + $0x388] sm:$0xff]
        %v1063 = vld [vmem:[#allocation2 + $0x390] sm:$0xff]
        %v1064 = vld [vmem:[#allocation2 + $0x398] sm:$0xff]
        %v1065 = vld [vmem:[#allocation2 + $0x3a0] sm:$0xff]
        %v1066 = vld [vmem:[#allocation2 + $0x3a8] sm:$0xff]
        %v1067 = vld [vmem:[#allocation2 + $0x3b0] sm:$0xff]
        %v1068 = vld [vmem:[#allocation2 + $0x3b8] sm:$0xff]
        %v1069 = vld [vmem:[#allocation2 + $0x3c0] sm:$0xff]
        %v1070 = vld [vmem:[#allocation2 + $0x3c8] sm:$0xff]
        %v1071 = vld [vmem:[#allocation2 + $0x3d0] sm:$0xff]
        %v1072 = vld [vmem:[#allocation2 + $0x3d8] sm:$0xff]
        %v1073 = vld [vmem:[#allocation2 + $0x3e0] sm:$0xff]
        %v1074 = vld [vmem:[#allocation2 + $0x3e8] sm:$0xff]
        %v1075 = vld [vmem:[#allocation2 + $0x3f0] sm:$0xff]
        %v1076 = vld [vmem:[#allocation2 + $0x3f8] sm:$0xff]
        %v1077 = vld [vmem:[#allocation2 + $0x400] sm:$0xff]
        %v1078 = vld [vmem:[#allocation2 + $0x408] sm:$0xff]
        %v1079 = vld [vmem:[#allocation2 + $0x410] sm:$0xff]
        %v1080 = vld [vmem:[#allocation2 + $0x418] sm:$0xff]
        %v1081 = vld [vmem:[#allocation2 + $0x420] sm:$0xff]
        %v1082 = vld [vmem:[#allocation2 + $0x428] sm:$0xff]
        %v1083 = vld [vmem:[#allocation2 + $0x430] sm:$0xff]
        %v1084 = vld [vmem:[#allocation2 + $0x438] sm:$0xff]
        %v1085 = vld [vmem:[#allocation2 + $0x440] sm:$0xff]
        %v1086 = vld [vmem:[#allocation2 + $0x448] sm:$0xff]
        %v1087 = vld [vmem:[#allocation2 + $0x450] sm:$0xff]
        %v1088 = vld [vmem:[#allocation2 + $0x458] sm:$0xff]
        %v1089 = vld [vmem:[#allocation2 + $0x460] sm:$0xff]
        %v1090 = vld [vmem:[#allocation2 + $0x468] sm:$0xff]
        %v1091 = vld [vmem:[#allocation2 + $0x470] sm:$0xff]
        %v1092 = vld [vmem:[#allocation2 + $0x478] sm:$0xff]
        %v1093 = vld [vmem:[#allocation2 + $0x480] sm:$0xff]
        %v1094 = vld [vmem:[#allocation2 + $0x488] sm:$0xff]
        %v1095 = vld [vmem:[#allocation2 + $0x490] sm:$0xff]
        %v1096 = vld [vmem:[#allocation2 + $0x498] sm:$0xff]
        %v1097 = vld [vmem:[#allocation2 + $0x4a0] sm:$0xff]
        %v1098 = vld [vmem:[#allocation2 + $0x4a8] sm:$0xff]
        %v1099 = vld [vmem:[#allocation2 + $0x4b0] sm:$0xff]
        %v1100 = vld [vmem:[#allocation2 + $0x4b8] sm:$0xff]
        %v1101 = vld [vmem:[#allocation2 + $0x4c0] sm:$0xff]
        %v1102 = vld [vmem:[#allocation2 + $0x4c8] sm:$0xff]
        %v1103 = vld [vmem:[#allocation2 + $0x4d0] sm:$0xff]
        %v1104 = vld [vmem:[#allocation2 + $0x4d8] sm:$0xff]
        %v1105 = vld [vmem:[#allocation2 + $0x4e0] sm:$0xff]
        %v1106 = vld [vmem:[#allocation2 + $0x4e8] sm:$0xff]
        %v1107 = vld [vmem:[#allocation2 + $0x4f0] sm:$0xff]
        %v1108 = vld [vmem:[#allocation2 + $0x4f8] sm:$0xff]
        %v1109 = vld [vmem:[#allocation2 + $0x500] sm:$0xff]
        %v1110 = vld [vmem:[#allocation2 + $0x508] sm:$0xff]
        %v1111 = vld [vmem:[#allocation2 + $0x510] sm:$0xff]
        %v1112 = vld [vmem:[#allocation2 + $0x518] sm:$0xff]
        %v1113 = vld [vmem:[#allocation2 + $0x520] sm:$0xff]
        %v1114 = vld [vmem:[#allocation2 + $0x528] sm:$0xff]
        %v1115 = vld [vmem:[#allocation2 + $0x530] sm:$0xff]
        %v1116 = vld [vmem:[#allocation2 + $0x538] sm:$0xff]
        %v1117 = vld [vmem:[#allocation2 + $0x540] sm:$0xff]
        %v1118 = vld [vmem:[#allocation2 + $0x548] sm:$0xff]
        %v1119 = vld [vmem:[#allocation2 + $0x550] sm:$0xff]
        %v1120 = vld [vmem:[#allocation2 + $0x558] sm:$0xff]
        %v1121 = vld [vmem:[#allocation2 + $0x560] sm:$0xff]
        %v1122 = vld [vmem:[#allocation2 + $0x568] sm:$0xff]
        %v1123 = vld [vmem:[#allocation2 + $0x570] sm:$0xff]
        %v1124 = vld [vmem:[#allocation2 + $0x578] sm:$0xff]
        %v1125 = vld [vmem:[#allocation2 + $0x580] sm:$0xff]
        %v1126 = vld [vmem:[#allocation2 + $0x588] sm:$0xff]
        %v1127 = vld [vmem:[#allocation2 + $0x590] sm:$0xff]
        %v1128 = vld [vmem:[#allocation2 + $0x598] sm:$0xff]
        %v1129 = vld [vmem:[#allocation2 + $0x5a0] sm:$0xff]
        %v1130 = vld [vmem:[#allocation2 + $0x5a8] sm:$0xff]
        %v1131 = vld [vmem:[#allocation2 + $0x5b0] sm:$0xff]
        %v1132 = vld [vmem:[#allocation2 + $0x5b8] sm:$0xff]
        %v1133 = vld [vmem:[#allocation2 + $0x5c0] sm:$0xff]
        %v1134 = vld [vmem:[#allocation2 + $0x5c8] sm:$0xff]
        %v1135 = vld [vmem:[#allocation2 + $0x5d0] sm:$0xff]
        %v1136 = vld [vmem:[#allocation2 + $0x5d8] sm:$0xff]
        %v1137 = vld [vmem:[#allocation2 + $0x5e0] sm:$0xff]
        %v1138 = vld [vmem:[#allocation2 + $0x5e8] sm:$0xff]
        %v1139 = vld [vmem:[#allocation2 + $0x5f0] sm:$0xff]
        %v1140 = vld [vmem:[#allocation2 + $0x5f8] sm:$0xff]
        %v1141 = vld [vmem:[#allocation2 + $0x600] sm:$0xff]
        %v1142 = vld [vmem:[#allocation2 + $0x608] sm:$0xff]
        %v1143 = vld [vmem:[#allocation2 + $0x610] sm:$0xff]
        %v1144 = vld [vmem:[#allocation2 + $0x618] sm:$0xff]
        %v1145 = vld [vmem:[#allocation2 + $0x620] sm:$0xff]
        %v1146 = vld [vmem:[#allocation2 + $0x628] sm:$0xff]
        %v1147 = vld [vmem:[#allocation2 + $0x630] sm:$0xff]
        %v1148 = vld [vmem:[#allocation2 + $0x638] sm:$0xff]
        %v1149 = vld [vmem:[#allocation2 + $0x640] sm:$0xff]
        %v1150 = vld [vmem:[#allocation2 + $0x648] sm:$0xff]
        %v1151 = vld [vmem:[#allocation2 + $0x650] sm:$0xff]
        %v1152 = vld [vmem:[#allocation2 + $0x658] sm:$0xff]
        %v1153 = vld [vmem:[#allocation2 + $0x660] sm:$0xff]
        %v1154 = vld [vmem:[#allocation2 + $0x668] sm:$0xff]
        %v1155 = vld [vmem:[#allocation2 + $0x670] sm:$0xff]
        %v1156 = vld [vmem:[#allocation2 + $0x678] sm:$0xff]
        %v1157 = vld [vmem:[#allocation2 + $0x680] sm:$0xff]
        %v1158 = vld [vmem:[#allocation2 + $0x688] sm:$0xff]
        %v1159 = vld [vmem:[#allocation2 + $0x690] sm:$0xff]
        %v1160 = vld [vmem:[#allocation2 + $0x698] sm:$0xff]
        %v1161 = vld [vmem:[#allocation2 + $0x6a0] sm:$0xff]
        %v1162 = vld [vmem:[#allocation2 + $0x6a8] sm:$0xff]
        %v1163 = vld [vmem:[#allocation2 + $0x6b0] sm:$0xff]
        %v1164 = vld [vmem:[#allocation2 + $0x6b8] sm:$0xff]
        %v1165 = vld [vmem:[#allocation2 + $0x6c0] sm:$0xff]
        %v1166 = vld [vmem:[#allocation2 + $0x6c8] sm:$0xff]
        %v1167 = vld [vmem:[#allocation2 + $0x6d0] sm:$0xff]
        %v1168 = vld [vmem:[#allocation2 + $0x6d8] sm:$0xff]
        %v1169 = vld [vmem:[#allocation2 + $0x6e0] sm:$0xff]
        %v1170 = vld [vmem:[#allocation2 + $0x6e8] sm:$0xff]
        %v1171 = vld [vmem:[#allocation2 + $0x6f0] sm:$0xff]
        %v1172 = vld [vmem:[#allocation2 + $0x6f8] sm:$0xff]
        %v1173 = vld [vmem:[#allocation2 + $0x700] sm:$0xff]
        %v1174 = vld [vmem:[#allocation2 + $0x708] sm:$0xff]
        %v1175 = vld [vmem:[#allocation2 + $0x710] sm:$0xff]
        %v1176 = vld [vmem:[#allocation2 + $0x718] sm:$0xff]
        %v1177 = vld [vmem:[#allocation2 + $0x720] sm:$0xff]
        %v1178 = vld [vmem:[#allocation2 + $0x728] sm:$0xff]
        %v1179 = vld [vmem:[#allocation2 + $0x730] sm:$0xff]
        %v1180 = vld [vmem:[#allocation2 + $0x738] sm:$0xff]
        %v1181 = vld [vmem:[#allocation2 + $0x740] sm:$0xff]
        %v1182 = vld [vmem:[#allocation2 + $0x748] sm:$0xff]
        %v1183 = vld [vmem:[#allocation2 + $0x750] sm:$0xff]
        %v1184 = vld [vmem:[#allocation2 + $0x758] sm:$0xff]
        %v1185 = vld [vmem:[#allocation2 + $0x760] sm:$0xff]
        %v1186 = vld [vmem:[#allocation2 + $0x768] sm:$0xff]
        %v1187 = vld [vmem:[#allocation2 + $0x770] sm:$0xff]
        %v1188 = vld [vmem:[#allocation2 + $0x778] sm:$0xff]
        %v1189 = vld [vmem:[#allocation2 + $0x780] sm:$0xff]
        %v1190 = vld [vmem:[#allocation2 + $0x788] sm:$0xff]
        %v1191 = vld [vmem:[#allocation2 + $0x790] sm:$0xff]
        %v1192 = vld [vmem:[#allocation2 + $0x798] sm:$0xff]
        %v1193 = vld [vmem:[#allocation2 + $0x7a0] sm:$0xff]
        %v1194 = vld [vmem:[#allocation2 + $0x7a8] sm:$0xff]
        %v1195 = vld [vmem:[#allocation2 + $0x7b0] sm:$0xff]
        %v1196 = vld [vmem:[#allocation2 + $0x7b8] sm:$0xff]
        %v1197 = vld [vmem:[#allocation2 + $0x7c0] sm:$0xff]
        %v1198 = vld [vmem:[#allocation2 + $0x7c8] sm:$0xff]
        %v1199 = vld [vmem:[#allocation2 + $0x7d0] sm:$0xff]
        %v1200 = vld [vmem:[#allocation2 + $0x7d8] sm:$0xff]
        %v1201 = vld [vmem:[#allocation2 + $0x7e0] sm:$0xff]
        %v1202 = vld [vmem:[#allocation2 + $0x7e8] sm:$0xff]
        %v1203 = vld [vmem:[#allocation2 + $0x7f0] sm:$0xff]
        %v1204 = vld [vmem:[#allocation2 + $0x7f8] sm:$0xff]
        %v1205 = vld [vmem:[#allocation2 + $0x800] sm:$0xff]
        %v1206 = vld [vmem:[#allocation2 + $0x808] sm:$0xff]
        %v1207 = vld [vmem:[#allocation2 + $0x810] sm:$0xff]
        %v1208 = vld [vmem:[#allocation2 + $0x818] sm:$0xff]
        %v1209 = vld [vmem:[#allocation2 + $0x820] sm:$0xff]
        %v1210 = vld [vmem:[#allocation2 + $0x828] sm:$0xff]
        %v1211 = vld [vmem:[#allocation2 + $0x830] sm:$0xff]
        %v1212 = vld [vmem:[#allocation2 + $0x838] sm:$0xff]
        %v1213 = vld [vmem:[#allocation2 + $0x840] sm:$0xff]
        %v1214 = vld [vmem:[#allocation2 + $0x848] sm:$0xff]
        %v1215 = vld [vmem:[#allocation2 + $0x850] sm:$0xff]
        %v1216 = vld [vmem:[#allocation2 + $0x858] sm:$0xff]
        %v1217 = vld [vmem:[#allocation2 + $0x860] sm:$0xff]
        %v1218 = vld [vmem:[#allocation2 + $0x868] sm:$0xff]
        %v1219 = vld [vmem:[#allocation2 + $0x870] sm:$0xff]
        %v1220 = vld [vmem:[#allocation2 + $0x878] sm:$0xff]
        %v1221 = vld [vmem:[#allocation2 + $0x880] sm:$0xff]
        %v1222 = vld [vmem:[#allocation2 + $0x888] sm:$0xff]
        %v1223 = vld [vmem:[#allocation2 + $0x890] sm:$0xff]
        %v1224 = vld [vmem:[#allocation2 + $0x898] sm:$0xff]
        %v1225 = vld [vmem:[#allocation2 + $0x8a0] sm:$0xff]
        %v1226 = vld [vmem:[#allocation2 + $0x8a8] sm:$0xff]
        %v1227 = vld [vmem:[#allocation2 + $0x8b0] sm:$0xff]
        %v1228 = vld [vmem:[#allocation2 + $0x8b8] sm:$0xff]
        %v1229 = vld [vmem:[#allocation2 + $0x8c0] sm:$0xff]
        %v1230 = vld [vmem:[#allocation2 + $0x8c8] sm:$0xff]
        %v1231 = vld [vmem:[#allocation2 + $0x8d0] sm:$0xff]
        %v1232 = vld [vmem:[#allocation2 + $0x8d8] sm:$0xff]
        %v1233 = vld [vmem:[#allocation2 + $0x8e0] sm:$0xff]
        %v1234 = vld [vmem:[#allocation2 + $0x8e8] sm:$0xff]
        %v1235 = vld [vmem:[#allocation2 + $0x8f0] sm:$0xff]
        %v1236 = vld [vmem:[#allocation2 + $0x8f8] sm:$0xff]
        %v1237 = vld [vmem:[#allocation2 + $0x900] sm:$0xff]
        %v1238 = vld [vmem:[#allocation2 + $0x908] sm:$0xff]
        %v1239 = vld [vmem:[#allocation2 + $0x910] sm:$0xff]
        %v1240 = vld [vmem:[#allocation2 + $0x918] sm:$0xff]
        %v1241 = vld [vmem:[#allocation2 + $0x920] sm:$0xff]
        %v1242 = vld [vmem:[#allocation2 + $0x928] sm:$0xff]
        %v1243 = vld [vmem:[#allocation2 + $0x930] sm:$0xff]
        %v1244 = vld [vmem:[#allocation2 + $0x938] sm:$0xff]
        %v1245 = vld [vmem:[#allocation2 + $0x940] sm:$0xff]
        %v1246 = vld [vmem:[#allocation2 + $0x948] sm:$0xff]
        %v1247 = vld [vmem:[#allocation2 + $0x950] sm:$0xff]
        %v1248 = vld [vmem:[#allocation2 + $0x958] sm:$0xff]
        %v1249 = vld [vmem:[#allocation2 + $0x960] sm:$0xff]
        %v1250 = vld [vmem:[#allocation2 + $0x968] sm:$0xff]
        %v1251 = vld [vmem:[#allocation2 + $0x970] sm:$0xff]
        %v1252 = vld [vmem:[#allocation2 + $0x978] sm:$0xff]
        %v1253 = vld [vmem:[#allocation2 + $0x980] sm:$0xff]
        %v1254 = vld [vmem:[#allocation2 + $0x988] sm:$0xff]
        %v1255 = vld [vmem:[#allocation2 + $0x990] sm:$0xff]
        %v1256 = vld [vmem:[#allocation2 + $0x998] sm:$0xff]
        %v1257 = vld [vmem:[#allocation2 + $0x9a0] sm:$0xff]
        %v1258 = vld [vmem:[#allocation2 + $0x9a8] sm:$0xff]
        %v1259 = vld [vmem:[#allocation2 + $0x9b0] sm:$0xff]
        %v1260 = vld [vmem:[#allocation2 + $0x9b8] sm:$0xff]
        %v1261 = vld [vmem:[#allocation2 + $0x9c0] sm:$0xff]
        %v1262 = vld [vmem:[#allocation2 + $0x9c8] sm:$0xff]
        %v1263 = vld [vmem:[#allocation2 + $0x9d0] sm:$0xff]
        %vm1264 = vcmask 588800
        %v1266 = vsel %vm1264, %v948, 0
        %1268 = vmatprep.subr.mxu0 %v950
        %1269 = vmatpush1.msra.mxu0 %v949
        %1270 = vmatprep.subr.mxu0 %v953
        %1271 = vmatpush1.msra.mxu0 %v952
        %1272 = vmatprep.subr.mxu0 %v956
        %1273 = vmatpush1.msra.mxu0 %v955
        %1274 = vmatprep.subr.mxu0 %v959
        %1275 = vmatpush1.msra.mxu0 %v958
        %1276 = vmatprep.subr.mxu0 %v962
        %1277 = vmatpush1.msra.mxu0 %v961
        %1278 = vmatprep.subr.mxu0 %v965
        %1279 = vmatpush1.msra.mxu0 %v964
        %1280 = vmatprep.subr.mxu0 %v968
        %1281 = vmatpush1.msra.mxu0 %v967
        %1282 = vmatprep.subr.mxu0 %v971
        %1283 = vmatpush1.msra.mxu0 %v970
        %1284 = vmatprep.subr.mxu0 %v974
        %1285 = vmatpush1.msra.mxu0 %v973
        %1286 = vmatprep.subr.mxu0 %v977
        %1287 = vmatpush1.msra.mxu0 %v976
        %1288 = vmatprep.subr.mxu0 %v980
        %1289 = vmatpush1.msra.mxu0 %v979
        %1290 = vmatprep.subr.mxu0 %v983
        %1291 = vmatpush1.msra.mxu0 %v982
        %1292 = vmatprep.subr.mxu0 %v986
        %1293 = vmatpush1.msra.mxu0 %v985
        %1294 = vmatprep.subr.mxu0 %v989
        %1295 = vmatpush1.msra.mxu0 %v988
        %1296 = vmatprep.subr.mxu0 %v992
        %1297 = vmatpush1.msra.mxu0 %v991
        %1298 = vmatprep.subr.mxu0 %v995
        %1299 = vmatpush1.msra.mxu0 %v994
        %1300 = vmatprep.subr.mxu0 %v998
        %1301 = vmatpush1.msra.mxu0 %v997
        %1302 = vmatprep.subr.mxu0 %v1001
        %1303 = vmatpush1.msra.mxu0 %v1000
        %1304 = vmatprep.subr.mxu0 %v1004
        %1305 = vmatpush1.msra.mxu0 %v1003
        %1306 = vmatprep.subr.mxu0 %v1007
        %1307 = vmatpush1.msra.mxu0 %v1006
        %1308 = vmatprep.subr.mxu0 %v1010
        %1309 = vmatpush1.msra.mxu0 %v1009
        %1310 = vmatprep.subr.mxu0 %v1013
        %1311 = vmatpush1.msra.mxu0 %v1012
        %1312 = vmatprep.subr.mxu0 %v1016
        %1313 = vmatpush1.msra.mxu0 %v1015
        %1314 = vmatprep.subr.mxu0 %v1019
        %1315 = vmatpush1.msra.mxu0 %v1018
        %1316 = vmatprep.subr.mxu0 %v1022
        %1317 = vmatpush1.msra.mxu0 %v1021
        %1318 = vmatprep.subr.mxu0 %v1025
        %1319 = vmatpush1.msra.mxu0 %v1024
        %1320 = vmatprep.subr.mxu0 %v1028
        %1321 = vmatpush1.msra.mxu0 %v1027
        %1322 = vmatprep.subr.mxu0 %v1031
        %1323 = vmatpush1.msra.mxu0 %v1030
        %1324 = vmatprep.subr.mxu0 %v1034
        %1325 = vmatpush1.msra.mxu0 %v1033
        %1326 = vmatprep.subr.mxu0 %v1037
        %1327 = vmatpush1.msra.mxu0 %v1036
        %1328 = vmatprep.subr.mxu0 %v1040
        %1329 = vmatpush1.msra.mxu0 %v1039
        %1330 = vmatprep.subr.mxu0 %v1043
        %1331 = vmatpush1.msra.mxu0 %v1042
        %1332 = vmatprep.mubr.f32.mxu0 %v943
        %1333 = vmatmul.mubr.f32.gmra.mrb[0].mxu0 %v942
        %v1334 = vpop.f32.mrb[0].mxu0
        %v1335 = vadd.f32 0.0, %v1334
        %v1336 = vpop.f32.mrb[0].mxu0
        %v1337 = vadd.f32 0.0, %v1336
        %1338 = vdwg.mxu0
        %1339 = vmatprep.subr.mxu0 %v1046
        %1340 = vmatpush1.msra.mxu0 %v1045
        %1341 = vmatprep.subr.mxu0 %v1049
        %1342 = vmatpush1.msra.mxu0 %v1048
        %1343 = vmatprep.subr.mxu0 %v1052
        %1344 = vmatpush1.msra.mxu0 %v1051
        %1345 = vmatprep.subr.mxu0 %v1055
        %1346 = vmatpush1.msra.mxu0 %v1054
        %1347 = vmatprep.subr.mxu0 %v1058
        %1348 = vmatpush1.msra.mxu0 %v1057
        %1349 = vmatprep.subr.mxu0 %v1061
        %1350 = vmatpush1.msra.mxu0 %v1060
        %1351 = vmatprep.subr.mxu0 %v1064
        %1352 = vmatpush1.msra.mxu0 %v1063
        %1353 = vmatprep.subr.mxu0 %v1067
        %1354 = vmatpush1.msra.mxu0 %v1066
        %1355 = vmatprep.subr.mxu0 %v1070
        %1356 = vmatpush1.msra.mxu0 %v1069
        %1357 = vmatprep.subr.mxu0 %v1073
        %1358 = vmatpush1.msra.mxu0 %v1072
        %1359 = vmatprep.subr.mxu0 %v1076
        %1360 = vmatpush1.msra.mxu0 %v1075
        %1361 = vmatprep.subr.mxu0 %v1079
        %1362 = vmatpush1.msra.mxu0 %v1078
        %1363 = vmatprep.subr.mxu0 %v1082
        %1364 = vmatpush1.msra.mxu0 %v1081
        %1365 = vmatprep.subr.mxu0 %v1085
        %1366 = vmatpush1.msra.mxu0 %v1084
        %1367 = vmatprep.subr.mxu0 %v1088
        %1368 = vmatpush1.msra.mxu0 %v1087
        %1369 = vmatprep.subr.mxu0 %v1091
        %1370 = vmatpush1.msra.mxu0 %v1090
        %1371 = vmatprep.subr.mxu0 %v1094
        %1372 = vmatpush1.msra.mxu0 %v1093
        %1373 = vmatprep.subr.mxu0 %v1097
        %1374 = vmatpush1.msra.mxu0 %v1096
        %1375 = vmatprep.subr.mxu0 %v1100
        %1376 = vmatpush1.msra.mxu0 %v1099
        %1377 = vmatprep.subr.mxu0 %v1103
        %1378 = vmatpush1.msra.mxu0 %v1102
        %1379 = vmatprep.subr.mxu0 %v1106
        %1380 = vmatpush1.msra.mxu0 %v1105
        %1381 = vmatprep.subr.mxu0 %v1109
        %1382 = vmatpush1.msra.mxu0 %v1108
        %1383 = vmatprep.subr.mxu0 %v1112
        %1384 = vmatpush1.msra.mxu0 %v1111
        %1385 = vmatprep.subr.mxu0 %v1115
        %1386 = vmatpush1.msra.mxu0 %v1114
        %1387 = vmatprep.subr.mxu0 %v1118
        %1388 = vmatpush1.msra.mxu0 %v1117
        %1389 = vmatprep.subr.mxu0 %v1121
        %1390 = vmatpush1.msra.mxu0 %v1120
        %1391 = vmatprep.subr.mxu0 %v1124
        %1392 = vmatpush1.msra.mxu0 %v1123
        %1393 = vmatprep.subr.mxu0 %v1127
        %1394 = vmatpush1.msra.mxu0 %v1126
        %1395 = vmatprep.subr.mxu0 %v1130
        %1396 = vmatpush1.msra.mxu0 %v1129
        %1397 = vmatprep.subr.mxu0 %v1133
        %1398 = vmatpush1.msra.mxu0 %v1132
        %1399 = vmatprep.subr.mxu0 %v1136
        %1400 = vmatpush1.msra.mxu0 %v1135
        %1401 = vmatprep.subr.mxu0 %v1139
        %1402 = vmatpush1.msra.mxu0 %v1138
        %1403 = vmatprep.mubr.f32.mxu0 %v945
        %1404 = vmatmul.mubr.f32.gmra.mrb[0].mxu0 %v944
        %v1405 = vpop.f32.mrb[0].mxu0
        %v1406 = vadd.f32 %v1335, %v1405
        %v1407 = vpop.f32.mrb[0].mxu0
        %v1408 = vadd.f32 %v1337, %v1407
        %1409 = vdwg.mxu0
        %1410 = vmatprep.subr.mxu0 %v1142
        %1411 = vmatpush1.msra.mxu0 %v1141
        %1412 = vmatprep.subr.mxu0 %v1145
        %1413 = vmatpush1.msra.mxu0 %v1144
        %1414 = vmatprep.subr.mxu0 %v1148
        %1415 = vmatpush1.msra.mxu0 %v1147
        %1416 = vmatprep.subr.mxu0 %v1151
        %1417 = vmatpush1.msra.mxu0 %v1150
        %1418 = vmatprep.subr.mxu0 %v1154
        %1419 = vmatpush1.msra.mxu0 %v1153
        %1420 = vmatprep.subr.mxu0 %v1157
        %1421 = vmatpush1.msra.mxu0 %v1156
        %1422 = vmatprep.subr.mxu0 %v1160
        %1423 = vmatpush1.msra.mxu0 %v1159
        %1424 = vmatprep.subr.mxu0 %v1163
        %1425 = vmatpush1.msra.mxu0 %v1162
        %1426 = vmatprep.subr.mxu0 %v1166
        %1427 = vmatpush1.msra.mxu0 %v1165
        %1428 = vmatprep.subr.mxu0 %v1169
        %1429 = vmatpush1.msra.mxu0 %v1168
        %1430 = vmatprep.subr.mxu0 %v1172
        %1431 = vmatpush1.msra.mxu0 %v1171
        %1432 = vmatprep.subr.mxu0 %v1175
        %1433 = vmatpush1.msra.mxu0 %v1174
        %1434 = vmatprep.subr.mxu0 %v1178
        %1435 = vmatpush1.msra.mxu0 %v1177
        %1436 = vmatprep.subr.mxu0 %v1181
        %1437 = vmatpush1.msra.mxu0 %v1180
        %1438 = vmatprep.subr.mxu0 %v1184
        %1439 = vmatpush1.msra.mxu0 %v1183
        %1440 = vmatprep.subr.mxu0 %v1187
        %1441 = vmatpush1.msra.mxu0 %v1186
        %1442 = vmatprep.subr.mxu0 %v1190
        %1443 = vmatpush1.msra.mxu0 %v1189
        %1444 = vmatprep.subr.mxu0 %v1193
        %1445 = vmatpush1.msra.mxu0 %v1192
        %1446 = vmatprep.subr.mxu0 %v1196
        %1447 = vmatpush1.msra.mxu0 %v1195
        %1448 = vmatprep.subr.mxu0 %v1199
        %1449 = vmatpush1.msra.mxu0 %v1198
        %1450 = vmatprep.subr.mxu0 %v1202
        %1451 = vmatpush1.msra.mxu0 %v1201
        %1452 = vmatprep.subr.mxu0 %v1205
        %1453 = vmatpush1.msra.mxu0 %v1204
        %1454 = vmatprep.subr.mxu0 %v1208
        %1455 = vmatpush1.msra.mxu0 %v1207
        %1456 = vmatprep.subr.mxu0 %v1211
        %1457 = vmatpush1.msra.mxu0 %v1210
        %1458 = vmatprep.subr.mxu0 %v1214
        %1459 = vmatpush1.msra.mxu0 %v1213
        %1460 = vmatprep.subr.mxu0 %v1217
        %1461 = vmatpush1.msra.mxu0 %v1216
        %1462 = vmatprep.subr.mxu0 %v1220
        %1463 = vmatpush1.msra.mxu0 %v1219
        %1464 = vmatprep.subr.mxu0 %v1223
        %1465 = vmatpush1.msra.mxu0 %v1222
        %1466 = vmatprep.subr.mxu0 %v1226
        %1467 = vmatpush1.msra.mxu0 %v1225
        %1468 = vmatprep.subr.mxu0 %v1229
        %1469 = vmatpush1.msra.mxu0 %v1228
        %1470 = vmatprep.subr.mxu0 %v1232
        %1471 = vmatpush1.msra.mxu0 %v1231
        %1472 = vmatprep.subr.mxu0 %v1235
        %1473 = vmatpush1.msra.mxu0 %v1234
        %1474 = vmatprep.mubr.f32.mxu0 %v947
        %1475 = vmatmul.mubr.f32.gmra.mrb[0].mxu0 %v946
        %v1476 = vpop.f32.mrb[0].mxu0
        %v1477 = vadd.f32 %v1406, %v1476
        %v1478 = vpop.f32.mrb[0].mxu0
        %v1479 = vadd.f32 %v1408, %v1478
        %1480 = vdwg.mxu0
        %1481 = vmatprep.subr.mxu0 %v1238
        %1482 = vmatpush1.msra.mxu0 %v1237
        %1483 = vmatprep.subr.mxu0 %v1241
        %1484 = vmatpush1.msra.mxu0 %v1240
        %1485 = vmatprep.subr.mxu0 %v1244
        %1486 = vmatpush1.msra.mxu0 %v1243
        %1487 = vmatprep.subr.mxu0 %v1247
        %1488 = vmatpush1.msra.mxu0 %v1246
        %1489 = vmatprep.subr.mxu0 %v1250
        %1490 = vmatpush1.msra.mxu0 %v1249
        %1491 = vmatprep.subr.mxu0 %v1253
        %1492 = vmatpush1.msra.mxu0 %v1252
        %1493 = vmatprep.subr.mxu0 %v1256
        %1494 = vmatpush1.msra.mxu0 %v1255
        %1495 = vmatprep.subr.mxu0 %v1259
        %1496 = vmatpush1.msra.mxu0 %v1258
        %1497 = vmatprep.subr.mxu0 %v1262
        %1498 = vmatpush1.msra.mxu0 %v1261
        %1499 = vmatprep.subr.mxu0 0.0
        %1500 = vmatpush1.msra.mxu0 0.0
        %1501 = vmatprep.subr.mxu0 0.0
        %1502 = vmatpush1.msra.mxu0 0.0
        %1503 = vmatprep.subr.mxu0 0.0
        %1504 = vmatpush1.msra.mxu0 0.0
        %1505 = vmatprep.subr.mxu0 0.0
        %1506 = vmatpush1.msra.mxu0 0.0
        %1507 = vmatprep.subr.mxu0 0.0
        %1508 = vmatpush1.msra.mxu0 0.0
        %1509 = vmatprep.subr.mxu0 0.0
        %1510 = vmatpush1.msra.mxu0 0.0
        %1511 = vmatprep.subr.mxu0 0.0
        %1512 = vmatpush1.msra.mxu0 0.0
        %1513 = vmatprep.subr.mxu0 0.0
        %1514 = vmatpush1.msra.mxu0 0.0
        %1515 = vmatprep.subr.mxu0 0.0
        %1516 = vmatpush1.msra.mxu0 0.0
        %1517 = vmatprep.subr.mxu0 0.0
        %1518 = vmatpush1.msra.mxu0 0.0
        %1519 = vmatprep.subr.mxu0 0.0
        %1520 = vmatpush1.msra.mxu0 0.0
        %1521 = vmatprep.subr.mxu0 0.0
        %1522 = vmatpush1.msra.mxu0 0.0
        %1523 = vmatprep.subr.mxu0 0.0
        %1524 = vmatpush1.msra.mxu0 0.0
        %1525 = vmatprep.subr.mxu0 0.0
        %1526 = vmatpush1.msra.mxu0 0.0
        %1527 = vmatprep.subr.mxu0 0.0
        %1528 = vmatpush1.msra.mxu0 0.0
        %1529 = vmatprep.subr.mxu0 0.0
        %1530 = vmatpush1.msra.mxu0 0.0
        %1531 = vmatprep.subr.mxu0 0.0
        %1532 = vmatpush1.msra.mxu0 0.0
        %1533 = vmatprep.subr.mxu0 0.0
        %1534 = vmatpush1.msra.mxu0 0.0
        %1535 = vmatprep.subr.mxu0 0.0
        %1536 = vmatpush1.msra.mxu0 0.0
        %1537 = vmatprep.subr.mxu0 0.0
        %1538 = vmatpush1.msra.mxu0 0.0
        %1539 = vmatprep.subr.mxu0 0.0
        %1540 = vmatpush1.msra.mxu0 0.0
        %1541 = vmatprep.subr.mxu0 0.0
        %1542 = vmatpush1.msra.mxu0 0.0
        %1543 = vmatprep.subr.mxu0 0.0
        %1544 = vmatpush1.msra.mxu0 0.0
        %1545 = vmatprep.mubr.f32.mxu0 0.0
        %1546 = vmatmul.mubr.f32.gmra.mrb[0].mxu0 %v1266
        %v1547 = vpop.f32.mrb[0].mxu0
        %v1548 = vadd.f32 %v1477, %v1547
        %v1549 = vpop.f32.mrb[0].mxu0
        %v1550 = vadd.f32 %v1479, %v1549
        %1551 = vdwg.mxu0
        %1552 = vmatprep.subr.mxu0 0.0
        %1553 = vmatpush1.msra.mxu0 %v951
        %1554 = vmatprep.subr.mxu0 0.0
        %1555 = vmatpush1.msra.mxu0 %v954
        %1556 = vmatprep.subr.mxu0 0.0
        %1557 = vmatpush1.msra.mxu0 %v957
        %1558 = vmatprep.subr.mxu0 0.0
        %1559 = vmatpush1.msra.mxu0 %v960
        %1560 = vmatprep.subr.mxu0 0.0
        %1561 = vmatpush1.msra.mxu0 %v963
        %1562 = vmatprep.subr.mxu0 0.0
        %1563 = vmatpush1.msra.mxu0 %v966
        %1564 = vmatprep.subr.mxu0 0.0
        %1565 = vmatpush1.msra.mxu0 %v969
        %1566 = vmatprep.subr.mxu0 0.0
        %1567 = vmatpush1.msra.mxu0 %v972
        %1568 = vmatprep.subr.mxu0 0.0
        %1569 = vmatpush1.msra.mxu0 %v975
        %1570 = vmatprep.subr.mxu0 0.0
        %1571 = vmatpush1.msra.mxu0 %v978
        %1572 = vmatprep.subr.mxu0 0.0
        %1573 = vmatpush1.msra.mxu0 %v981
        %1574 = vmatprep.subr.mxu0 0.0
        %1575 = vmatpush1.msra.mxu0 %v984
        %1576 = vmatprep.subr.mxu0 0.0
        %1577 = vmatpush1.msra.mxu0 %v987
        %1578 = vmatprep.subr.mxu0 0.0
        %1579 = vmatpush1.msra.mxu0 %v990
        %1580 = vmatprep.subr.mxu0 0.0
        %1581 = vmatpush1.msra.mxu0 %v993
        %1582 = vmatprep.subr.mxu0 0.0
        %1583 = vmatpush1.msra.mxu0 %v996
        %1584 = vmatprep.subr.mxu0 0.0
        %1585 = vmatpush1.msra.mxu0 %v999
        %1586 = vmatprep.subr.mxu0 0.0
        %1587 = vmatpush1.msra.mxu0 %v1002
        %1588 = vmatprep.subr.mxu0 0.0
        %1589 = vmatpush1.msra.mxu0 %v1005
        %1590 = vmatprep.subr.mxu0 0.0
        %1591 = vmatpush1.msra.mxu0 %v1008
        %1592 = vmatprep.subr.mxu0 0.0
        %1593 = vmatpush1.msra.mxu0 %v1011
        %1594 = vmatprep.subr.mxu0 0.0
        %1595 = vmatpush1.msra.mxu0 %v1014
        %1596 = vmatprep.subr.mxu0 0.0
        %1597 = vmatpush1.msra.mxu0 %v1017
        %1598 = vmatprep.subr.mxu0 0.0
        %1599 = vmatpush1.msra.mxu0 %v1020
        %1600 = vmatprep.subr.mxu0 0.0
        %1601 = vmatpush1.msra.mxu0 %v1023
        %1602 = vmatprep.subr.mxu0 0.0
        %1603 = vmatpush1.msra.mxu0 %v1026
        %1604 = vmatprep.subr.mxu0 0.0
        %1605 = vmatpush1.msra.mxu0 %v1029
        %1606 = vmatprep.subr.mxu0 0.0
        %1607 = vmatpush1.msra.mxu0 %v1032
        %1608 = vmatprep.subr.mxu0 0.0
        %1609 = vmatpush1.msra.mxu0 %v1035
        %1610 = vmatprep.subr.mxu0 0.0
        %1611 = vmatpush1.msra.mxu0 %v1038
        %1612 = vmatprep.subr.mxu0 0.0
        %1613 = vmatpush1.msra.mxu0 %v1041
        %1614 = vmatprep.subr.mxu0 0.0
        %1615 = vmatpush1.msra.mxu0 %v1044
        %1616 = vmatprep.mubr.f32.mxu0 %v943
        %1617 = vmatmul.mubr.f32.gmra.mrb[0].mxu0 %v942
        %v1618 = vpop.f32.mrb[0].mxu0
        %v1619 = vadd.f32 0.0, %v1618
        %v1620 = vpop.f32.mrb[0].mxu0
        %1621 = vdwg.mxu0
        %1622 = vmatprep.subr.mxu0 0.0
        %1623 = vmatpush1.msra.mxu0 %v1047
        %1624 = vmatprep.subr.mxu0 0.0
        %1625 = vmatpush1.msra.mxu0 %v1050
        %1626 = vmatprep.subr.mxu0 0.0
        %1627 = vmatpush1.msra.mxu0 %v1053
        %1628 = vmatprep.subr.mxu0 0.0
        %1629 = vmatpush1.msra.mxu0 %v1056
        %1630 = vmatprep.subr.mxu0 0.0
        %1631 = vmatpush1.msra.mxu0 %v1059
        %1632 = vmatprep.subr.mxu0 0.0
        %1633 = vmatpush1.msra.mxu0 %v1062
        %1634 = vmatprep.subr.mxu0 0.0
        %1635 = vmatpush1.msra.mxu0 %v1065
        %1636 = vmatprep.subr.mxu0 0.0
        %1637 = vmatpush1.msra.mxu0 %v1068
        %1638 = vmatprep.subr.mxu0 0.0
        %1639 = vmatpush1.msra.mxu0 %v1071
        %1640 = vmatprep.subr.mxu0 0.0
        %1641 = vmatpush1.msra.mxu0 %v1074
        %1642 = vmatprep.subr.mxu0 0.0
        %1643 = vmatpush1.msra.mxu0 %v1077
        %1644 = vmatprep.subr.mxu0 0.0
        %1645 = vmatpush1.msra.mxu0 %v1080
        %1646 = vmatprep.subr.mxu0 0.0
        %1647 = vmatpush1.msra.mxu0 %v1083
        %1648 = vmatprep.subr.mxu0 0.0
        %1649 = vmatpush1.msra.mxu0 %v1086
        %1650 = vmatprep.subr.mxu0 0.0
        %1651 = vmatpush1.msra.mxu0 %v1089
        %1652 = vmatprep.subr.mxu0 0.0
        %1653 = vmatpush1.msra.mxu0 %v1092
        %1654 = vmatprep.subr.mxu0 0.0
        %1655 = vmatpush1.msra.mxu0 %v1095
        %1656 = vmatprep.subr.mxu0 0.0
        %1657 = vmatpush1.msra.mxu0 %v1098
        %1658 = vmatprep.subr.mxu0 0.0
        %1659 = vmatpush1.msra.mxu0 %v1101
        %1660 = vmatprep.subr.mxu0 0.0
        %1661 = vmatpush1.msra.mxu0 %v1104
        %1662 = vmatprep.subr.mxu0 0.0
        %1663 = vmatpush1.msra.mxu0 %v1107
        %1664 = vmatprep.subr.mxu0 0.0
        %1665 = vmatpush1.msra.mxu0 %v1110
        %1666 = vmatprep.subr.mxu0 0.0
        %1667 = vmatpush1.msra.mxu0 %v1113
        %1668 = vmatprep.subr.mxu0 0.0
        %1669 = vmatpush1.msra.mxu0 %v1116
        %1670 = vmatprep.subr.mxu0 0.0
        %1671 = vmatpush1.msra.mxu0 %v1119
        %1672 = vmatprep.subr.mxu0 0.0
        %1673 = vmatpush1.msra.mxu0 %v1122
        %1674 = vmatprep.subr.mxu0 0.0
        %1675 = vmatpush1.msra.mxu0 %v1125
        %1676 = vmatprep.subr.mxu0 0.0
        %1677 = vmatpush1.msra.mxu0 %v1128
        %1678 = vmatprep.subr.mxu0 0.0
        %1679 = vmatpush1.msra.mxu0 %v1131
        %1680 = vmatprep.subr.mxu0 0.0
        %1681 = vmatpush1.msra.mxu0 %v1134
        %1682 = vmatprep.subr.mxu0 0.0
        %1683 = vmatpush1.msra.mxu0 %v1137
        %1684 = vmatprep.subr.mxu0 0.0
        %1685 = vmatpush1.msra.mxu0 %v1140
        %1686 = vmatprep.mubr.f32.mxu0 %v945
        %1687 = vmatmul.mubr.f32.gmra.mrb[0].mxu0 %v944
        %v1688 = vpop.f32.mrb[0].mxu0
        %v1689 = vadd.f32 %v1619, %v1688
        %v1690 = vpop.f32.mrb[0].mxu0
        %1691 = vdwg.mxu0
        %1692 = vmatprep.subr.mxu0 0.0
        %1693 = vmatpush1.msra.mxu0 %v1143
        %1694 = vmatprep.subr.mxu0 0.0
        %1695 = vmatpush1.msra.mxu0 %v1146
        %1696 = vmatprep.subr.mxu0 0.0
        %1697 = vmatpush1.msra.mxu0 %v1149
        %1698 = vmatprep.subr.mxu0 0.0
        %1699 = vmatpush1.msra.mxu0 %v1152
        %1700 = vmatprep.subr.mxu0 0.0
        %1701 = vmatpush1.msra.mxu0 %v1155
        %1702 = vmatprep.subr.mxu0 0.0
        %1703 = vmatpush1.msra.mxu0 %v1158
        %1704 = vmatprep.subr.mxu0 0.0
        %1705 = vmatpush1.msra.mxu0 %v1161
        %1706 = vmatprep.subr.mxu0 0.0
        %1707 = vmatpush1.msra.mxu0 %v1164
        %1708 = vmatprep.subr.mxu0 0.0
        %1709 = vmatpush1.msra.mxu0 %v1167
        %1710 = vmatprep.subr.mxu0 0.0
        %1711 = vmatpush1.msra.mxu0 %v1170
        %1712 = vmatprep.subr.mxu0 0.0
        %1713 = vmatpush1.msra.mxu0 %v1173
        %1714 = vmatprep.subr.mxu0 0.0
        %1715 = vmatpush1.msra.mxu0 %v1176
        %1716 = vmatprep.subr.mxu0 0.0
        %1717 = vmatpush1.msra.mxu0 %v1179
        %1718 = vmatprep.subr.mxu0 0.0
        %1719 = vmatpush1.msra.mxu0 %v1182
        %1720 = vmatprep.subr.mxu0 0.0
        %1721 = vmatpush1.msra.mxu0 %v1185
        %1722 = vmatprep.subr.mxu0 0.0
        %1723 = vmatpush1.msra.mxu0 %v1188
        %1724 = vmatprep.subr.mxu0 0.0
        %1725 = vmatpush1.msra.mxu0 %v1191
        %1726 = vmatprep.subr.mxu0 0.0
        %1727 = vmatpush1.msra.mxu0 %v1194
        %1728 = vmatprep.subr.mxu0 0.0
        %1729 = vmatpush1.msra.mxu0 %v1197
        %1730 = vmatprep.subr.mxu0 0.0
        %1731 = vmatpush1.msra.mxu0 %v1200
        %1732 = vmatprep.subr.mxu0 0.0
        %1733 = vmatpush1.msra.mxu0 %v1203
        %1734 = vmatprep.subr.mxu0 0.0
        %1735 = vmatpush1.msra.mxu0 %v1206
        %1736 = vmatprep.subr.mxu0 0.0
        %1737 = vmatpush1.msra.mxu0 %v1209
        %1738 = vmatprep.subr.mxu0 0.0
        %1739 = vmatpush1.msra.mxu0 %v1212
        %1740 = vmatprep.subr.mxu0 0.0
        %1741 = vmatpush1.msra.mxu0 %v1215
        %1742 = vmatprep.subr.mxu0 0.0
        %1743 = vmatpush1.msra.mxu0 %v1218
        %1744 = vmatprep.subr.mxu0 0.0
        %1745 = vmatpush1.msra.mxu0 %v1221
        %1746 = vmatprep.subr.mxu0 0.0
        %1747 = vmatpush1.msra.mxu0 %v1224
        %1748 = vmatprep.subr.mxu0 0.0
        %1749 = vmatpush1.msra.mxu0 %v1227
        %1750 = vmatprep.subr.mxu0 0.0
        %1751 = vmatpush1.msra.mxu0 %v1230
        %1752 = vmatprep.subr.mxu0 0.0
        %1753 = vmatpush1.msra.mxu0 %v1233
        %1754 = vmatprep.subr.mxu0 0.0
        %1755 = vmatpush1.msra.mxu0 %v1236
        %1756 = vmatprep.mubr.f32.mxu0 %v947
        %1757 = vmatmul.mubr.f32.gmra.mrb[0].mxu0 %v946
        %v1758 = vpop.f32.mrb[0].mxu0
        %v1759 = vadd.f32 %v1689, %v1758
        %v1760 = vpop.f32.mrb[0].mxu0
        %1761 = vdwg.mxu0
        %1762 = vmatprep.subr.mxu0 0.0
        %1763 = vmatpush1.msra.mxu0 %v1239
        %1764 = vmatprep.subr.mxu0 0.0
        %1765 = vmatpush1.msra.mxu0 %v1242
        %1766 = vmatprep.subr.mxu0 0.0
        %1767 = vmatpush1.msra.mxu0 %v1245
        %1768 = vmatprep.subr.mxu0 0.0
        %1769 = vmatpush1.msra.mxu0 %v1248
        %1770 = vmatprep.subr.mxu0 0.0
        %1771 = vmatpush1.msra.mxu0 %v1251
        %1772 = vmatprep.subr.mxu0 0.0
        %1773 = vmatpush1.msra.mxu0 %v1254
        %1774 = vmatprep.subr.mxu0 0.0
        %1775 = vmatpush1.msra.mxu0 %v1257
        %1776 = vmatprep.subr.mxu0 0.0
        %1777 = vmatpush1.msra.mxu0 %v1260
        %1778 = vmatprep.subr.mxu0 0.0
        %1779 = vmatpush1.msra.mxu0 %v1263
        %1780 = vmatprep.subr.mxu0 0.0
        %1781 = vmatpush1.msra.mxu0 0.0
        %1782 = vmatprep.subr.mxu0 0.0
        %1783 = vmatpush1.msra.mxu0 0.0
        %1784 = vmatprep.subr.mxu0 0.0
        %1785 = vmatpush1.msra.mxu0 0.0
        %1786 = vmatprep.subr.mxu0 0.0
        %1787 = vmatpush1.msra.mxu0 0.0
        %1788 = vmatprep.subr.mxu0 0.0
        %1789 = vmatpush1.msra.mxu0 0.0
        %1790 = vmatprep.subr.mxu0 0.0
        %1791 = vmatpush1.msra.mxu0 0.0
        %1792 = vmatprep.subr.mxu0 0.0
        %1793 = vmatpush1.msra.mxu0 0.0
        %1794 = vmatprep.subr.mxu0 0.0
        %1795 = vmatpush1.msra.mxu0 0.0
        %1796 = vmatprep.subr.mxu0 0.0
        %1797 = vmatpush1.msra.mxu0 0.0
        %1798 = vmatprep.subr.mxu0 0.0
        %1799 = vmatpush1.msra.mxu0 0.0
        %1800 = vmatprep.subr.mxu0 0.0
        %1801 = vmatpush1.msra.mxu0 0.0
        %1802 = vmatprep.subr.mxu0 0.0
        %1803 = vmatpush1.msra.mxu0 0.0
        %1804 = vmatprep.subr.mxu0 0.0
        %1805 = vmatpush1.msra.mxu0 0.0
        %1806 = vmatprep.subr.mxu0 0.0
        %1807 = vmatpush1.msra.mxu0 0.0
        %1808 = vmatprep.subr.mxu0 0.0
        %1809 = vmatpush1.msra.mxu0 0.0
        %1810 = vmatprep.subr.mxu0 0.0
        %1811 = vmatpush1.msra.mxu0 0.0
        %1812 = vmatprep.subr.mxu0 0.0
        %1813 = vmatpush1.msra.mxu0 0.0
        %1814 = vmatprep.subr.mxu0 0.0
        %1815 = vmatpush1.msra.mxu0 0.0
        %1816 = vmatprep.subr.mxu0 0.0
        %1817 = vmatpush1.msra.mxu0 0.0
        %1818 = vmatprep.subr.mxu0 0.0
        %1819 = vmatpush1.msra.mxu0 0.0
        %1820 = vmatprep.subr.mxu0 0.0
        %1821 = vmatpush1.msra.mxu0 0.0
        %1822 = vmatprep.subr.mxu0 0.0
        %1823 = vmatpush1.msra.mxu0 0.0
        %1824 = vmatprep.subr.mxu0 0.0
        %1825 = vmatpush1.msra.mxu0 0.0
        %1826 = vmatprep.mubr.f32.mxu0 0.0
        %1827 = vmatmul.mubr.f32.gmra.mrb[0].mxu0 %v1266
        %v1828 = vpop.f32.mrb[0].mxu0
        %v1829 = vadd.f32 %v1759, %v1828
        %v1830 = vpop.f32.mrb[0].mxu0
        %1831 = vdwg.mxu0
        %v1832 = vld [vmem:[%s4] sm:$0xff]
        %v1833 = vld [vmem:[%s4 + $0x8] sm:$0xff]
        %s1834 = scalar_lea.vmem %s4, 16
        %v1835 = vld [vmem:[%s1834] sm:$0xff]
        %v1836 = vld [vmem:[%s1834 + $0x8] sm:$0xff]
        %1839 = vrot.lane.b32.xlu0 %v1548, 127
        %v1840 = vpop.permute.xlu0 %1839
        %1841 = vrot.lane.b32.xlu0 %v1550, 127
        %v1842 = vpop.permute.xlu0 %1841
        %v1843 = vsel %vm461, %v1840, %v1842
        %vm1846 = vcmask 64512
        %v1848 = vsel %vm1846, %v1835, 0
        %v1851 = vsel %vm1846, %v1836, 0
        %1853 = vmatprep.subr.mxu0 %v1842
        %1854 = vmatpush1.msra.mxu0 %v1843
        %1855 = vmatprep.subr.mxu0 0.0
        %1856 = vmatpush1.msra.mxu0 0.0
        %1857 = vmatprep.subr.mxu0 0.0
        %1858 = vmatpush1.msra.mxu0 0.0
        %1859 = vmatprep.subr.mxu0 0.0
        %1860 = vmatpush1.msra.mxu0 0.0
        %1861 = vmatprep.subr.mxu0 0.0
        %1862 = vmatpush1.msra.mxu0 0.0
        %1863 = vmatprep.subr.mxu0 0.0
        %1864 = vmatpush1.msra.mxu0 0.0
        %1865 = vmatprep.subr.mxu0 0.0
        %1866 = vmatpush1.msra.mxu0 0.0
        %1867 = vmatprep.subr.mxu0 0.0
        %1868 = vmatpush1.msra.mxu0 0.0
        %1869 = vmatprep.subr.mxu0 0.0
        %1870 = vmatpush1.msra.mxu0 0.0
        %1871 = vmatprep.subr.mxu0 0.0
        %1872 = vmatpush1.msra.mxu0 0.0
        %1873 = vmatprep.subr.mxu0 0.0
        %1874 = vmatpush1.msra.mxu0 0.0
        %1875 = vmatprep.subr.mxu0 0.0
        %1876 = vmatpush1.msra.mxu0 0.0
        %1877 = vmatprep.subr.mxu0 0.0
        %1878 = vmatpush1.msra.mxu0 0.0
        %1879 = vmatprep.subr.mxu0 0.0
        %1880 = vmatpush1.msra.mxu0 0.0
        %1881 = vmatprep.subr.mxu0 0.0
        %1882 = vmatpush1.msra.mxu0 0.0
        %1883 = vmatprep.subr.mxu0 0.0
        %1884 = vmatpush1.msra.mxu0 0.0
        %1885 = vmatprep.subr.mxu0 0.0
        %1886 = vmatpush1.msra.mxu0 0.0
        %1887 = vmatprep.subr.mxu0 0.0
        %1888 = vmatpush1.msra.mxu0 0.0
        %1889 = vmatprep.subr.mxu0 0.0
        %1890 = vmatpush1.msra.mxu0 0.0
        %1891 = vmatprep.subr.mxu0 0.0
        %1892 = vmatpush1.msra.mxu0 0.0
        %1893 = vmatprep.subr.mxu0 0.0
        %1894 = vmatpush1.msra.mxu0 0.0
        %1895 = vmatprep.subr.mxu0 0.0
        %1896 = vmatpush1.msra.mxu0 0.0
        %1897 = vmatprep.subr.mxu0 0.0
        %1898 = vmatpush1.msra.mxu0 0.0
        %1899 = vmatprep.subr.mxu0 0.0
        %1900 = vmatpush1.msra.mxu0 0.0
        %1901 = vmatprep.subr.mxu0 0.0
        %1902 = vmatpush1.msra.mxu0 0.0
        %1903 = vmatprep.subr.mxu0 0.0
        %1904 = vmatpush1.msra.mxu0 0.0
        %1905 = vmatprep.subr.mxu0 0.0
        %1906 = vmatpush1.msra.mxu0 0.0
        %1907 = vmatprep.subr.mxu0 0.0
        %1908 = vmatpush1.msra.mxu0 0.0
        %1909 = vmatprep.subr.mxu0 0.0
        %1910 = vmatpush1.msra.mxu0 0.0
        %1911 = vmatprep.subr.mxu0 0.0
        %1912 = vmatpush1.msra.mxu0 0.0
        %1913 = vmatprep.subr.mxu0 0.0
        %1914 = vmatpush1.msra.mxu0 0.0
        %1915 = vmatprep.subr.mxu0 0.0
        %1916 = vmatpush1.msra.mxu0 0.0
        %1917 = vmatprep.mubr.f32.mxu0 0.0
        %1918 = vmatmul.mubr.f32.gmra.mrb[0].mxu0 %v1848
        %v1919 = vpop.f32.mrb[0].mxu0
        %v1920 = vadd.f32 0.0, %v1919
        %v1921 = vpop.f32.mrb[0].mxu0
        %v1922 = vadd.f32 0.0, %v1921
        %1923 = vmatprep.mubr.f32.mxu0 0.0
        %1924 = vmatmul.mubr.f32.gmra.mrb[0].mxu0 %v1851
        %v1925 = vpop.f32.mrb[0].mxu0
        %v1926 = vadd.f32 0.0, %v1925
        %v1927 = vpop.f32.mrb[0].mxu0
        %v1928 = vadd.f32 0.0, %v1927
        %1929 = vdwg.mxu0
        %v1931 = vsel %vm1846, %v1832, 0
        %v1934 = vsel %vm1846, %v1833, 0
        %1936 = vmatprep.subr.mxu0 %v1550
        %1937 = vmatpush1.msra.mxu0 %v1548
        %1938 = vmatprep.subr.mxu0 0.0
        %1939 = vmatpush1.msra.mxu0 0.0
        %1940 = vmatprep.subr.mxu0 0.0
        %1941 = vmatpush1.msra.mxu0 0.0
        %1942 = vmatprep.subr.mxu0 0.0
        %1943 = vmatpush1.msra.mxu0 0.0
        %1944 = vmatprep.subr.mxu0 0.0
        %1945 = vmatpush1.msra.mxu0 0.0
        %1946 = vmatprep.subr.mxu0 0.0
        %1947 = vmatpush1.msra.mxu0 0.0
        %1948 = vmatprep.subr.mxu0 0.0
        %1949 = vmatpush1.msra.mxu0 0.0
        %1950 = vmatprep.subr.mxu0 0.0
        %1951 = vmatpush1.msra.mxu0 0.0
        %1952 = vmatprep.subr.mxu0 0.0
        %1953 = vmatpush1.msra.mxu0 0.0
        %1954 = vmatprep.subr.mxu0 0.0
        %1955 = vmatpush1.msra.mxu0 0.0
        %1956 = vmatprep.subr.mxu0 0.0
        %1957 = vmatpush1.msra.mxu0 0.0
        %1958 = vmatprep.subr.mxu0 0.0
        %1959 = vmatpush1.msra.mxu0 0.0
        %1960 = vmatprep.subr.mxu0 0.0
        %1961 = vmatpush1.msra.mxu0 0.0
        %1962 = vmatprep.subr.mxu0 0.0
        %1963 = vmatpush1.msra.mxu0 0.0
        %1964 = vmatprep.subr.mxu0 0.0
        %1965 = vmatpush1.msra.mxu0 0.0
        %1966 = vmatprep.subr.mxu0 0.0
        %1967 = vmatpush1.msra.mxu0 0.0
        %1968 = vmatprep.subr.mxu0 0.0
        %1969 = vmatpush1.msra.mxu0 0.0
        %1970 = vmatprep.subr.mxu0 0.0
        %1971 = vmatpush1.msra.mxu0 0.0
        %1972 = vmatprep.subr.mxu0 0.0
        %1973 = vmatpush1.msra.mxu0 0.0
        %1974 = vmatprep.subr.mxu0 0.0
        %1975 = vmatpush1.msra.mxu0 0.0
        %1976 = vmatprep.subr.mxu0 0.0
        %1977 = vmatpush1.msra.mxu0 0.0
        %1978 = vmatprep.subr.mxu0 0.0
        %1979 = vmatpush1.msra.mxu0 0.0
        %1980 = vmatprep.subr.mxu0 0.0
        %1981 = vmatpush1.msra.mxu0 0.0
        %1982 = vmatprep.subr.mxu0 0.0
        %1983 = vmatpush1.msra.mxu0 0.0
        %1984 = vmatprep.subr.mxu0 0.0
        %1985 = vmatpush1.msra.mxu0 0.0
        %1986 = vmatprep.subr.mxu0 0.0
        %1987 = vmatpush1.msra.mxu0 0.0
        %1988 = vmatprep.subr.mxu0 0.0
        %1989 = vmatpush1.msra.mxu0 0.0
        %1990 = vmatprep.subr.mxu0 0.0
        %1991 = vmatpush1.msra.mxu0 0.0
        %1992 = vmatprep.subr.mxu0 0.0
        %1993 = vmatpush1.msra.mxu0 0.0
        %1994 = vmatprep.subr.mxu0 0.0
        %1995 = vmatpush1.msra.mxu0 0.0
        %1996 = vmatprep.subr.mxu0 0.0
        %1997 = vmatpush1.msra.mxu0 0.0
        %1998 = vmatprep.subr.mxu0 0.0
        %1999 = vmatpush1.msra.mxu0 0.0
        %2000 = vmatprep.mubr.f32.mxu0 0.0
        %2001 = vmatmul.mubr.f32.gmra.mrb[0].mxu0 %v1931
        %v2002 = vpop.f32.mrb[0].mxu0
        %v2003 = vadd.f32 %v1920, %v2002
        %v2004 = vpop.f32.mrb[0].mxu0
        %v2005 = vadd.f32 %v1922, %v2004
        %2006 = vmatprep.mubr.f32.mxu0 0.0
        %2007 = vmatmul.mubr.f32.gmra.mrb[0].mxu0 %v1934
        %v2008 = vpop.f32.mrb[0].mxu0
        %v2009 = vadd.f32 %v1926, %v2008
        %v2010 = vpop.f32.mrb[0].mxu0
        %v2011 = vadd.f32 %v1928, %v2010
        %2012 = vdwg.mxu0
        %s2013 = scalar_lea.vmem %s4, 32
        %v2014 = vld [vmem:[%s2013] sm:$0xff]
        %v2015 = vld [vmem:[%s2013 + $0x8] sm:$0xff]
        %2016 = vrot.lane.b32.xlu0 %v1548, 126
        %v2017 = vpop.permute.xlu0 %2016
        %2018 = vrot.lane.b32.xlu0 %v1550, 126
        %v2019 = vpop.permute.xlu0 %2018
        %v2020 = vsel %vm517, %v2017, %v2019
        %v2024 = vsel %vm1846, %v2014, 0
        %v2027 = vsel %vm1846, %v2015, 0
        %2029 = vmatprep.subr.mxu0 %v2019
        %2030 = vmatpush1.msra.mxu0 %v2020
        %2031 = vmatprep.subr.mxu0 0.0
        %2032 = vmatpush1.msra.mxu0 0.0
        %2033 = vmatprep.subr.mxu0 0.0
        %2034 = vmatpush1.msra.mxu0 0.0
        %2035 = vmatprep.subr.mxu0 0.0
        %2036 = vmatpush1.msra.mxu0 0.0
        %2037 = vmatprep.subr.mxu0 0.0
        %2038 = vmatpush1.msra.mxu0 0.0
        %2039 = vmatprep.subr.mxu0 0.0
        %2040 = vmatpush1.msra.mxu0 0.0
        %2041 = vmatprep.subr.mxu0 0.0
        %2042 = vmatpush1.msra.mxu0 0.0
        %2043 = vmatprep.subr.mxu0 0.0
        %2044 = vmatpush1.msra.mxu0 0.0
        %2045 = vmatprep.subr.mxu0 0.0
        %2046 = vmatpush1.msra.mxu0 0.0
        %2047 = vmatprep.subr.mxu0 0.0
        %2048 = vmatpush1.msra.mxu0 0.0
        %2049 = vmatprep.subr.mxu0 0.0
        %2050 = vmatpush1.msra.mxu0 0.0
        %2051 = vmatprep.subr.mxu0 0.0
        %2052 = vmatpush1.msra.mxu0 0.0
        %2053 = vmatprep.subr.mxu0 0.0
        %2054 = vmatpush1.msra.mxu0 0.0
        %2055 = vmatprep.subr.mxu0 0.0
        %2056 = vmatpush1.msra.mxu0 0.0
        %2057 = vmatprep.subr.mxu0 0.0
        %2058 = vmatpush1.msra.mxu0 0.0
        %2059 = vmatprep.subr.mxu0 0.0
        %2060 = vmatpush1.msra.mxu0 0.0
        %2061 = vmatprep.subr.mxu0 0.0
        %2062 = vmatpush1.msra.mxu0 0.0
        %2063 = vmatprep.subr.mxu0 0.0
        %2064 = vmatpush1.msra.mxu0 0.0
        %2065 = vmatprep.subr.mxu0 0.0
        %2066 = vmatpush1.msra.mxu0 0.0
        %2067 = vmatprep.subr.mxu0 0.0
        %2068 = vmatpush1.msra.mxu0 0.0
        %2069 = vmatprep.subr.mxu0 0.0
        %2070 = vmatpush1.msra.mxu0 0.0
        %2071 = vmatprep.subr.mxu0 0.0
        %2072 = vmatpush1.msra.mxu0 0.0
        %2073 = vmatprep.subr.mxu0 0.0
        %2074 = vmatpush1.msra.mxu0 0.0
        %2075 = vmatprep.subr.mxu0 0.0
        %2076 = vmatpush1.msra.mxu0 0.0
        %2077 = vmatprep.subr.mxu0 0.0
        %2078 = vmatpush1.msra.mxu0 0.0
        %2079 = vmatprep.subr.mxu0 0.0
        %2080 = vmatpush1.msra.mxu0 0.0
        %2081 = vmatprep.subr.mxu0 0.0
        %2082 = vmatpush1.msra.mxu0 0.0
        %2083 = vmatprep.subr.mxu0 0.0
        %2084 = vmatpush1.msra.mxu0 0.0
        %2085 = vmatprep.subr.mxu0 0.0
        %2086 = vmatpush1.msra.mxu0 0.0
        %2087 = vmatprep.subr.mxu0 0.0
        %2088 = vmatpush1.msra.mxu0 0.0
        %2089 = vmatprep.subr.mxu0 0.0
        %2090 = vmatpush1.msra.mxu0 0.0
        %2091 = vmatprep.subr.mxu0 0.0
        %2092 = vmatpush1.msra.mxu0 0.0
        %2093 = vmatprep.mubr.f32.mxu0 0.0
        %2094 = vmatmul.mubr.f32.gmra.mrb[0].mxu0 %v2024
        %v2095 = vpop.f32.mrb[0].mxu0
        %v2096 = vadd.f32 0.0, %v2095
        %v2097 = vpop.f32.mrb[0].mxu0
        %v2098 = vadd.f32 0.0, %v2097
        %2099 = vmatprep.mubr.f32.mxu0 0.0
        %2100 = vmatmul.mubr.f32.gmra.mrb[0].mxu0 %v2027
        %v2101 = vpop.f32.mrb[0].mxu0
        %v2102 = vadd.f32 0.0, %v2101
        %v2103 = vpop.f32.mrb[0].mxu0
        %v2104 = vadd.f32 0.0, %v2103
        %2105 = vdwg.mxu0
        %v2106 = vadd.f32 %v2003, %v2096
        %v2107 = vadd.f32 %v2005, %v2098
        %v2108 = vadd.f32 %v2009, %v2102
        %v2109 = vadd.f32 %v2011, %v2104
        %s2110 = scalar_lea.vmem %s4, 48
        %v2111 = vld [vmem:[%s2110] sm:$0xff]
        %v2112 = vld [vmem:[%s2110 + $0x8] sm:$0xff]
        %2113 = vrot.lane.b32.xlu0 %v1548, 112
        %v2114 = vpop.permute.xlu0 %2113
        %2115 = vrot.lane.b32.xlu0 %v1550, 112
        %v2116 = vpop.permute.xlu0 %2115
        %vm2117 = vcmask 916480
        %v2118 = vsel %vm2117, %v2114, %v2116
        %v2122 = vsel %vm1846, %v2111, 0
        %v2125 = vsel %vm1846, %v2112, 0
        %2127 = vmatprep.subr.mxu0 %v2116
        %2128 = vmatpush1.msra.mxu0 %v2118
        %2129 = vmatprep.subr.mxu0 0.0
        %2130 = vmatpush1.msra.mxu0 0.0
        %2131 = vmatprep.subr.mxu0 0.0
        %2132 = vmatpush1.msra.mxu0 0.0
        %2133 = vmatprep.subr.mxu0 0.0
        %2134 = vmatpush1.msra.mxu0 0.0
        %2135 = vmatprep.subr.mxu0 0.0
        %2136 = vmatpush1.msra.mxu0 0.0
        %2137 = vmatprep.subr.mxu0 0.0
        %2138 = vmatpush1.msra.mxu0 0.0
        %2139 = vmatprep.subr.mxu0 0.0
        %2140 = vmatpush1.msra.mxu0 0.0
        %2141 = vmatprep.subr.mxu0 0.0
        %2142 = vmatpush1.msra.mxu0 0.0
        %2143 = vmatprep.subr.mxu0 0.0
        %2144 = vmatpush1.msra.mxu0 0.0
        %2145 = vmatprep.subr.mxu0 0.0
        %2146 = vmatpush1.msra.mxu0 0.0
        %2147 = vmatprep.subr.mxu0 0.0
        %2148 = vmatpush1.msra.mxu0 0.0
        %2149 = vmatprep.subr.mxu0 0.0
        %2150 = vmatpush1.msra.mxu0 0.0
        %2151 = vmatprep.subr.mxu0 0.0
        %2152 = vmatpush1.msra.mxu0 0.0
        %2153 = vmatprep.subr.mxu0 0.0
        %2154 = vmatpush1.msra.mxu0 0.0
        %2155 = vmatprep.subr.mxu0 0.0
        %2156 = vmatpush1.msra.mxu0 0.0
        %2157 = vmatprep.subr.mxu0 0.0
        %2158 = vmatpush1.msra.mxu0 0.0
        %2159 = vmatprep.subr.mxu0 0.0
        %2160 = vmatpush1.msra.mxu0 0.0
        %2161 = vmatprep.subr.mxu0 0.0
        %2162 = vmatpush1.msra.mxu0 0.0
        %2163 = vmatprep.subr.mxu0 0.0
        %2164 = vmatpush1.msra.mxu0 0.0
        %2165 = vmatprep.subr.mxu0 0.0
        %2166 = vmatpush1.msra.mxu0 0.0
        %2167 = vmatprep.subr.mxu0 0.0
        %2168 = vmatpush1.msra.mxu0 0.0
        %2169 = vmatprep.subr.mxu0 0.0
        %2170 = vmatpush1.msra.mxu0 0.0
        %2171 = vmatprep.subr.mxu0 0.0
        %2172 = vmatpush1.msra.mxu0 0.0
        %2173 = vmatprep.subr.mxu0 0.0
        %2174 = vmatpush1.msra.mxu0 0.0
        %2175 = vmatprep.subr.mxu0 0.0
        %2176 = vmatpush1.msra.mxu0 0.0
        %2177 = vmatprep.subr.mxu0 0.0
        %2178 = vmatpush1.msra.mxu0 0.0
        %2179 = vmatprep.subr.mxu0 0.0
        %2180 = vmatpush1.msra.mxu0 0.0
        %2181 = vmatprep.subr.mxu0 0.0
        %2182 = vmatpush1.msra.mxu0 0.0
        %2183 = vmatprep.subr.mxu0 0.0
        %2184 = vmatpush1.msra.mxu0 0.0
        %2185 = vmatprep.subr.mxu0 0.0
        %2186 = vmatpush1.msra.mxu0 0.0
        %2187 = vmatprep.subr.mxu0 0.0
        %2188 = vmatpush1.msra.mxu0 0.0
        %2189 = vmatprep.subr.mxu0 0.0
        %2190 = vmatpush1.msra.mxu0 0.0
        %2191 = vmatprep.mubr.f32.mxu0 0.0
        %2192 = vmatmul.mubr.f32.gmra.mrb[0].mxu0 %v2122
        %v2193 = vpop.f32.mrb[0].mxu0
        %v2194 = vadd.f32 0.0, %v2193
        %v2195 = vpop.f32.mrb[0].mxu0
        %v2196 = vadd.f32 0.0, %v2195
        %2197 = vmatprep.mubr.f32.mxu0 0.0
        %2198 = vmatmul.mubr.f32.gmra.mrb[0].mxu0 %v2125
        %v2199 = vpop.f32.mrb[0].mxu0
        %v2200 = vadd.f32 0.0, %v2199
        %v2201 = vpop.f32.mrb[0].mxu0
        %v2202 = vadd.f32 0.0, %v2201
        %2203 = vdwg.mxu0
        %v2204 = vadd.f32 %v2106, %v2194
        %v2205 = vadd.f32 %v2107, %v2196
        %v2206 = vadd.f32 %v2108, %v2200
        %v2207 = vadd.f32 %v2109, %v2202
        %s2208 = scalar_lea.vmem %s4, 64
        %v2209 = vld [vmem:[%s2208] sm:$0xff]
        %v2210 = vld [vmem:[%s2208 + $0x8] sm:$0xff]
        %2211 = vrot.lane.b32.xlu0 %v1548, 111
        %v2212 = vpop.permute.xlu0 %2211
        %2213 = vrot.lane.b32.xlu0 %v1550, 111
        %v2214 = vpop.permute.xlu0 %2213
        %vm2215 = vcmask 908288
        %v2216 = vsel %vm2215, %v2212, %v2214
        %v2220 = vsel %vm1846, %v2209, 0
        %v2223 = vsel %vm1846, %v2210, 0
        %2225 = vmatprep.subr.mxu0 %v2214
        %2226 = vmatpush1.msra.mxu0 %v2216
        %2227 = vmatprep.subr.mxu0 0.0
        %2228 = vmatpush1.msra.mxu0 0.0
        %2229 = vmatprep.subr.mxu0 0.0
        %2230 = vmatpush1.msra.mxu0 0.0
        %2231 = vmatprep.subr.mxu0 0.0
        %2232 = vmatpush1.msra.mxu0 0.0
        %2233 = vmatprep.subr.mxu0 0.0
        %2234 = vmatpush1.msra.mxu0 0.0
        %2235 = vmatprep.subr.mxu0 0.0
        %2236 = vmatpush1.msra.mxu0 0.0
        %2237 = vmatprep.subr.mxu0 0.0
        %2238 = vmatpush1.msra.mxu0 0.0
        %2239 = vmatprep.subr.mxu0 0.0
        %2240 = vmatpush1.msra.mxu0 0.0
        %2241 = vmatprep.subr.mxu0 0.0
        %2242 = vmatpush1.msra.mxu0 0.0
        %2243 = vmatprep.subr.mxu0 0.0
        %2244 = vmatpush1.msra.mxu0 0.0
        %2245 = vmatprep.subr.mxu0 0.0
        %2246 = vmatpush1.msra.mxu0 0.0
        %2247 = vmatprep.subr.mxu0 0.0
        %2248 = vmatpush1.msra.mxu0 0.0
        %2249 = vmatprep.subr.mxu0 0.0
        %2250 = vmatpush1.msra.mxu0 0.0
        %2251 = vmatprep.subr.mxu0 0.0
        %2252 = vmatpush1.msra.mxu0 0.0
        %2253 = vmatprep.subr.mxu0 0.0
        %2254 = vmatpush1.msra.mxu0 0.0
        %2255 = vmatprep.subr.mxu0 0.0
        %2256 = vmatpush1.msra.mxu0 0.0
        %2257 = vmatprep.subr.mxu0 0.0
        %2258 = vmatpush1.msra.mxu0 0.0
        %2259 = vmatprep.subr.mxu0 0.0
        %2260 = vmatpush1.msra.mxu0 0.0
        %2261 = vmatprep.subr.mxu0 0.0
        %2262 = vmatpush1.msra.mxu0 0.0
        %2263 = vmatprep.subr.mxu0 0.0
        %2264 = vmatpush1.msra.mxu0 0.0
        %2265 = vmatprep.subr.mxu0 0.0
        %2266 = vmatpush1.msra.mxu0 0.0
        %2267 = vmatprep.subr.mxu0 0.0
        %2268 = vmatpush1.msra.mxu0 0.0
        %2269 = vmatprep.subr.mxu0 0.0
        %2270 = vmatpush1.msra.mxu0 0.0
        %2271 = vmatprep.subr.mxu0 0.0
        %2272 = vmatpush1.msra.mxu0 0.0
        %2273 = vmatprep.subr.mxu0 0.0
        %2274 = vmatpush1.msra.mxu0 0.0
        %2275 = vmatprep.subr.mxu0 0.0
        %2276 = vmatpush1.msra.mxu0 0.0
        %2277 = vmatprep.subr.mxu0 0.0
        %2278 = vmatpush1.msra.mxu0 0.0
        %2279 = vmatprep.subr.mxu0 0.0
        %2280 = vmatpush1.msra.mxu0 0.0
        %2281 = vmatprep.subr.mxu0 0.0
        %2282 = vmatpush1.msra.mxu0 0.0
        %2283 = vmatprep.subr.mxu0 0.0
        %2284 = vmatpush1.msra.mxu0 0.0
        %2285 = vmatprep.subr.mxu0 0.0
        %2286 = vmatpush1.msra.mxu0 0.0
        %2287 = vmatprep.subr.mxu0 0.0
        %2288 = vmatpush1.msra.mxu0 0.0
        %2289 = vmatprep.mubr.f32.mxu0 0.0
        %2290 = vmatmul.mubr.f32.gmra.mrb[0].mxu0 %v2220
        %v2291 = vpop.f32.mrb[0].mxu0
        %v2292 = vadd.f32 0.0, %v2291
        %v2293 = vpop.f32.mrb[0].mxu0
        %v2294 = vadd.f32 0.0, %v2293
        %2295 = vmatprep.mubr.f32.mxu0 0.0
        %2296 = vmatmul.mubr.f32.gmra.mrb[0].mxu0 %v2223
        %v2297 = vpop.f32.mrb[0].mxu0
        %v2298 = vadd.f32 0.0, %v2297
        %v2299 = vpop.f32.mrb[0].mxu0
        %v2300 = vadd.f32 0.0, %v2299
        %2301 = vdwg.mxu0
        %v2302 = vadd.f32 %v2204, %v2292
        %v2303 = vadd.f32 %v2205, %v2294
        %v2304 = vadd.f32 %v2206, %v2298
        %v2305 = vadd.f32 %v2207, %v2300
        %s2306 = scalar_lea.vmem %s4, 80
        %v2307 = vld [vmem:[%s2306] sm:$0xff]
        %v2308 = vld [vmem:[%s2306 + $0x8] sm:$0xff]
        %2309 = vrot.lane.b32.xlu0 %v1548, 110
        %v2310 = vpop.permute.xlu0 %2309
        %2311 = vrot.lane.b32.xlu0 %v1550, 110
        %v2312 = vpop.permute.xlu0 %2311
        %vm2313 = vcmask 900096
        %v2314 = vsel %vm2313, %v2310, %v2312
        %v2318 = vsel %vm1846, %v2307, 0
        %v2321 = vsel %vm1846, %v2308, 0
        %2323 = vmatprep.subr.mxu0 %v2312
        %2324 = vmatpush1.msra.mxu0 %v2314
        %2325 = vmatprep.subr.mxu0 0.0
        %2326 = vmatpush1.msra.mxu0 0.0
        %2327 = vmatprep.subr.mxu0 0.0
        %2328 = vmatpush1.msra.mxu0 0.0
        %2329 = vmatprep.subr.mxu0 0.0
        %2330 = vmatpush1.msra.mxu0 0.0
        %2331 = vmatprep.subr.mxu0 0.0
        %2332 = vmatpush1.msra.mxu0 0.0
        %2333 = vmatprep.subr.mxu0 0.0
        %2334 = vmatpush1.msra.mxu0 0.0
        %2335 = vmatprep.subr.mxu0 0.0
        %2336 = vmatpush1.msra.mxu0 0.0
        %2337 = vmatprep.subr.mxu0 0.0
        %2338 = vmatpush1.msra.mxu0 0.0
        %2339 = vmatprep.subr.mxu0 0.0
        %2340 = vmatpush1.msra.mxu0 0.0
        %2341 = vmatprep.subr.mxu0 0.0
        %2342 = vmatpush1.msra.mxu0 0.0
        %2343 = vmatprep.subr.mxu0 0.0
        %2344 = vmatpush1.msra.mxu0 0.0
        %2345 = vmatprep.subr.mxu0 0.0
        %2346 = vmatpush1.msra.mxu0 0.0
        %2347 = vmatprep.subr.mxu0 0.0
        %2348 = vmatpush1.msra.mxu0 0.0
        %2349 = vmatprep.subr.mxu0 0.0
        %2350 = vmatpush1.msra.mxu0 0.0
        %2351 = vmatprep.subr.mxu0 0.0
        %2352 = vmatpush1.msra.mxu0 0.0
        %2353 = vmatprep.subr.mxu0 0.0
        %2354 = vmatpush1.msra.mxu0 0.0
        %2355 = vmatprep.subr.mxu0 0.0
        %2356 = vmatpush1.msra.mxu0 0.0
        %2357 = vmatprep.subr.mxu0 0.0
        %2358 = vmatpush1.msra.mxu0 0.0
        %2359 = vmatprep.subr.mxu0 0.0
        %2360 = vmatpush1.msra.mxu0 0.0
        %2361 = vmatprep.subr.mxu0 0.0
        %2362 = vmatpush1.msra.mxu0 0.0
        %2363 = vmatprep.subr.mxu0 0.0
        %2364 = vmatpush1.msra.mxu0 0.0
        %2365 = vmatprep.subr.mxu0 0.0
        %2366 = vmatpush1.msra.mxu0 0.0
        %2367 = vmatprep.subr.mxu0 0.0
        %2368 = vmatpush1.msra.mxu0 0.0
        %2369 = vmatprep.subr.mxu0 0.0
        %2370 = vmatpush1.msra.mxu0 0.0
        %2371 = vmatprep.subr.mxu0 0.0
        %2372 = vmatpush1.msra.mxu0 0.0
        %2373 = vmatprep.subr.mxu0 0.0
        %2374 = vmatpush1.msra.mxu0 0.0
        %2375 = vmatprep.subr.mxu0 0.0
        %2376 = vmatpush1.msra.mxu0 0.0
        %2377 = vmatprep.subr.mxu0 0.0
        %2378 = vmatpush1.msra.mxu0 0.0
        %2379 = vmatprep.subr.mxu0 0.0
        %2380 = vmatpush1.msra.mxu0 0.0
        %2381 = vmatprep.subr.mxu0 0.0
        %2382 = vmatpush1.msra.mxu0 0.0
        %2383 = vmatprep.subr.mxu0 0.0
        %2384 = vmatpush1.msra.mxu0 0.0
        %2385 = vmatprep.subr.mxu0 0.0
        %2386 = vmatpush1.msra.mxu0 0.0
        %2387 = vmatprep.mubr.f32.mxu0 0.0
        %2388 = vmatmul.mubr.f32.gmra.mrb[0].mxu0 %v2318
        %v2389 = vpop.f32.mrb[0].mxu0
        %v2390 = vadd.f32 0.0, %v2389
        %v2391 = vpop.f32.mrb[0].mxu0
        %v2392 = vadd.f32 0.0, %v2391
        %2393 = vmatprep.mubr.f32.mxu0 0.0
        %2394 = vmatmul.mubr.f32.gmra.mrb[0].mxu0 %v2321
        %v2395 = vpop.f32.mrb[0].mxu0
        %v2396 = vadd.f32 0.0, %v2395
        %v2397 = vpop.f32.mrb[0].mxu0
        %v2398 = vadd.f32 0.0, %v2397
        %2399 = vdwg.mxu0
        %v2400 = vadd.f32 %v2302, %v2390
        %v2401 = vadd.f32 %v2303, %v2392
        %v2402 = vadd.f32 %v2304, %v2396
        %v2403 = vadd.f32 %v2305, %v2398
        %s2404 = scalar_lea.vmem %s4, 96
        %v2405 = vld [vmem:[%s2404] sm:$0xff]
        %v2406 = vld [vmem:[%s2404 + $0x8] sm:$0xff]
        %2407 = vrot.lane.b32.xlu0 %v1548, 96
        %v2408 = vpop.permute.xlu0 %2407
        %2409 = vrot.lane.b32.xlu0 %v1550, 96
        %v2410 = vpop.permute.xlu0 %2409
        %v2411 = vsel %vm685, %v2408, %v2410
        %v2415 = vsel %vm1846, %v2405, 0
        %v2418 = vsel %vm1846, %v2406, 0
        %2420 = vmatprep.subr.mxu0 %v2410
        %2421 = vmatpush1.msra.mxu0 %v2411
        %2422 = vmatprep.subr.mxu0 0.0
        %2423 = vmatpush1.msra.mxu0 0.0
        %2424 = vmatprep.subr.mxu0 0.0
        %2425 = vmatpush1.msra.mxu0 0.0
        %2426 = vmatprep.subr.mxu0 0.0
        %2427 = vmatpush1.msra.mxu0 0.0
        %2428 = vmatprep.subr.mxu0 0.0
        %2429 = vmatpush1.msra.mxu0 0.0
        %2430 = vmatprep.subr.mxu0 0.0
        %2431 = vmatpush1.msra.mxu0 0.0
        %2432 = vmatprep.subr.mxu0 0.0
        %2433 = vmatpush1.msra.mxu0 0.0
        %2434 = vmatprep.subr.mxu0 0.0
        %2435 = vmatpush1.msra.mxu0 0.0
        %2436 = vmatprep.subr.mxu0 0.0
        %2437 = vmatpush1.msra.mxu0 0.0
        %2438 = vmatprep.subr.mxu0 0.0
        %2439 = vmatpush1.msra.mxu0 0.0
        %2440 = vmatprep.subr.mxu0 0.0
        %2441 = vmatpush1.msra.mxu0 0.0
        %2442 = vmatprep.subr.mxu0 0.0
        %2443 = vmatpush1.msra.mxu0 0.0
        %2444 = vmatprep.subr.mxu0 0.0
        %2445 = vmatpush1.msra.mxu0 0.0
        %2446 = vmatprep.subr.mxu0 0.0
        %2447 = vmatpush1.msra.mxu0 0.0
        %2448 = vmatprep.subr.mxu0 0.0
        %2449 = vmatpush1.msra.mxu0 0.0
        %2450 = vmatprep.subr.mxu0 0.0
        %2451 = vmatpush1.msra.mxu0 0.0
        %2452 = vmatprep.subr.mxu0 0.0
        %2453 = vmatpush1.msra.mxu0 0.0
        %2454 = vmatprep.subr.mxu0 0.0
        %2455 = vmatpush1.msra.mxu0 0.0
        %2456 = vmatprep.subr.mxu0 0.0
        %2457 = vmatpush1.msra.mxu0 0.0
        %2458 = vmatprep.subr.mxu0 0.0
        %2459 = vmatpush1.msra.mxu0 0.0
        %2460 = vmatprep.subr.mxu0 0.0
        %2461 = vmatpush1.msra.mxu0 0.0
        %2462 = vmatprep.subr.mxu0 0.0
        %2463 = vmatpush1.msra.mxu0 0.0
        %2464 = vmatprep.subr.mxu0 0.0
        %2465 = vmatpush1.msra.mxu0 0.0
        %2466 = vmatprep.subr.mxu0 0.0
        %2467 = vmatpush1.msra.mxu0 0.0
        %2468 = vmatprep.subr.mxu0 0.0
        %2469 = vmatpush1.msra.mxu0 0.0
        %2470 = vmatprep.subr.mxu0 0.0
        %2471 = vmatpush1.msra.mxu0 0.0
        %2472 = vmatprep.subr.mxu0 0.0
        %2473 = vmatpush1.msra.mxu0 0.0
        %2474 = vmatprep.subr.mxu0 0.0
        %2475 = vmatpush1.msra.mxu0 0.0
        %2476 = vmatprep.subr.mxu0 0.0
        %2477 = vmatpush1.msra.mxu0 0.0
        %2478 = vmatprep.subr.mxu0 0.0
        %2479 = vmatpush1.msra.mxu0 0.0
        %2480 = vmatprep.subr.mxu0 0.0
        %2481 = vmatpush1.msra.mxu0 0.0
        %2482 = vmatprep.subr.mxu0 0.0
        %2483 = vmatpush1.msra.mxu0 0.0
        %2484 = vmatprep.mubr.f32.mxu0 0.0
        %2485 = vmatmul.mubr.f32.gmra.mrb[0].mxu0 %v2415
        %v2486 = vpop.f32.mrb[0].mxu0
        %v2487 = vadd.f32 0.0, %v2486
        %v2488 = vpop.f32.mrb[0].mxu0
        %v2489 = vadd.f32 0.0, %v2488
        %2490 = vmatprep.mubr.f32.mxu0 0.0
        %2491 = vmatmul.mubr.f32.gmra.mrb[0].mxu0 %v2418
        %v2492 = vpop.f32.mrb[0].mxu0
        %v2493 = vadd.f32 0.0, %v2492
        %v2494 = vpop.f32.mrb[0].mxu0
        %v2495 = vadd.f32 0.0, %v2494
        %2496 = vdwg.mxu0
        %v2497 = vadd.f32 %v2400, %v2487
        %v2498 = vadd.f32 %v2401, %v2489
        %v2499 = vadd.f32 %v2402, %v2493
        %v2500 = vadd.f32 %v2403, %v2495
        %s2501 = scalar_lea.vmem %s4, 112
        %v2502 = vld [vmem:[%s2501] sm:$0xff]
        %v2503 = vld [vmem:[%s2501 + $0x8] sm:$0xff]
        %2505 = vrot.lane.b32.xlu0 %v1548, 95
        %v2506 = vpop.permute.xlu0 %2505
        %2507 = vrot.lane.b32.xlu0 %v1550, 95
        %v2508 = vpop.permute.xlu0 %2507
        %2509 = vrot.lane.b32.xlu0 %v1829, 95
        %v2510 = vpop.permute.xlu0 %2509
        %vm2511 = vcmask 777216
        %v2512 = vsel %vm2511, %v2506, %v2508
        %v2513 = vsel %vm2511, %v2508, %v2510
        %v2517 = vsel %vm1846, %v2502, 0
        %v2520 = vsel %vm1846, %v2503, 0
        %2522 = vmatprep.subr.mxu0 %v2513
        %2523 = vmatpush1.msra.mxu0 %v2512
        %2524 = vmatprep.subr.mxu0 0.0
        %2525 = vmatpush1.msra.mxu0 0.0
        %2526 = vmatprep.subr.mxu0 0.0
        %2527 = vmatpush1.msra.mxu0 0.0
        %2528 = vmatprep.subr.mxu0 0.0
        %2529 = vmatpush1.msra.mxu0 0.0
        %2530 = vmatprep.subr.mxu0 0.0
        %2531 = vmatpush1.msra.mxu0 0.0
        %2532 = vmatprep.subr.mxu0 0.0
        %2533 = vmatpush1.msra.mxu0 0.0
        %2534 = vmatprep.subr.mxu0 0.0
        %2535 = vmatpush1.msra.mxu0 0.0
        %2536 = vmatprep.subr.mxu0 0.0
        %2537 = vmatpush1.msra.mxu0 0.0
        %2538 = vmatprep.subr.mxu0 0.0
        %2539 = vmatpush1.msra.mxu0 0.0
        %2540 = vmatprep.subr.mxu0 0.0
        %2541 = vmatpush1.msra.mxu0 0.0
        %2542 = vmatprep.subr.mxu0 0.0
        %2543 = vmatpush1.msra.mxu0 0.0
        %2544 = vmatprep.subr.mxu0 0.0
        %2545 = vmatpush1.msra.mxu0 0.0
        %2546 = vmatprep.subr.mxu0 0.0
        %2547 = vmatpush1.msra.mxu0 0.0
        %2548 = vmatprep.subr.mxu0 0.0
        %2549 = vmatpush1.msra.mxu0 0.0
        %2550 = vmatprep.subr.mxu0 0.0
        %2551 = vmatpush1.msra.mxu0 0.0
        %2552 = vmatprep.subr.mxu0 0.0
        %2553 = vmatpush1.msra.mxu0 0.0
        %2554 = vmatprep.subr.mxu0 0.0
        %2555 = vmatpush1.msra.mxu0 0.0
        %2556 = vmatprep.subr.mxu0 0.0
        %2557 = vmatpush1.msra.mxu0 0.0
        %2558 = vmatprep.subr.mxu0 0.0
        %2559 = vmatpush1.msra.mxu0 0.0
        %2560 = vmatprep.subr.mxu0 0.0
        %2561 = vmatpush1.msra.mxu0 0.0
        %2562 = vmatprep.subr.mxu0 0.0
        %2563 = vmatpush1.msra.mxu0 0.0
        %2564 = vmatprep.subr.mxu0 0.0
        %2565 = vmatpush1.msra.mxu0 0.0
        %2566 = vmatprep.subr.mxu0 0.0
        %2567 = vmatpush1.msra.mxu0 0.0
        %2568 = vmatprep.subr.mxu0 0.0
        %2569 = vmatpush1.msra.mxu0 0.0
        %2570 = vmatprep.subr.mxu0 0.0
        %2571 = vmatpush1.msra.mxu0 0.0
        %2572 = vmatprep.subr.mxu0 0.0
        %2573 = vmatpush1.msra.mxu0 0.0
        %2574 = vmatprep.subr.mxu0 0.0
        %2575 = vmatpush1.msra.mxu0 0.0
        %2576 = vmatprep.subr.mxu0 0.0
        %2577 = vmatpush1.msra.mxu0 0.0
        %2578 = vmatprep.subr.mxu0 0.0
        %2579 = vmatpush1.msra.mxu0 0.0
        %2580 = vmatprep.subr.mxu0 0.0
        %2581 = vmatpush1.msra.mxu0 0.0
        %2582 = vmatprep.subr.mxu0 0.0
        %2583 = vmatpush1.msra.mxu0 0.0
        %2584 = vmatprep.subr.mxu0 0.0
        %2585 = vmatpush1.msra.mxu0 0.0
        %2586 = vmatprep.mubr.f32.mxu0 0.0
        %2587 = vmatmul.mubr.f32.gmra.mrb[0].mxu0 %v2517
        %v2588 = vpop.f32.mrb[0].mxu0
        %v2589 = vadd.f32 0.0, %v2588
        %v2590 = vpop.f32.mrb[0].mxu0
        %v2591 = vadd.f32 0.0, %v2590
        %2592 = vmatprep.mubr.f32.mxu0 0.0
        %2593 = vmatmul.mubr.f32.gmra.mrb[0].mxu0 %v2520
        %v2594 = vpop.f32.mrb[0].mxu0
        %v2595 = vadd.f32 0.0, %v2594
        %v2596 = vpop.f32.mrb[0].mxu0
        %v2597 = vadd.f32 0.0, %v2596
        %2598 = vdwg.mxu0
        %v2599 = vadd.f32 %v2497, %v2589
        %v2600 = vadd.f32 %v2498, %v2591
        %v2601 = vadd.f32 %v2499, %v2595
        %v2602 = vadd.f32 %v2500, %v2597
        %s2603 = scalar_lea.vmem %s4, 128
        %v2604 = vld [vmem:[%s2603] sm:$0xff]
        %v2605 = vld [vmem:[%s2603 + $0x8] sm:$0xff]
        %2606 = vrot.lane.b32.xlu0 %v1548, 94
        %v2607 = vpop.permute.xlu0 %2606
        %2608 = vrot.lane.b32.xlu0 %v1550, 94
        %v2609 = vpop.permute.xlu0 %2608
        %2610 = vrot.lane.b32.xlu0 %v1829, 94
        %v2611 = vpop.permute.xlu0 %2610
        %vm2612 = vcmask 769024
        %v2613 = vsel %vm2612, %v2607, %v2609
        %v2614 = vsel %vm2612, %v2609, %v2611
        %v2618 = vsel %vm1846, %v2604, 0
        %v2621 = vsel %vm1846, %v2605, 0
        %2623 = vmatprep.subr.mxu0 %v2614
        %2624 = vmatpush1.msra.mxu0 %v2613
        %2625 = vmatprep.subr.mxu0 0.0
        %2626 = vmatpush1.msra.mxu0 0.0
        %2627 = vmatprep.subr.mxu0 0.0
        %2628 = vmatpush1.msra.mxu0 0.0
        %2629 = vmatprep.subr.mxu0 0.0
        %2630 = vmatpush1.msra.mxu0 0.0
        %2631 = vmatprep.subr.mxu0 0.0
        %2632 = vmatpush1.msra.mxu0 0.0
        %2633 = vmatprep.subr.mxu0 0.0
        %2634 = vmatpush1.msra.mxu0 0.0
        %2635 = vmatprep.subr.mxu0 0.0
        %2636 = vmatpush1.msra.mxu0 0.0
        %2637 = vmatprep.subr.mxu0 0.0
        %2638 = vmatpush1.msra.mxu0 0.0
        %2639 = vmatprep.subr.mxu0 0.0
        %2640 = vmatpush1.msra.mxu0 0.0
        %2641 = vmatprep.subr.mxu0 0.0
        %2642 = vmatpush1.msra.mxu0 0.0
        %2643 = vmatprep.subr.mxu0 0.0
        %2644 = vmatpush1.msra.mxu0 0.0
        %2645 = vmatprep.subr.mxu0 0.0
        %2646 = vmatpush1.msra.mxu0 0.0
        %2647 = vmatprep.subr.mxu0 0.0
        %2648 = vmatpush1.msra.mxu0 0.0
        %2649 = vmatprep.subr.mxu0 0.0
        %2650 = vmatpush1.msra.mxu0 0.0
        %2651 = vmatprep.subr.mxu0 0.0
        %2652 = vmatpush1.msra.mxu0 0.0
        %2653 = vmatprep.subr.mxu0 0.0
        %2654 = vmatpush1.msra.mxu0 0.0
        %2655 = vmatprep.subr.mxu0 0.0
        %2656 = vmatpush1.msra.mxu0 0.0
        %2657 = vmatprep.subr.mxu0 0.0
        %2658 = vmatpush1.msra.mxu0 0.0
        %2659 = vmatprep.subr.mxu0 0.0
        %2660 = vmatpush1.msra.mxu0 0.0
        %2661 = vmatprep.subr.mxu0 0.0
        %2662 = vmatpush1.msra.mxu0 0.0
        %2663 = vmatprep.subr.mxu0 0.0
        %2664 = vmatpush1.msra.mxu0 0.0
        %2665 = vmatprep.subr.mxu0 0.0
        %2666 = vmatpush1.msra.mxu0 0.0
        %2667 = vmatprep.subr.mxu0 0.0
        %2668 = vmatpush1.msra.mxu0 0.0
        %2669 = vmatprep.subr.mxu0 0.0
        %2670 = vmatpush1.msra.mxu0 0.0
        %2671 = vmatprep.subr.mxu0 0.0
        %2672 = vmatpush1.msra.mxu0 0.0
        %2673 = vmatprep.subr.mxu0 0.0
        %2674 = vmatpush1.msra.mxu0 0.0
        %2675 = vmatprep.subr.mxu0 0.0
        %2676 = vmatpush1.msra.mxu0 0.0
        %2677 = vmatprep.subr.mxu0 0.0
        %2678 = vmatpush1.msra.mxu0 0.0
        %2679 = vmatprep.subr.mxu0 0.0
        %2680 = vmatpush1.msra.mxu0 0.0
        %2681 = vmatprep.subr.mxu0 0.0
        %2682 = vmatpush1.msra.mxu0 0.0
        %2683 = vmatprep.subr.mxu0 0.0
        %2684 = vmatpush1.msra.mxu0 0.0
        %2685 = vmatprep.subr.mxu0 0.0
        %2686 = vmatpush1.msra.mxu0 0.0
        %2687 = vmatprep.mubr.f32.mxu0 0.0
        %2688 = vmatmul.mubr.f32.gmra.mrb[0].mxu0 %v2618
        %v2689 = vpop.f32.mrb[0].mxu0
        %v2690 = vadd.f32 0.0, %v2689
        %v2691 = vpop.f32.mrb[0].mxu0
        %v2692 = vadd.f32 0.0, %v2691
        %2693 = vmatprep.mubr.f32.mxu0 0.0
        %2694 = vmatmul.mubr.f32.gmra.mrb[0].mxu0 %v2621
        %v2695 = vpop.f32.mrb[0].mxu0
        %v2696 = vadd.f32 0.0, %v2695
        %v2697 = vpop.f32.mrb[0].mxu0
        %v2698 = vadd.f32 0.0, %v2697
        %2699 = vdwg.mxu0
        %v2700 = vadd.f32 %v2599, %v2690
        %v2701 = vadd.f32 %v2600, %v2692
        %v2702 = vadd.f32 %v2601, %v2696
        %v2703 = vadd.f32 %v2602, %v2698
        %v2704 = vld [vmem:[%s5] sm:$0xff]
        %v2705 = vld [vmem:[%s5 + $0x8] sm:$0xff]
        %2707 = vset.pattern.permute.xlu0 0
        %2708 = vperm.xlu0 %2707, %v2704
        %v2709 = vpop.permute.xlu0 %2708
        %2712 = vset.pattern.permute.xlu0 0
        %2713 = vperm.xlu0 %2712, %v2705
        %v2714 = vpop.permute.xlu0 %2713
        %v2716 = vadd.f32 %v2700, %v2709
        %v2717 = vadd.f32 %v2701, %v2709
        %v2718 = vadd.f32 %v2702, %v2714
        %v2719 = vadd.f32 %v2703, %v2714
        %v2720 = vmax.f32 %v2716, 0.0
        %v2721 = vmax.f32 %v2717, 0.0
        %v2722 = vmax.f32 %v2718, 0.0
        %v2723 = vmax.f32 %v2719, 0.0
        %v2724 = vmul.f32 %v2720, -0.5
        %v2725 = vmul.f32 %v2721, -0.5
        %v2726 = vmul.f32 %v2722, -0.5
        %v2727 = vmul.f32 %v2723, -0.5
        %v2728 = vmul.f32 %v2724, %v2720
        %v2729 = vmul.f32 %v2725, %v2721
        %v2730 = vmul.f32 %v2726, %v2722
        %v2731 = vmul.f32 %v2727, %v2723
        %v2732 = vmul.f32 %v2728, 1.442695
        %v2733 = vpow.pop %v2732
        %v2734 = vmul.f32 %v2729, 1.442695
        %v2735 = vpow.pop %v2734
        %v2736 = vmul.f32 %v2730, 1.442695
        %v2737 = vpow.pop %v2736
        %v2738 = vmul.f32 %v2731, 1.442695
        %v2739 = vpow.pop %v2738
        %v2740 = vmul.f32 %v2733, %v2720
        %v2741 = vmul.f32 %v2735, %v2721
        %v2742 = vmul.f32 %v2737, %v2722
        %v2743 = vmul.f32 %v2739, %v2723
        %v2744 = vld [vmem:[%s6] sm:$0xff]
        %v2745 = vld [vmem:[%s6 + $0x8] sm:$0xff]
        %v2746 = vld [vmem:[%s6 + $0x10] sm:$0xff]
        %v2747 = vld [vmem:[%s6 + $0x18] sm:$0xff]
        %v2748 = vld [vmem:[%s6 + $0x20] sm:$0xff]
        %v2749 = vld [vmem:[%s6 + $0x28] sm:$0xff]
        %v2750 = vld [vmem:[%s6 + $0x30] sm:$0xff]
        %v2751 = vld [vmem:[%s6 + $0x38] sm:$0xff]
        %v2752 = vld [vmem:[%s6 + $0x40] sm:$0xff]
        %v2753 = vld [vmem:[%s6 + $0x48] sm:$0xff]
        %v2754 = vld [vmem:[%s6 + $0x50] sm:$0xff]
        %v2755 = vld [vmem:[%s6 + $0x58] sm:$0xff]
        %v2756 = vld [vmem:[%s6 + $0x60] sm:$0xff]
        %v2757 = vld [vmem:[%s6 + $0x68] sm:$0xff]
        %v2758 = vld [vmem:[%s6 + $0x70] sm:$0xff]
        %v2759 = vld [vmem:[%s6 + $0x78] sm:$0xff]
        %v2760 = vld [vmem:[%s6 + $0x80] sm:$0xff]
        %v2761 = vld [vmem:[%s6 + $0x88] sm:$0xff]
        %v2762 = vld [vmem:[%s6 + $0x90] sm:$0xff]
        %v2763 = vld [vmem:[%s6 + $0x98] sm:$0xff]
        %v2764 = vld [vmem:[%s6 + $0xa0] sm:$0xff]
        %v2765 = vld [vmem:[%s6 + $0xa8] sm:$0xff]
        %v2766 = vld [vmem:[%s6 + $0xb0] sm:$0xff]
        %v2767 = vld [vmem:[%s6 + $0xb8] sm:$0xff]
        %v2768 = vld [vmem:[%s6 + $0xc0] sm:$0xff]
        %v2769 = vld [vmem:[%s6 + $0xc8] sm:$0xff]
        %v2770 = vld [vmem:[%s6 + $0xd0] sm:$0xff]
        %v2771 = vld [vmem:[%s6 + $0xd8] sm:$0xff]
        %v2773 = vsel %vm685, %v2741, 0
        %v2776 = vsel %vm685, %v2743, 0
        %2778 = vmatprep.subr.mxu0 0.0
        %2779 = vmatpush1.msra.mxu0 %v2744
        %2780 = vmatprep.subr.mxu0 0.0
        %2781 = vmatpush1.msra.mxu0 %v2745
        %2782 = vmatprep.subr.mxu0 0.0
        %2783 = vmatpush1.msra.mxu0 %v2746
        %2784 = vmatprep.subr.mxu0 0.0
        %2785 = vmatpush1.msra.mxu0 %v2747
        %2786 = vmatprep.subr.mxu0 0.0
        %2787 = vmatpush1.msra.mxu0 %v2748
        %2788 = vmatprep.subr.mxu0 0.0
        %2789 = vmatpush1.msra.mxu0 %v2749
        %2790 = vmatprep.subr.mxu0 0.0
        %2791 = vmatpush1.msra.mxu0 %v2750
        %2792 = vmatprep.subr.mxu0 0.0
        %2793 = vmatpush1.msra.mxu0 %v2751
        %2794 = vmatprep.subr.mxu0 0.0
        %2795 = vmatpush1.msra.mxu0 %v2752
        %2796 = vmatprep.subr.mxu0 0.0
        %2797 = vmatpush1.msra.mxu0 %v2753
        %2798 = vmatprep.subr.mxu0 0.0
        %2799 = vmatpush1.msra.mxu0 %v2754
        %2800 = vmatprep.subr.mxu0 0.0
        %2801 = vmatpush1.msra.mxu0 %v2755
        %2802 = vmatprep.subr.mxu0 0.0
        %2803 = vmatpush1.msra.mxu0 %v2756
        %2804 = vmatprep.subr.mxu0 0.0
        %2805 = vmatpush1.msra.mxu0 %v2757
        %2806 = vmatprep.subr.mxu0 0.0
        %2807 = vmatpush1.msra.mxu0 %v2758
        %2808 = vmatprep.subr.mxu0 0.0
        %2809 = vmatpush1.msra.mxu0 %v2759
        %2810 = vmatprep.subr.mxu0 0.0
        %2811 = vmatpush1.msra.mxu0 %v2760
        %2812 = vmatprep.subr.mxu0 0.0
        %2813 = vmatpush1.msra.mxu0 %v2761
        %2814 = vmatprep.subr.mxu0 0.0
        %2815 = vmatpush1.msra.mxu0 %v2762
        %2816 = vmatprep.subr.mxu0 0.0
        %2817 = vmatpush1.msra.mxu0 %v2763
        %2818 = vmatprep.subr.mxu0 0.0
        %2819 = vmatpush1.msra.mxu0 %v2764
        %2820 = vmatprep.subr.mxu0 0.0
        %2821 = vmatpush1.msra.mxu0 %v2765
        %2822 = vmatprep.subr.mxu0 0.0
        %2823 = vmatpush1.msra.mxu0 %v2766
        %2824 = vmatprep.subr.mxu0 0.0
        %2825 = vmatpush1.msra.mxu0 %v2767
        %2826 = vmatprep.subr.mxu0 0.0
        %2827 = vmatpush1.msra.mxu0 %v2768
        %2828 = vmatprep.subr.mxu0 0.0
        %2829 = vmatpush1.msra.mxu0 %v2769
        %2830 = vmatprep.subr.mxu0 0.0
        %2831 = vmatpush1.msra.mxu0 %v2770
        %2832 = vmatprep.subr.mxu0 0.0
        %2833 = vmatpush1.msra.mxu0 %v2771
        %2834 = vmatprep.subr.mxu0 0.0
        %2835 = vmatpush1.msra.mxu0 0.0
        %2836 = vmatprep.subr.mxu0 0.0
        %2837 = vmatpush1.msra.mxu0 0.0
        %2838 = vmatprep.subr.mxu0 0.0
        %2839 = vmatpush1.msra.mxu0 0.0
        %2840 = vmatprep.subr.mxu0 0.0
        %2841 = vmatpush1.msra.mxu0 0.0
        %2842 = vmatprep.mubr.f32.mxu0 %v2773
        %2843 = vmatmul.mubr.f32.gmra.mrb[0].mxu0 %v2740
        %v2844 = vpop.f32.mrb[0].mxu0
        %v2845 = vadd.f32 0.0, %v2844
        %v2846 = vpop.f32.mrb[0].mxu0
        %2847 = vmatprep.mubr.f32.mxu0 %v2776
        %2848 = vmatmul.mubr.f32.gmra.mrb[0].mxu0 %v2742
        %v2849 = vpop.f32.mrb[0].mxu0
        %v2850 = vadd.f32 0.0, %v2849
        %v2851 = vpop.f32.mrb[0].mxu0
        %2852 = vdwg.mxu0
        %v2853 = vld [vmem:[#allocation7] sm:$0x1]
        %v2854 = vld [vmem:[#allocation5] sm:$0xff]
        %v2855 = vld [vmem:[#allocation5 + $0x8] sm:$0xff]
        %v2856 = vld [vmem:[#allocation5 + $0x10] sm:$0xff]
        %v2857 = vld [vmem:[#allocation5 + $0x18] sm:$0xff]
        %v2858 = vld [vmem:[#allocation5 + $0x20] sm:$0xff]
        %v2859 = vld [vmem:[#allocation5 + $0x28] sm:$0xff]
        %v2860 = vld [vmem:[#allocation5 + $0x30] sm:$0xff]
        %v2861 = vld [vmem:[#allocation5 + $0x38] sm:$0xff]
        %vm2862 = vcmask 523264
        %v2864 = vsel %vm2862, %v2845, 0
        %2866 = vmatprep.subr.mxu0 0.0
        %2867 = vmatpush1.msra.mxu0 %v2854
        %2868 = vmatprep.subr.mxu0 0.0
        %2869 = vmatpush1.msra.mxu0 %v2855
        %2870 = vmatprep.subr.mxu0 0.0
        %2871 = vmatpush1.msra.mxu0 %v2856
        %2872 = vmatprep.subr.mxu0 0.0
        %2873 = vmatpush1.msra.mxu0 %v2857
        %2874 = vmatprep.subr.mxu0 0.0
        %2875 = vmatpush1.msra.mxu0 %v2858
        %2876 = vmatprep.subr.mxu0 0.0
        %2877 = vmatpush1.msra.mxu0 %v2859
        %2878 = vmatprep.subr.mxu0 0.0
        %2879 = vmatpush1.msra.mxu0 %v2860
        %2880 = vmatprep.subr.mxu0 0.0
        %2881 = vmatpush1.msra.mxu0 %v2861
        %2882 = vmatprep.subr.mxu0 0.0
        %2883 = vmatpush1.msra.mxu0 0.0
        %2884 = vmatprep.subr.mxu0 0.0
        %2885 = vmatpush1.msra.mxu0 0.0
        %2886 = vmatprep.subr.mxu0 0.0
        %2887 = vmatpush1.msra.mxu0 0.0
        %2888 = vmatprep.subr.mxu0 0.0
        %2889 = vmatpush1.msra.mxu0 0.0
        %2890 = vmatprep.subr.mxu0 0.0
        %2891 = vmatpush1.msra.mxu0 0.0
        %2892 = vmatprep.subr.mxu0 0.0
        %2893 = vmatpush1.msra.mxu0 0.0
        %2894 = vmatprep.subr.mxu0 0.0
        %2895 = vmatpush1.msra.mxu0 0.0
        %2896 = vmatprep.subr.mxu0 0.0
        %2897 = vmatpush1.msra.mxu0 0.0
        %2898 = vmatprep.subr.mxu0 0.0
        %2899 = vmatpush1.msra.mxu0 0.0
        %2900 = vmatprep.subr.mxu0 0.0
        %2901 = vmatpush1.msra.mxu0 0.0
        %2902 = vmatprep.subr.mxu0 0.0
        %2903 = vmatpush1.msra.mxu0 0.0
        %2904 = vmatprep.subr.mxu0 0.0
        %2905 = vmatpush1.msra.mxu0 0.0
        %2906 = vmatprep.subr.mxu0 0.0
        %2907 = vmatpush1.msra.mxu0 0.0
        %2908 = vmatprep.subr.mxu0 0.0
        %2909 = vmatpush1.msra.mxu0 0.0
        %2910 = vmatprep.subr.mxu0 0.0
        %2911 = vmatpush1.msra.mxu0 0.0
        %2912 = vmatprep.subr.mxu0 0.0
        %2913 = vmatpush1.msra.mxu0 0.0
        %2914 = vmatprep.subr.mxu0 0.0
        %2915 = vmatpush1.msra.mxu0 0.0
        %2916 = vmatprep.subr.mxu0 0.0
        %2917 = vmatpush1.msra.mxu0 0.0
        %2918 = vmatprep.subr.mxu0 0.0
        %2919 = vmatpush1.msra.mxu0 0.0
        %2920 = vmatprep.subr.mxu0 0.0
        %2921 = vmatpush1.msra.mxu0 0.0
        %2922 = vmatprep.subr.mxu0 0.0
        %2923 = vmatpush1.msra.mxu0 0.0
        %2924 = vmatprep.subr.mxu0 0.0
        %2925 = vmatpush1.msra.mxu0 0.0
        %2926 = vmatprep.subr.mxu0 0.0
        %2927 = vmatpush1.msra.mxu0 0.0
        %2928 = vmatprep.subr.mxu0 0.0
        %2929 = vmatpush1.msra.mxu0 0.0
        %2930 = vmatprep.mubr.f32.mxu0 0.0
        %2931 = vmatmul.mubr.f32.gmra.mrb[0].mxu0 %v2864
        %v2932 = vpop.f32.mrb[0].mxu0
        %v2933 = vadd.f32 0.0, %v2932
        %v2934 = vpop.f32.mrb[0].mxu0
        %2935 = vdwg.mxu0
        %v2936 = vadd.f32 %v2853, %v2933
        %s2937 = scalar_lea.vmem [#allocation5], 64
        %v2938 = vld [vmem:[%s2937] sm:$0xff]
        %v2939 = vld [vmem:[%s2937 + $0x8] sm:$0xff]
        %v2940 = vld [vmem:[%s2937 + $0x10] sm:$0xff]
        %v2941 = vld [vmem:[%s2937 + $0x18] sm:$0xff]
        %v2942 = vld [vmem:[%s2937 + $0x20] sm:$0xff]
        %v2943 = vld [vmem:[%s2937 + $0x28] sm:$0xff]
        %v2944 = vld [vmem:[%s2937 + $0x30] sm:$0xff]
        %v2945 = vld [vmem:[%s2937 + $0x38] sm:$0xff]
        %v2946 = vrot.slane %v2845, 1
        %v2947 = vsel %vm2862, %v2946, 0
        %2949 = vmatprep.subr.mxu0 0.0
        %2950 = vmatpush1.msra.mxu0 %v2938
        %2951 = vmatprep.subr.mxu0 0.0
        %2952 = vmatpush1.msra.mxu0 %v2939
        %2953 = vmatprep.subr.mxu0 0.0
        %2954 = vmatpush1.msra.mxu0 %v2940
        %2955 = vmatprep.subr.mxu0 0.0
        %2956 = vmatpush1.msra.mxu0 %v2941
        %2957 = vmatprep.subr.mxu0 0.0
        %2958 = vmatpush1.msra.mxu0 %v2942
        %2959 = vmatprep.subr.mxu0 0.0
        %2960 = vmatpush1.msra.mxu0 %v2943
        %2961 = vmatprep.subr.mxu0 0.0
        %2962 = vmatpush1.msra.mxu0 %v2944
        %2963 = vmatprep.subr.mxu0 0.0
        %2964 = vmatpush1.msra.mxu0 %v2945
        %2965 = vmatprep.subr.mxu0 0.0
        %2966 = vmatpush1.msra.mxu0 0.0
        %2967 = vmatprep.subr.mxu0 0.0
        %2968 = vmatpush1.msra.mxu0 0.0
        %2969 = vmatprep.subr.mxu0 0.0
        %2970 = vmatpush1.msra.mxu0 0.0
        %2971 = vmatprep.subr.mxu0 0.0
        %2972 = vmatpush1.msra.mxu0 0.0
        %2973 = vmatprep.subr.mxu0 0.0
        %2974 = vmatpush1.msra.mxu0 0.0
        %2975 = vmatprep.subr.mxu0 0.0
        %2976 = vmatpush1.msra.mxu0 0.0
        %2977 = vmatprep.subr.mxu0 0.0
        %2978 = vmatpush1.msra.mxu0 0.0
        %2979 = vmatprep.subr.mxu0 0.0
        %2980 = vmatpush1.msra.mxu0 0.0
        %2981 = vmatprep.subr.mxu0 0.0
        %2982 = vmatpush1.msra.mxu0 0.0
        %2983 = vmatprep.subr.mxu0 0.0
        %2984 = vmatpush1.msra.mxu0 0.0
        %2985 = vmatprep.subr.mxu0 0.0
        %2986 = vmatpush1.msra.mxu0 0.0
        %2987 = vmatprep.subr.mxu0 0.0
        %2988 = vmatpush1.msra.mxu0 0.0
        %2989 = vmatprep.subr.mxu0 0.0
        %2990 = vmatpush1.msra.mxu0 0.0
        %2991 = vmatprep.subr.mxu0 0.0
        %2992 = vmatpush1.msra.mxu0 0.0
        %2993 = vmatprep.subr.mxu0 0.0
        %2994 = vmatpush1.msra.mxu0 0.0
        %2995 = vmatprep.subr.mxu0 0.0
        %2996 = vmatpush1.msra.mxu0 0.0
        %2997 = vmatprep.subr.mxu0 0.0
        %2998 = vmatpush1.msra.mxu0 0.0
        %2999 = vmatprep.subr.mxu0 0.0
        %3000 = vmatpush1.msra.mxu0 0.0
        %3001 = vmatprep.subr.mxu0 0.0
        %3002 = vmatpush1.msra.mxu0 0.0
        %3003 = vmatprep.subr.mxu0 0.0
        %3004 = vmatpush1.msra.mxu0 0.0
        %3005 = vmatprep.subr.mxu0 0.0
        %3006 = vmatpush1.msra.mxu0 0.0
        %3007 = vmatprep.subr.mxu0 0.0
        %3008 = vmatpush1.msra.mxu0 0.0
        %3009 = vmatprep.subr.mxu0 0.0
        %3010 = vmatpush1.msra.mxu0 0.0
        %3011 = vmatprep.subr.mxu0 0.0
        %3012 = vmatpush1.msra.mxu0 0.0
        %3013 = vmatprep.mubr.f32.mxu0 0.0
        %3014 = vmatmul.mubr.f32.gmra.mrb[0].mxu0 %v2947
        %v3015 = vpop.f32.mrb[0].mxu0
        %v3016 = vadd.f32 0.0, %v3015
        %v3017 = vpop.f32.mrb[0].mxu0
        %3018 = vdwg.mxu0
        %v3019 = vadd.f32 %v2936, %v3016
        %s3020 = scalar_lea.vmem [#allocation5], 128
        %v3021 = vld [vmem:[%s3020] sm:$0xff]
        %v3022 = vld [vmem:[%s3020 + $0x8] sm:$0xff]
        %v3023 = vld [vmem:[%s3020 + $0x10] sm:$0xff]
        %v3024 = vld [vmem:[%s3020 + $0x18] sm:$0xff]
        %v3025 = vld [vmem:[%s3020 + $0x20] sm:$0xff]
        %v3026 = vld [vmem:[%s3020 + $0x28] sm:$0xff]
        %v3027 = vld [vmem:[%s3020 + $0x30] sm:$0xff]
        %v3028 = vld [vmem:[%s3020 + $0x38] sm:$0xff]
        %v3029 = vrot.slane %v2845, 2
        %v3030 = vsel %vm2862, %v3029, 0
        %3032 = vmatprep.subr.mxu0 0.0
        %3033 = vmatpush1.msra.mxu0 %v3021
        %3034 = vmatprep.subr.mxu0 0.0
        %3035 = vmatpush1.msra.mxu0 %v3022
        %3036 = vmatprep.subr.mxu0 0.0
        %3037 = vmatpush1.msra.mxu0 %v3023
        %3038 = vmatprep.subr.mxu0 0.0
        %3039 = vmatpush1.msra.mxu0 %v3024
        %3040 = vmatprep.subr.mxu0 0.0
        %3041 = vmatpush1.msra.mxu0 %v3025
        %3042 = vmatprep.subr.mxu0 0.0
        %3043 = vmatpush1.msra.mxu0 %v3026
        %3044 = vmatprep.subr.mxu0 0.0
        %3045 = vmatpush1.msra.mxu0 %v3027
        %3046 = vmatprep.subr.mxu0 0.0
        %3047 = vmatpush1.msra.mxu0 %v3028
        %3048 = vmatprep.subr.mxu0 0.0
        %3049 = vmatpush1.msra.mxu0 0.0
        %3050 = vmatprep.subr.mxu0 0.0
        %3051 = vmatpush1.msra.mxu0 0.0
        %3052 = vmatprep.subr.mxu0 0.0
        %3053 = vmatpush1.msra.mxu0 0.0
        %3054 = vmatprep.subr.mxu0 0.0
        %3055 = vmatpush1.msra.mxu0 0.0
        %3056 = vmatprep.subr.mxu0 0.0
        %3057 = vmatpush1.msra.mxu0 0.0
        %3058 = vmatprep.subr.mxu0 0.0
        %3059 = vmatpush1.msra.mxu0 0.0
        %3060 = vmatprep.subr.mxu0 0.0
        %3061 = vmatpush1.msra.mxu0 0.0
        %3062 = vmatprep.subr.mxu0 0.0
        %3063 = vmatpush1.msra.mxu0 0.0
        %3064 = vmatprep.subr.mxu0 0.0
        %3065 = vmatpush1.msra.mxu0 0.0
        %3066 = vmatprep.subr.mxu0 0.0
        %3067 = vmatpush1.msra.mxu0 0.0
        %3068 = vmatprep.subr.mxu0 0.0
        %3069 = vmatpush1.msra.mxu0 0.0
        %3070 = vmatprep.subr.mxu0 0.0
        %3071 = vmatpush1.msra.mxu0 0.0
        %3072 = vmatprep.subr.mxu0 0.0
        %3073 = vmatpush1.msra.mxu0 0.0
        %3074 = vmatprep.subr.mxu0 0.0
        %3075 = vmatpush1.msra.mxu0 0.0
        %3076 = vmatprep.subr.mxu0 0.0
        %3077 = vmatpush1.msra.mxu0 0.0
        %3078 = vmatprep.subr.mxu0 0.0
        %3079 = vmatpush1.msra.mxu0 0.0
        %3080 = vmatprep.subr.mxu0 0.0
        %3081 = vmatpush1.msra.mxu0 0.0
        %3082 = vmatprep.subr.mxu0 0.0
        %3083 = vmatpush1.msra.mxu0 0.0
        %3084 = vmatprep.subr.mxu0 0.0
        %3085 = vmatpush1.msra.mxu0 0.0
        %3086 = vmatprep.subr.mxu0 0.0
        %3087 = vmatpush1.msra.mxu0 0.0
        %3088 = vmatprep.subr.mxu0 0.0
        %3089 = vmatpush1.msra.mxu0 0.0
        %3090 = vmatprep.subr.mxu0 0.0
        %3091 = vmatpush1.msra.mxu0 0.0
        %3092 = vmatprep.subr.mxu0 0.0
        %3093 = vmatpush1.msra.mxu0 0.0
        %3094 = vmatprep.subr.mxu0 0.0
        %3095 = vmatpush1.msra.mxu0 0.0
        %3096 = vmatprep.mubr.f32.mxu0 0.0
        %3097 = vmatmul.mubr.f32.gmra.mrb[0].mxu0 %v3030
        %v3098 = vpop.f32.mrb[0].mxu0
        %v3099 = vadd.f32 0.0, %v3098
        %v3100 = vpop.f32.mrb[0].mxu0
        %3101 = vdwg.mxu0
        %v3102 = vadd.f32 %v3019, %v3099
        %s3103 = scalar_lea.vmem [#allocation5], 192
        %v3104 = vld [vmem:[%s3103] sm:$0xff]
        %v3105 = vld [vmem:[%s3103 + $0x8] sm:$0xff]
        %v3106 = vld [vmem:[%s3103 + $0x10] sm:$0xff]
        %v3107 = vld [vmem:[%s3103 + $0x18] sm:$0xff]
        %v3108 = vld [vmem:[%s3103 + $0x20] sm:$0xff]
        %v3109 = vld [vmem:[%s3103 + $0x28] sm:$0xff]
        %v3110 = vld [vmem:[%s3103 + $0x30] sm:$0xff]
        %v3111 = vld [vmem:[%s3103 + $0x38] sm:$0xff]
        %v3112 = vrot.slane %v2845, 3
        %v3113 = vsel %vm2862, %v3112, 0
        %3115 = vmatprep.subr.mxu0 0.0
        %3116 = vmatpush1.msra.mxu0 %v3104
        %3117 = vmatprep.subr.mxu0 0.0
        %3118 = vmatpush1.msra.mxu0 %v3105
        %3119 = vmatprep.subr.mxu0 0.0
        %3120 = vmatpush1.msra.mxu0 %v3106
        %3121 = vmatprep.subr.mxu0 0.0
        %3122 = vmatpush1.msra.mxu0 %v3107
        %3123 = vmatprep.subr.mxu0 0.0
        %3124 = vmatpush1.msra.mxu0 %v3108
        %3125 = vmatprep.subr.mxu0 0.0
        %3126 = vmatpush1.msra.mxu0 %v3109
        %3127 = vmatprep.subr.mxu0 0.0
        %3128 = vmatpush1.msra.mxu0 %v3110
        %3129 = vmatprep.subr.mxu0 0.0
        %3130 = vmatpush1.msra.mxu0 %v3111
        %3131 = vmatprep.subr.mxu0 0.0
        %3132 = vmatpush1.msra.mxu0 0.0
        %3133 = vmatprep.subr.mxu0 0.0
        %3134 = vmatpush1.msra.mxu0 0.0
        %3135 = vmatprep.subr.mxu0 0.0
        %3136 = vmatpush1.msra.mxu0 0.0
        %3137 = vmatprep.subr.mxu0 0.0
        %3138 = vmatpush1.msra.mxu0 0.0
        %3139 = vmatprep.subr.mxu0 0.0
        %3140 = vmatpush1.msra.mxu0 0.0
        %3141 = vmatprep.subr.mxu0 0.0
        %3142 = vmatpush1.msra.mxu0 0.0
        %3143 = vmatprep.subr.mxu0 0.0
        %3144 = vmatpush1.msra.mxu0 0.0
        %3145 = vmatprep.subr.mxu0 0.0
        %3146 = vmatpush1.msra.mxu0 0.0
        %3147 = vmatprep.subr.mxu0 0.0
        %3148 = vmatpush1.msra.mxu0 0.0
        %3149 = vmatprep.subr.mxu0 0.0
        %3150 = vmatpush1.msra.mxu0 0.0
        %3151 = vmatprep.subr.mxu0 0.0
        %3152 = vmatpush1.msra.mxu0 0.0
        %3153 = vmatprep.subr.mxu0 0.0
        %3154 = vmatpush1.msra.mxu0 0.0
        %3155 = vmatprep.subr.mxu0 0.0
        %3156 = vmatpush1.msra.mxu0 0.0
        %3157 = vmatprep.subr.mxu0 0.0
        %3158 = vmatpush1.msra.mxu0 0.0
        %3159 = vmatprep.subr.mxu0 0.0
        %3160 = vmatpush1.msra.mxu0 0.0
        %3161 = vmatprep.subr.mxu0 0.0
        %3162 = vmatpush1.msra.mxu0 0.0
        %3163 = vmatprep.subr.mxu0 0.0
        %3164 = vmatpush1.msra.mxu0 0.0
        %3165 = vmatprep.subr.mxu0 0.0
        %3166 = vmatpush1.msra.mxu0 0.0
        %3167 = vmatprep.subr.mxu0 0.0
        %3168 = vmatpush1.msra.mxu0 0.0
        %3169 = vmatprep.subr.mxu0 0.0
        %3170 = vmatpush1.msra.mxu0 0.0
        %3171 = vmatprep.subr.mxu0 0.0
        %3172 = vmatpush1.msra.mxu0 0.0
        %3173 = vmatprep.subr.mxu0 0.0
        %3174 = vmatpush1.msra.mxu0 0.0
        %3175 = vmatprep.subr.mxu0 0.0
        %3176 = vmatpush1.msra.mxu0 0.0
        %3177 = vmatprep.subr.mxu0 0.0
        %3178 = vmatpush1.msra.mxu0 0.0
        %3179 = vmatprep.mubr.f32.mxu0 0.0
        %3180 = vmatmul.mubr.f32.gmra.mrb[0].mxu0 %v3113
        %v3181 = vpop.f32.mrb[0].mxu0
        %v3182 = vadd.f32 0.0, %v3181
        %v3183 = vpop.f32.mrb[0].mxu0
        %3184 = vdwg.mxu0
        %v3185 = vadd.f32 %v3102, %v3182
        %s3186 = scalar_lea.vmem [#allocation5], 256
        %v3187 = vld [vmem:[%s3186] sm:$0xff]
        %v3188 = vld [vmem:[%s3186 + $0x8] sm:$0xff]
        %v3189 = vld [vmem:[%s3186 + $0x10] sm:$0xff]
        %v3190 = vld [vmem:[%s3186 + $0x18] sm:$0xff]
        %v3191 = vld [vmem:[%s3186 + $0x20] sm:$0xff]
        %v3192 = vld [vmem:[%s3186 + $0x28] sm:$0xff]
        %v3193 = vld [vmem:[%s3186 + $0x30] sm:$0xff]
        %v3194 = vld [vmem:[%s3186 + $0x38] sm:$0xff]
        %v3195 = vrot.slane %v2845, 4
        %v3196 = vsel %vm2862, %v3195, 0
        %3198 = vmatprep.subr.mxu0 0.0
        %3199 = vmatpush1.msra.mxu0 %v3187
        %3200 = vmatprep.subr.mxu0 0.0
        %3201 = vmatpush1.msra.mxu0 %v3188
        %3202 = vmatprep.subr.mxu0 0.0
        %3203 = vmatpush1.msra.mxu0 %v3189
        %3204 = vmatprep.subr.mxu0 0.0
        %3205 = vmatpush1.msra.mxu0 %v3190
        %3206 = vmatprep.subr.mxu0 0.0
        %3207 = vmatpush1.msra.mxu0 %v3191
        %3208 = vmatprep.subr.mxu0 0.0
        %3209 = vmatpush1.msra.mxu0 %v3192
        %3210 = vmatprep.subr.mxu0 0.0
        %3211 = vmatpush1.msra.mxu0 %v3193
        %3212 = vmatprep.subr.mxu0 0.0
        %3213 = vmatpush1.msra.mxu0 %v3194
        %3214 = vmatprep.subr.mxu0 0.0
        %3215 = vmatpush1.msra.mxu0 0.0
        %3216 = vmatprep.subr.mxu0 0.0
        %3217 = vmatpush1.msra.mxu0 0.0
        %3218 = vmatprep.subr.mxu0 0.0
        %3219 = vmatpush1.msra.mxu0 0.0
        %3220 = vmatprep.subr.mxu0 0.0
        %3221 = vmatpush1.msra.mxu0 0.0
        %3222 = vmatprep.subr.mxu0 0.0
        %3223 = vmatpush1.msra.mxu0 0.0
        %3224 = vmatprep.subr.mxu0 0.0
        %3225 = vmatpush1.msra.mxu0 0.0
        %3226 = vmatprep.subr.mxu0 0.0
        %3227 = vmatpush1.msra.mxu0 0.0
        %3228 = vmatprep.subr.mxu0 0.0
        %3229 = vmatpush1.msra.mxu0 0.0
        %3230 = vmatprep.subr.mxu0 0.0
        %3231 = vmatpush1.msra.mxu0 0.0
        %3232 = vmatprep.subr.mxu0 0.0
        %3233 = vmatpush1.msra.mxu0 0.0
        %3234 = vmatprep.subr.mxu0 0.0
        %3235 = vmatpush1.msra.mxu0 0.0
        %3236 = vmatprep.subr.mxu0 0.0
        %3237 = vmatpush1.msra.mxu0 0.0
        %3238 = vmatprep.subr.mxu0 0.0
        %3239 = vmatpush1.msra.mxu0 0.0
        %3240 = vmatprep.subr.mxu0 0.0
        %3241 = vmatpush1.msra.mxu0 0.0
        %3242 = vmatprep.subr.mxu0 0.0
        %3243 = vmatpush1.msra.mxu0 0.0
        %3244 = vmatprep.subr.mxu0 0.0
        %3245 = vmatpush1.msra.mxu0 0.0
        %3246 = vmatprep.subr.mxu0 0.0
        %3247 = vmatpush1.msra.mxu0 0.0
        %3248 = vmatprep.subr.mxu0 0.0
        %3249 = vmatpush1.msra.mxu0 0.0
        %3250 = vmatprep.subr.mxu0 0.0
        %3251 = vmatpush1.msra.mxu0 0.0
        %3252 = vmatprep.subr.mxu0 0.0
        %3253 = vmatpush1.msra.mxu0 0.0
        %3254 = vmatprep.subr.mxu0 0.0
        %3255 = vmatpush1.msra.mxu0 0.0
        %3256 = vmatprep.subr.mxu0 0.0
        %3257 = vmatpush1.msra.mxu0 0.0
        %3258 = vmatprep.subr.mxu0 0.0
        %3259 = vmatpush1.msra.mxu0 0.0
        %3260 = vmatprep.subr.mxu0 0.0
        %3261 = vmatpush1.msra.mxu0 0.0
        %3262 = vmatprep.mubr.f32.mxu0 0.0
        %3263 = vmatmul.mubr.f32.gmra.mrb[0].mxu0 %v3196
        %v3264 = vpop.f32.mrb[0].mxu0
        %v3265 = vadd.f32 0.0, %v3264
        %v3266 = vpop.f32.mrb[0].mxu0
        %3267 = vdwg.mxu0
        %v3268 = vadd.f32 %v3185, %v3265
        %s3269 = scalar_lea.vmem [#allocation5], 320
        %v3270 = vld [vmem:[%s3269] sm:$0xff]
        %v3271 = vld [vmem:[%s3269 + $0x8] sm:$0xff]
        %v3272 = vld [vmem:[%s3269 + $0x10] sm:$0xff]
        %v3273 = vld [vmem:[%s3269 + $0x18] sm:$0xff]
        %v3274 = vld [vmem:[%s3269 + $0x20] sm:$0xff]
        %v3275 = vld [vmem:[%s3269 + $0x28] sm:$0xff]
        %v3276 = vld [vmem:[%s3269 + $0x30] sm:$0xff]
        %v3277 = vld [vmem:[%s3269 + $0x38] sm:$0xff]
        %v3278 = vrot.slane %v2845, 5
        %v3279 = vsel %vm2862, %v3278, 0
        %3281 = vmatprep.subr.mxu0 0.0
        %3282 = vmatpush1.msra.mxu0 %v3270
        %3283 = vmatprep.subr.mxu0 0.0
        %3284 = vmatpush1.msra.mxu0 %v3271
        %3285 = vmatprep.subr.mxu0 0.0
        %3286 = vmatpush1.msra.mxu0 %v3272
        %3287 = vmatprep.subr.mxu0 0.0
        %3288 = vmatpush1.msra.mxu0 %v3273
        %3289 = vmatprep.subr.mxu0 0.0
        %3290 = vmatpush1.msra.mxu0 %v3274
        %3291 = vmatprep.subr.mxu0 0.0
        %3292 = vmatpush1.msra.mxu0 %v3275
        %3293 = vmatprep.subr.mxu0 0.0
        %3294 = vmatpush1.msra.mxu0 %v3276
        %3295 = vmatprep.subr.mxu0 0.0
        %3296 = vmatpush1.msra.mxu0 %v3277
        %3297 = vmatprep.subr.mxu0 0.0
        %3298 = vmatpush1.msra.mxu0 0.0
        %3299 = vmatprep.subr.mxu0 0.0
        %3300 = vmatpush1.msra.mxu0 0.0
        %3301 = vmatprep.subr.mxu0 0.0
        %3302 = vmatpush1.msra.mxu0 0.0
        %3303 = vmatprep.subr.mxu0 0.0
        %3304 = vmatpush1.msra.mxu0 0.0
        %3305 = vmatprep.subr.mxu0 0.0
        %3306 = vmatpush1.msra.mxu0 0.0
        %3307 = vmatprep.subr.mxu0 0.0
        %3308 = vmatpush1.msra.mxu0 0.0
        %3309 = vmatprep.subr.mxu0 0.0
        %3310 = vmatpush1.msra.mxu0 0.0
        %3311 = vmatprep.subr.mxu0 0.0
        %3312 = vmatpush1.msra.mxu0 0.0
        %3313 = vmatprep.subr.mxu0 0.0
        %3314 = vmatpush1.msra.mxu0 0.0
        %3315 = vmatprep.subr.mxu0 0.0
        %3316 = vmatpush1.msra.mxu0 0.0
        %3317 = vmatprep.subr.mxu0 0.0
        %3318 = vmatpush1.msra.mxu0 0.0
        %3319 = vmatprep.subr.mxu0 0.0
        %3320 = vmatpush1.msra.mxu0 0.0
        %3321 = vmatprep.subr.mxu0 0.0
        %3322 = vmatpush1.msra.mxu0 0.0
        %3323 = vmatprep.subr.mxu0 0.0
        %3324 = vmatpush1.msra.mxu0 0.0
        %3325 = vmatprep.subr.mxu0 0.0
        %3326 = vmatpush1.msra.mxu0 0.0
        %3327 = vmatprep.subr.mxu0 0.0
        %3328 = vmatpush1.msra.mxu0 0.0
        %3329 = vmatprep.subr.mxu0 0.0
        %3330 = vmatpush1.msra.mxu0 0.0
        %3331 = vmatprep.subr.mxu0 0.0
        %3332 = vmatpush1.msra.mxu0 0.0
        %3333 = vmatprep.subr.mxu0 0.0
        %3334 = vmatpush1.msra.mxu0 0.0
        %3335 = vmatprep.subr.mxu0 0.0
        %3336 = vmatpush1.msra.mxu0 0.0
        %3337 = vmatprep.subr.mxu0 0.0
        %3338 = vmatpush1.msra.mxu0 0.0
        %3339 = vmatprep.subr.mxu0 0.0
        %3340 = vmatpush1.msra.mxu0 0.0
        %3341 = vmatprep.subr.mxu0 0.0
        %3342 = vmatpush1.msra.mxu0 0.0
        %3343 = vmatprep.subr.mxu0 0.0
        %3344 = vmatpush1.msra.mxu0 0.0
        %3345 = vmatprep.mubr.f32.mxu0 0.0
        %3346 = vmatmul.mubr.f32.gmra.mrb[0].mxu0 %v3279
        %v3347 = vpop.f32.mrb[0].mxu0
        %v3348 = vadd.f32 0.0, %v3347
        %v3349 = vpop.f32.mrb[0].mxu0
        %3350 = vdwg.mxu0
        %v3351 = vadd.f32 %v3268, %v3348
        %s3352 = scalar_lea.vmem [#allocation5], 384
        %v3353 = vld [vmem:[%s3352] sm:$0xff]
        %v3354 = vld [vmem:[%s3352 + $0x8] sm:$0xff]
        %v3355 = vld [vmem:[%s3352 + $0x10] sm:$0xff]
        %v3356 = vld [vmem:[%s3352 + $0x18] sm:$0xff]
        %v3357 = vld [vmem:[%s3352 + $0x20] sm:$0xff]
        %v3358 = vld [vmem:[%s3352 + $0x28] sm:$0xff]
        %v3359 = vld [vmem:[%s3352 + $0x30] sm:$0xff]
        %v3360 = vld [vmem:[%s3352 + $0x38] sm:$0xff]
        %v3361 = vrot.slane %v2845, 6
        %v3362 = vsel %vm2862, %v3361, 0
        %3364 = vmatprep.subr.mxu0 0.0
        %3365 = vmatpush1.msra.mxu0 %v3353
        %3366 = vmatprep.subr.mxu0 0.0
        %3367 = vmatpush1.msra.mxu0 %v3354
        %3368 = vmatprep.subr.mxu0 0.0
        %3369 = vmatpush1.msra.mxu0 %v3355
        %3370 = vmatprep.subr.mxu0 0.0
        %3371 = vmatpush1.msra.mxu0 %v3356
        %3372 = vmatprep.subr.mxu0 0.0
        %3373 = vmatpush1.msra.mxu0 %v3357
        %3374 = vmatprep.subr.mxu0 0.0
        %3375 = vmatpush1.msra.mxu0 %v3358
        %3376 = vmatprep.subr.mxu0 0.0
        %3377 = vmatpush1.msra.mxu0 %v3359
        %3378 = vmatprep.subr.mxu0 0.0
        %3379 = vmatpush1.msra.mxu0 %v3360
        %3380 = vmatprep.subr.mxu0 0.0
        %3381 = vmatpush1.msra.mxu0 0.0
        %3382 = vmatprep.subr.mxu0 0.0
        %3383 = vmatpush1.msra.mxu0 0.0
        %3384 = vmatprep.subr.mxu0 0.0
        %3385 = vmatpush1.msra.mxu0 0.0
        %3386 = vmatprep.subr.mxu0 0.0
        %3387 = vmatpush1.msra.mxu0 0.0
        %3388 = vmatprep.subr.mxu0 0.0
        %3389 = vmatpush1.msra.mxu0 0.0
        %3390 = vmatprep.subr.mxu0 0.0
        %3391 = vmatpush1.msra.mxu0 0.0
        %3392 = vmatprep.subr.mxu0 0.0
        %3393 = vmatpush1.msra.mxu0 0.0
        %3394 = vmatprep.subr.mxu0 0.0
        %3395 = vmatpush1.msra.mxu0 0.0
        %3396 = vmatprep.subr.mxu0 0.0
        %3397 = vmatpush1.msra.mxu0 0.0
        %3398 = vmatprep.subr.mxu0 0.0
        %3399 = vmatpush1.msra.mxu0 0.0
        %3400 = vmatprep.subr.mxu0 0.0
        %3401 = vmatpush1.msra.mxu0 0.0
        %3402 = vmatprep.subr.mxu0 0.0
        %3403 = vmatpush1.msra.mxu0 0.0
        %3404 = vmatprep.subr.mxu0 0.0
        %3405 = vmatpush1.msra.mxu0 0.0
        %3406 = vmatprep.subr.mxu0 0.0
        %3407 = vmatpush1.msra.mxu0 0.0
        %3408 = vmatprep.subr.mxu0 0.0
        %3409 = vmatpush1.msra.mxu0 0.0
        %3410 = vmatprep.subr.mxu0 0.0
        %3411 = vmatpush1.msra.mxu0 0.0
        %3412 = vmatprep.subr.mxu0 0.0
        %3413 = vmatpush1.msra.mxu0 0.0
        %3414 = vmatprep.subr.mxu0 0.0
        %3415 = vmatpush1.msra.mxu0 0.0
        %3416 = vmatprep.subr.mxu0 0.0
        %3417 = vmatpush1.msra.mxu0 0.0
        %3418 = vmatprep.subr.mxu0 0.0
        %3419 = vmatpush1.msra.mxu0 0.0
        %3420 = vmatprep.subr.mxu0 0.0
        %3421 = vmatpush1.msra.mxu0 0.0
        %3422 = vmatprep.subr.mxu0 0.0
        %3423 = vmatpush1.msra.mxu0 0.0
        %3424 = vmatprep.subr.mxu0 0.0
        %3425 = vmatpush1.msra.mxu0 0.0
        %3426 = vmatprep.subr.mxu0 0.0
        %3427 = vmatpush1.msra.mxu0 0.0
        %3428 = vmatprep.mubr.f32.mxu0 0.0
        %3429 = vmatmul.mubr.f32.gmra.mrb[0].mxu0 %v3362
        %v3430 = vpop.f32.mrb[0].mxu0
        %v3431 = vadd.f32 0.0, %v3430
        %v3432 = vpop.f32.mrb[0].mxu0
        %3433 = vdwg.mxu0
        %v3434 = vadd.f32 %v3351, %v3431
        %s3435 = scalar_lea.vmem [#allocation5], 448
        %v3436 = vld [vmem:[%s3435] sm:$0xff]
        %v3437 = vld [vmem:[%s3435 + $0x8] sm:$0xff]
        %v3438 = vld [vmem:[%s3435 + $0x10] sm:$0xff]
        %v3439 = vld [vmem:[%s3435 + $0x18] sm:$0xff]
        %v3440 = vld [vmem:[%s3435 + $0x20] sm:$0xff]
        %v3441 = vld [vmem:[%s3435 + $0x28] sm:$0xff]
        %v3442 = vld [vmem:[%s3435 + $0x30] sm:$0xff]
        %v3443 = vld [vmem:[%s3435 + $0x38] sm:$0xff]
        %v3444 = vrot.slane %v2845, 7
        %v3445 = vsel %vm2862, %v3444, 0
        %3447 = vmatprep.subr.mxu0 0.0
        %3448 = vmatpush1.msra.mxu0 %v3436
        %3449 = vmatprep.subr.mxu0 0.0
        %3450 = vmatpush1.msra.mxu0 %v3437
        %3451 = vmatprep.subr.mxu0 0.0
        %3452 = vmatpush1.msra.mxu0 %v3438
        %3453 = vmatprep.subr.mxu0 0.0
        %3454 = vmatpush1.msra.mxu0 %v3439
        %3455 = vmatprep.subr.mxu0 0.0
        %3456 = vmatpush1.msra.mxu0 %v3440
        %3457 = vmatprep.subr.mxu0 0.0
        %3458 = vmatpush1.msra.mxu0 %v3441
        %3459 = vmatprep.subr.mxu0 0.0
        %3460 = vmatpush1.msra.mxu0 %v3442
        %3461 = vmatprep.subr.mxu0 0.0
        %3462 = vmatpush1.msra.mxu0 %v3443
        %3463 = vmatprep.subr.mxu0 0.0
        %3464 = vmatpush1.msra.mxu0 0.0
        %3465 = vmatprep.subr.mxu0 0.0
        %3466 = vmatpush1.msra.mxu0 0.0
        %3467 = vmatprep.subr.mxu0 0.0
        %3468 = vmatpush1.msra.mxu0 0.0
        %3469 = vmatprep.subr.mxu0 0.0
        %3470 = vmatpush1.msra.mxu0 0.0
        %3471 = vmatprep.subr.mxu0 0.0
        %3472 = vmatpush1.msra.mxu0 0.0
        %3473 = vmatprep.subr.mxu0 0.0
        %3474 = vmatpush1.msra.mxu0 0.0
        %3475 = vmatprep.subr.mxu0 0.0
        %3476 = vmatpush1.msra.mxu0 0.0
        %3477 = vmatprep.subr.mxu0 0.0
        %3478 = vmatpush1.msra.mxu0 0.0
        %3479 = vmatprep.subr.mxu0 0.0
        %3480 = vmatpush1.msra.mxu0 0.0
        %3481 = vmatprep.subr.mxu0 0.0
        %3482 = vmatpush1.msra.mxu0 0.0
        %3483 = vmatprep.subr.mxu0 0.0
        %3484 = vmatpush1.msra.mxu0 0.0
        %3485 = vmatprep.subr.mxu0 0.0
        %3486 = vmatpush1.msra.mxu0 0.0
        %3487 = vmatprep.subr.mxu0 0.0
        %3488 = vmatpush1.msra.mxu0 0.0
        %3489 = vmatprep.subr.mxu0 0.0
        %3490 = vmatpush1.msra.mxu0 0.0
        %3491 = vmatprep.subr.mxu0 0.0
        %3492 = vmatpush1.msra.mxu0 0.0
        %3493 = vmatprep.subr.mxu0 0.0
        %3494 = vmatpush1.msra.mxu0 0.0
        %3495 = vmatprep.subr.mxu0 0.0
        %3496 = vmatpush1.msra.mxu0 0.0
        %3497 = vmatprep.subr.mxu0 0.0
        %3498 = vmatpush1.msra.mxu0 0.0
        %3499 = vmatprep.subr.mxu0 0.0
        %3500 = vmatpush1.msra.mxu0 0.0
        %3501 = vmatprep.subr.mxu0 0.0
        %3502 = vmatpush1.msra.mxu0 0.0
        %3503 = vmatprep.subr.mxu0 0.0
        %3504 = vmatpush1.msra.mxu0 0.0
        %3505 = vmatprep.subr.mxu0 0.0
        %3506 = vmatpush1.msra.mxu0 0.0
        %3507 = vmatprep.subr.mxu0 0.0
        %3508 = vmatpush1.msra.mxu0 0.0
        %3509 = vmatprep.subr.mxu0 0.0
        %3510 = vmatpush1.msra.mxu0 0.0
        %3511 = vmatprep.mubr.f32.mxu0 0.0
        %3512 = vmatmul.mubr.f32.gmra.mrb[0].mxu0 %v3445
        %v3513 = vpop.f32.mrb[0].mxu0
        %v3514 = vadd.f32 0.0, %v3513
        %v3515 = vpop.f32.mrb[0].mxu0
        %3516 = vdwg.mxu0
        %v3517 = vadd.f32 %v3434, %v3514
        %s3518 = scalar_lea.vmem [#allocation5], 512
        %v3519 = vld [vmem:[%s3518] sm:$0xff]
        %v3520 = vld [vmem:[%s3518 + $0x8] sm:$0xff]
        %v3521 = vld [vmem:[%s3518 + $0x10] sm:$0xff]
        %v3522 = vld [vmem:[%s3518 + $0x18] sm:$0xff]
        %v3523 = vld [vmem:[%s3518 + $0x20] sm:$0xff]
        %v3524 = vld [vmem:[%s3518 + $0x28] sm:$0xff]
        %v3525 = vld [vmem:[%s3518 + $0x30] sm:$0xff]
        %v3526 = vld [vmem:[%s3518 + $0x38] sm:$0xff]
        %v3528 = vsel %vm2862, %v2850, 0
        %3530 = vmatprep.subr.mxu0 0.0
        %3531 = vmatpush1.msra.mxu0 %v3519
        %3532 = vmatprep.subr.mxu0 0.0
        %3533 = vmatpush1.msra.mxu0 %v3520
        %3534 = vmatprep.subr.mxu0 0.0
        %3535 = vmatpush1.msra.mxu0 %v3521
        %3536 = vmatprep.subr.mxu0 0.0
        %3537 = vmatpush1.msra.mxu0 %v3522
        %3538 = vmatprep.subr.mxu0 0.0
        %3539 = vmatpush1.msra.mxu0 %v3523
        %3540 = vmatprep.subr.mxu0 0.0
        %3541 = vmatpush1.msra.mxu0 %v3524
        %3542 = vmatprep.subr.mxu0 0.0
        %3543 = vmatpush1.msra.mxu0 %v3525
        %3544 = vmatprep.subr.mxu0 0.0
        %3545 = vmatpush1.msra.mxu0 %v3526
        %3546 = vmatprep.subr.mxu0 0.0
        %3547 = vmatpush1.msra.mxu0 0.0
        %3548 = vmatprep.subr.mxu0 0.0
        %3549 = vmatpush1.msra.mxu0 0.0
        %3550 = vmatprep.subr.mxu0 0.0
        %3551 = vmatpush1.msra.mxu0 0.0
        %3552 = vmatprep.subr.mxu0 0.0
        %3553 = vmatpush1.msra.mxu0 0.0
        %3554 = vmatprep.subr.mxu0 0.0
        %3555 = vmatpush1.msra.mxu0 0.0
        %3556 = vmatprep.subr.mxu0 0.0
        %3557 = vmatpush1.msra.mxu0 0.0
        %3558 = vmatprep.subr.mxu0 0.0
        %3559 = vmatpush1.msra.mxu0 0.0
        %3560 = vmatprep.subr.mxu0 0.0
        %3561 = vmatpush1.msra.mxu0 0.0
        %3562 = vmatprep.subr.mxu0 0.0
        %3563 = vmatpush1.msra.mxu0 0.0
        %3564 = vmatprep.subr.mxu0 0.0
        %3565 = vmatpush1.msra.mxu0 0.0
        %3566 = vmatprep.subr.mxu0 0.0
        %3567 = vmatpush1.msra.mxu0 0.0
        %3568 = vmatprep.subr.mxu0 0.0
        %3569 = vmatpush1.msra.mxu0 0.0
        %3570 = vmatprep.subr.mxu0 0.0
        %3571 = vmatpush1.msra.mxu0 0.0
        %3572 = vmatprep.subr.mxu0 0.0
        %3573 = vmatpush1.msra.mxu0 0.0
        %3574 = vmatprep.subr.mxu0 0.0
        %3575 = vmatpush1.msra.mxu0 0.0
        %3576 = vmatprep.subr.mxu0 0.0
        %3577 = vmatpush1.msra.mxu0 0.0
        %3578 = vmatprep.subr.mxu0 0.0
        %3579 = vmatpush1.msra.mxu0 0.0
        %3580 = vmatprep.subr.mxu0 0.0
        %3581 = vmatpush1.msra.mxu0 0.0
        %3582 = vmatprep.subr.mxu0 0.0
        %3583 = vmatpush1.msra.mxu0 0.0
        %3584 = vmatprep.subr.mxu0 0.0
        %3585 = vmatpush1.msra.mxu0 0.0
        %3586 = vmatprep.subr.mxu0 0.0
        %3587 = vmatpush1.msra.mxu0 0.0
        %3588 = vmatprep.subr.mxu0 0.0
        %3589 = vmatpush1.msra.mxu0 0.0
        %3590 = vmatprep.subr.mxu0 0.0
        %3591 = vmatpush1.msra.mxu0 0.0
        %3592 = vmatprep.subr.mxu0 0.0
        %3593 = vmatpush1.msra.mxu0 0.0
        %3594 = vmatprep.mubr.f32.mxu0 0.0
        %3595 = vmatmul.mubr.f32.gmra.mrb[0].mxu0 %v3528
        %v3596 = vpop.f32.mrb[0].mxu0
        %v3597 = vadd.f32 0.0, %v3596
        %v3598 = vpop.f32.mrb[0].mxu0
        %3599 = vdwg.mxu0
        %v3600 = vadd.f32 %v3517, %v3597
        %s3601 = scalar_lea.vmem [#allocation5], 576
        %v3602 = vld [vmem:[%s3601] sm:$0xff]
        %v3603 = vld [vmem:[%s3601 + $0x8] sm:$0xff]
        %v3604 = vld [vmem:[%s3601 + $0x10] sm:$0xff]
        %v3605 = vld [vmem:[%s3601 + $0x18] sm:$0xff]
        %v3606 = vld [vmem:[%s3601 + $0x20] sm:$0xff]
        %v3607 = vld [vmem:[%s3601 + $0x28] sm:$0xff]
        %v3608 = vld [vmem:[%s3601 + $0x30] sm:$0xff]
        %v3609 = vld [vmem:[%s3601 + $0x38] sm:$0xff]
        %v3610 = vrot.slane %v2850, 1
        %v3611 = vsel %vm2862, %v3610, 0
        %3613 = vmatprep.subr.mxu0 0.0
        %3614 = vmatpush1.msra.mxu0 %v3602
        %3615 = vmatprep.subr.mxu0 0.0
        %3616 = vmatpush1.msra.mxu0 %v3603
        %3617 = vmatprep.subr.mxu0 0.0
        %3618 = vmatpush1.msra.mxu0 %v3604
        %3619 = vmatprep.subr.mxu0 0.0
        %3620 = vmatpush1.msra.mxu0 %v3605
        %3621 = vmatprep.subr.mxu0 0.0
        %3622 = vmatpush1.msra.mxu0 %v3606
        %3623 = vmatprep.subr.mxu0 0.0
        %3624 = vmatpush1.msra.mxu0 %v3607
        %3625 = vmatprep.subr.mxu0 0.0
        %3626 = vmatpush1.msra.mxu0 %v3608
        %3627 = vmatprep.subr.mxu0 0.0
        %3628 = vmatpush1.msra.mxu0 %v3609
        %3629 = vmatprep.subr.mxu0 0.0
        %3630 = vmatpush1.msra.mxu0 0.0
        %3631 = vmatprep.subr.mxu0 0.0
        %3632 = vmatpush1.msra.mxu0 0.0
        %3633 = vmatprep.subr.mxu0 0.0
        %3634 = vmatpush1.msra.mxu0 0.0
        %3635 = vmatprep.subr.mxu0 0.0
        %3636 = vmatpush1.msra.mxu0 0.0
        %3637 = vmatprep.subr.mxu0 0.0
        %3638 = vmatpush1.msra.mxu0 0.0
        %3639 = vmatprep.subr.mxu0 0.0
        %3640 = vmatpush1.msra.mxu0 0.0
        %3641 = vmatprep.subr.mxu0 0.0
        %3642 = vmatpush1.msra.mxu0 0.0
        %3643 = vmatprep.subr.mxu0 0.0
        %3644 = vmatpush1.msra.mxu0 0.0
        %3645 = vmatprep.subr.mxu0 0.0
        %3646 = vmatpush1.msra.mxu0 0.0
        %3647 = vmatprep.subr.mxu0 0.0
        %3648 = vmatpush1.msra.mxu0 0.0
        %3649 = vmatprep.subr.mxu0 0.0
        %3650 = vmatpush1.msra.mxu0 0.0
        %3651 = vmatprep.subr.mxu0 0.0
        %3652 = vmatpush1.msra.mxu0 0.0
        %3653 = vmatprep.subr.mxu0 0.0
        %3654 = vmatpush1.msra.mxu0 0.0
        %3655 = vmatprep.subr.mxu0 0.0
        %3656 = vmatpush1.msra.mxu0 0.0
        %3657 = vmatprep.subr.mxu0 0.0
        %3658 = vmatpush1.msra.mxu0 0.0
        %3659 = vmatprep.subr.mxu0 0.0
        %3660 = vmatpush1.msra.mxu0 0.0
        %3661 = vmatprep.subr.mxu0 0.0
        %3662 = vmatpush1.msra.mxu0 0.0
        %3663 = vmatprep.subr.mxu0 0.0
        %3664 = vmatpush1.msra.mxu0 0.0
        %3665 = vmatprep.subr.mxu0 0.0
        %3666 = vmatpush1.msra.mxu0 0.0
        %3667 = vmatprep.subr.mxu0 0.0
        %3668 = vmatpush1.msra.mxu0 0.0
        %3669 = vmatprep.subr.mxu0 0.0
        %3670 = vmatpush1.msra.mxu0 0.0
        %3671 = vmatprep.subr.mxu0 0.0
        %3672 = vmatpush1.msra.mxu0 0.0
        %3673 = vmatprep.subr.mxu0 0.0
        %3674 = vmatpush1.msra.mxu0 0.0
        %3675 = vmatprep.subr.mxu0 0.0
        %3676 = vmatpush1.msra.mxu0 0.0
        %3677 = vmatprep.mubr.f32.mxu0 0.0
        %3678 = vmatmul.mubr.f32.gmra.mrb[0].mxu0 %v3611
        %v3679 = vpop.f32.mrb[0].mxu0
        %v3680 = vadd.f32 0.0, %v3679
        %v3681 = vpop.f32.mrb[0].mxu0
        %3682 = vdwg.mxu0
        %v3683 = vadd.f32 %v3600, %v3680
        %s3684 = scalar_lea.vmem [#allocation5], 640
        %v3685 = vld [vmem:[%s3684] sm:$0xff]
        %v3686 = vld [vmem:[%s3684 + $0x8] sm:$0xff]
        %v3687 = vld [vmem:[%s3684 + $0x10] sm:$0xff]
        %v3688 = vld [vmem:[%s3684 + $0x18] sm:$0xff]
        %v3689 = vld [vmem:[%s3684 + $0x20] sm:$0xff]
        %v3690 = vld [vmem:[%s3684 + $0x28] sm:$0xff]
        %v3691 = vld [vmem:[%s3684 + $0x30] sm:$0xff]
        %v3692 = vld [vmem:[%s3684 + $0x38] sm:$0xff]
        %v3693 = vrot.slane %v2850, 2
        %v3694 = vsel %vm2862, %v3693, 0
        %3696 = vmatprep.subr.mxu0 0.0
        %3697 = vmatpush1.msra.mxu0 %v3685
        %3698 = vmatprep.subr.mxu0 0.0
        %3699 = vmatpush1.msra.mxu0 %v3686
        %3700 = vmatprep.subr.mxu0 0.0
        %3701 = vmatpush1.msra.mxu0 %v3687
        %3702 = vmatprep.subr.mxu0 0.0
        %3703 = vmatpush1.msra.mxu0 %v3688
        %3704 = vmatprep.subr.mxu0 0.0
        %3705 = vmatpush1.msra.mxu0 %v3689
        %3706 = vmatprep.subr.mxu0 0.0
        %3707 = vmatpush1.msra.mxu0 %v3690
        %3708 = vmatprep.subr.mxu0 0.0
        %3709 = vmatpush1.msra.mxu0 %v3691
        %3710 = vmatprep.subr.mxu0 0.0
        %3711 = vmatpush1.msra.mxu0 %v3692
        %3712 = vmatprep.subr.mxu0 0.0
        %3713 = vmatpush1.msra.mxu0 0.0
        %3714 = vmatprep.subr.mxu0 0.0
        %3715 = vmatpush1.msra.mxu0 0.0
        %3716 = vmatprep.subr.mxu0 0.0
        %3717 = vmatpush1.msra.mxu0 0.0
        %3718 = vmatprep.subr.mxu0 0.0
        %3719 = vmatpush1.msra.mxu0 0.0
        %3720 = vmatprep.subr.mxu0 0.0
        %3721 = vmatpush1.msra.mxu0 0.0
        %3722 = vmatprep.subr.mxu0 0.0
        %3723 = vmatpush1.msra.mxu0 0.0
        %3724 = vmatprep.subr.mxu0 0.0
        %3725 = vmatpush1.msra.mxu0 0.0
        %3726 = vmatprep.subr.mxu0 0.0
        %3727 = vmatpush1.msra.mxu0 0.0
        %3728 = vmatprep.subr.mxu0 0.0
        %3729 = vmatpush1.msra.mxu0 0.0
        %3730 = vmatprep.subr.mxu0 0.0
        %3731 = vmatpush1.msra.mxu0 0.0
        %3732 = vmatprep.subr.mxu0 0.0
        %3733 = vmatpush1.msra.mxu0 0.0
        %3734 = vmatprep.subr.mxu0 0.0
        %3735 = vmatpush1.msra.mxu0 0.0
        %3736 = vmatprep.subr.mxu0 0.0
        %3737 = vmatpush1.msra.mxu0 0.0
        %3738 = vmatprep.subr.mxu0 0.0
        %3739 = vmatpush1.msra.mxu0 0.0
        %3740 = vmatprep.subr.mxu0 0.0
        %3741 = vmatpush1.msra.mxu0 0.0
        %3742 = vmatprep.subr.mxu0 0.0
        %3743 = vmatpush1.msra.mxu0 0.0
        %3744 = vmatprep.subr.mxu0 0.0
        %3745 = vmatpush1.msra.mxu0 0.0
        %3746 = vmatprep.subr.mxu0 0.0
        %3747 = vmatpush1.msra.mxu0 0.0
        %3748 = vmatprep.subr.mxu0 0.0
        %3749 = vmatpush1.msra.mxu0 0.0
        %3750 = vmatprep.subr.mxu0 0.0
        %3751 = vmatpush1.msra.mxu0 0.0
        %3752 = vmatprep.subr.mxu0 0.0
        %3753 = vmatpush1.msra.mxu0 0.0
        %3754 = vmatprep.subr.mxu0 0.0
        %3755 = vmatpush1.msra.mxu0 0.0
        %3756 = vmatprep.subr.mxu0 0.0
        %3757 = vmatpush1.msra.mxu0 0.0
        %3758 = vmatprep.subr.mxu0 0.0
        %3759 = vmatpush1.msra.mxu0 0.0
        %3760 = vmatprep.mubr.f32.mxu0 0.0
        %3761 = vmatmul.mubr.f32.gmra.mrb[0].mxu0 %v3694
        %v3762 = vpop.f32.mrb[0].mxu0
        %v3763 = vadd.f32 0.0, %v3762
        %v3764 = vpop.f32.mrb[0].mxu0
        %3765 = vdwg.mxu0
        %v3766 = vadd.f32 %v3683, %v3763
        %s3767 = scalar_lea.vmem [#allocation5], 704
        %v3768 = vld [vmem:[%s3767] sm:$0xff]
        %v3769 = vld [vmem:[%s3767 + $0x8] sm:$0xff]
        %v3770 = vld [vmem:[%s3767 + $0x10] sm:$0xff]
        %v3771 = vld [vmem:[%s3767 + $0x18] sm:$0xff]
        %v3772 = vld [vmem:[%s3767 + $0x20] sm:$0xff]
        %v3773 = vld [vmem:[%s3767 + $0x28] sm:$0xff]
        %v3774 = vld [vmem:[%s3767 + $0x30] sm:$0xff]
        %v3775 = vld [vmem:[%s3767 + $0x38] sm:$0xff]
        %v3776 = vrot.slane %v2850, 3
        %v3777 = vsel %vm2862, %v3776, 0
        %3779 = vmatprep.subr.mxu0 0.0
        %3780 = vmatpush1.msra.mxu0 %v3768
        %3781 = vmatprep.subr.mxu0 0.0
        %3782 = vmatpush1.msra.mxu0 %v3769
        %3783 = vmatprep.subr.mxu0 0.0
        %3784 = vmatpush1.msra.mxu0 %v3770
        %3785 = vmatprep.subr.mxu0 0.0
        %3786 = vmatpush1.msra.mxu0 %v3771
        %3787 = vmatprep.subr.mxu0 0.0
        %3788 = vmatpush1.msra.mxu0 %v3772
        %3789 = vmatprep.subr.mxu0 0.0
        %3790 = vmatpush1.msra.mxu0 %v3773
        %3791 = vmatprep.subr.mxu0 0.0
        %3792 = vmatpush1.msra.mxu0 %v3774
        %3793 = vmatprep.subr.mxu0 0.0
        %3794 = vmatpush1.msra.mxu0 %v3775
        %3795 = vmatprep.subr.mxu0 0.0
        %3796 = vmatpush1.msra.mxu0 0.0
        %3797 = vmatprep.subr.mxu0 0.0
        %3798 = vmatpush1.msra.mxu0 0.0
        %3799 = vmatprep.subr.mxu0 0.0
        %3800 = vmatpush1.msra.mxu0 0.0
        %3801 = vmatprep.subr.mxu0 0.0
        %3802 = vmatpush1.msra.mxu0 0.0
        %3803 = vmatprep.subr.mxu0 0.0
        %3804 = vmatpush1.msra.mxu0 0.0
        %3805 = vmatprep.subr.mxu0 0.0
        %3806 = vmatpush1.msra.mxu0 0.0
        %3807 = vmatprep.subr.mxu0 0.0
        %3808 = vmatpush1.msra.mxu0 0.0
        %3809 = vmatprep.subr.mxu0 0.0
        %3810 = vmatpush1.msra.mxu0 0.0
        %3811 = vmatprep.subr.mxu0 0.0
        %3812 = vmatpush1.msra.mxu0 0.0
        %3813 = vmatprep.subr.mxu0 0.0
        %3814 = vmatpush1.msra.mxu0 0.0
        %3815 = vmatprep.subr.mxu0 0.0
        %3816 = vmatpush1.msra.mxu0 0.0
        %3817 = vmatprep.subr.mxu0 0.0
        %3818 = vmatpush1.msra.mxu0 0.0
        %3819 = vmatprep.subr.mxu0 0.0
        %3820 = vmatpush1.msra.mxu0 0.0
        %3821 = vmatprep.subr.mxu0 0.0
        %3822 = vmatpush1.msra.mxu0 0.0
        %3823 = vmatprep.subr.mxu0 0.0
        %3824 = vmatpush1.msra.mxu0 0.0
        %3825 = vmatprep.subr.mxu0 0.0
        %3826 = vmatpush1.msra.mxu0 0.0
        %3827 = vmatprep.subr.mxu0 0.0
        %3828 = vmatpush1.msra.mxu0 0.0
        %3829 = vmatprep.subr.mxu0 0.0
        %3830 = vmatpush1.msra.mxu0 0.0
        %3831 = vmatprep.subr.mxu0 0.0
        %3832 = vmatpush1.msra.mxu0 0.0
        %3833 = vmatprep.subr.mxu0 0.0
        %3834 = vmatpush1.msra.mxu0 0.0
        %3835 = vmatprep.subr.mxu0 0.0
        %3836 = vmatpush1.msra.mxu0 0.0
        %3837 = vmatprep.subr.mxu0 0.0
        %3838 = vmatpush1.msra.mxu0 0.0
        %3839 = vmatprep.subr.mxu0 0.0
        %3840 = vmatpush1.msra.mxu0 0.0
        %3841 = vmatprep.subr.mxu0 0.0
        %3842 = vmatpush1.msra.mxu0 0.0
        %3843 = vmatprep.mubr.f32.mxu0 0.0
        %3844 = vmatmul.mubr.f32.gmra.mrb[0].mxu0 %v3777
        %v3845 = vpop.f32.mrb[0].mxu0
        %v3846 = vadd.f32 0.0, %v3845
        %v3847 = vpop.f32.mrb[0].mxu0
        %3848 = vdwg.mxu0
        %v3849 = vadd.f32 %v3766, %v3846
        %s3850 = scalar_lea.vmem [#allocation5], 768
        %v3851 = vld [vmem:[%s3850] sm:$0xff]
        %v3852 = vld [vmem:[%s3850 + $0x8] sm:$0xff]
        %v3853 = vld [vmem:[%s3850 + $0x10] sm:$0xff]
        %v3854 = vld [vmem:[%s3850 + $0x18] sm:$0xff]
        %v3855 = vld [vmem:[%s3850 + $0x20] sm:$0xff]
        %v3856 = vld [vmem:[%s3850 + $0x28] sm:$0xff]
        %v3857 = vld [vmem:[%s3850 + $0x30] sm:$0xff]
        %v3858 = vld [vmem:[%s3850 + $0x38] sm:$0xff]
        %v3859 = vrot.slane %v2850, 4
        %v3860 = vsel %vm2862, %v3859, 0
        %3862 = vmatprep.subr.mxu0 0.0
        %3863 = vmatpush1.msra.mxu0 %v3851
        %3864 = vmatprep.subr.mxu0 0.0
        %3865 = vmatpush1.msra.mxu0 %v3852
        %3866 = vmatprep.subr.mxu0 0.0
        %3867 = vmatpush1.msra.mxu0 %v3853
        %3868 = vmatprep.subr.mxu0 0.0
        %3869 = vmatpush1.msra.mxu0 %v3854
        %3870 = vmatprep.subr.mxu0 0.0
        %3871 = vmatpush1.msra.mxu0 %v3855
        %3872 = vmatprep.subr.mxu0 0.0
        %3873 = vmatpush1.msra.mxu0 %v3856
        %3874 = vmatprep.subr.mxu0 0.0
        %3875 = vmatpush1.msra.mxu0 %v3857
        %3876 = vmatprep.subr.mxu0 0.0
        %3877 = vmatpush1.msra.mxu0 %v3858
        %3878 = vmatprep.subr.mxu0 0.0
        %3879 = vmatpush1.msra.mxu0 0.0
        %3880 = vmatprep.subr.mxu0 0.0
        %3881 = vmatpush1.msra.mxu0 0.0
        %3882 = vmatprep.subr.mxu0 0.0
        %3883 = vmatpush1.msra.mxu0 0.0
        %3884 = vmatprep.subr.mxu0 0.0
        %3885 = vmatpush1.msra.mxu0 0.0
        %3886 = vmatprep.subr.mxu0 0.0
        %3887 = vmatpush1.msra.mxu0 0.0
        %3888 = vmatprep.subr.mxu0 0.0
        %3889 = vmatpush1.msra.mxu0 0.0
        %3890 = vmatprep.subr.mxu0 0.0
        %3891 = vmatpush1.msra.mxu0 0.0
        %3892 = vmatprep.subr.mxu0 0.0
        %3893 = vmatpush1.msra.mxu0 0.0
        %3894 = vmatprep.subr.mxu0 0.0
        %3895 = vmatpush1.msra.mxu0 0.0
        %3896 = vmatprep.subr.mxu0 0.0
        %3897 = vmatpush1.msra.mxu0 0.0
        %3898 = vmatprep.subr.mxu0 0.0
        %3899 = vmatpush1.msra.mxu0 0.0
        %3900 = vmatprep.subr.mxu0 0.0
        %3901 = vmatpush1.msra.mxu0 0.0
        %3902 = vmatprep.subr.mxu0 0.0
        %3903 = vmatpush1.msra.mxu0 0.0
        %3904 = vmatprep.subr.mxu0 0.0
        %3905 = vmatpush1.msra.mxu0 0.0
        %3906 = vmatprep.subr.mxu0 0.0
        %3907 = vmatpush1.msra.mxu0 0.0
        %3908 = vmatprep.subr.mxu0 0.0
        %3909 = vmatpush1.msra.mxu0 0.0
        %3910 = vmatprep.subr.mxu0 0.0
        %3911 = vmatpush1.msra.mxu0 0.0
        %3912 = vmatprep.subr.mxu0 0.0
        %3913 = vmatpush1.msra.mxu0 0.0
        %3914 = vmatprep.subr.mxu0 0.0
        %3915 = vmatpush1.msra.mxu0 0.0
        %3916 = vmatprep.subr.mxu0 0.0
        %3917 = vmatpush1.msra.mxu0 0.0
        %3918 = vmatprep.subr.mxu0 0.0
        %3919 = vmatpush1.msra.mxu0 0.0
        %3920 = vmatprep.subr.mxu0 0.0
        %3921 = vmatpush1.msra.mxu0 0.0
        %3922 = vmatprep.subr.mxu0 0.0
        %3923 = vmatpush1.msra.mxu0 0.0
        %3924 = vmatprep.subr.mxu0 0.0
        %3925 = vmatpush1.msra.mxu0 0.0
        %3926 = vmatprep.mubr.f32.mxu0 0.0
        %3927 = vmatmul.mubr.f32.gmra.mrb[0].mxu0 %v3860
        %v3928 = vpop.f32.mrb[0].mxu0
        %v3929 = vadd.f32 0.0, %v3928
        %v3930 = vpop.f32.mrb[0].mxu0
        %3931 = vdwg.mxu0
        %v3932 = vadd.f32 %v3849, %v3929
        %s3933 = scalar_lea.vmem [#allocation5], 832
        %v3934 = vld [vmem:[%s3933] sm:$0xff]
        %v3935 = vld [vmem:[%s3933 + $0x8] sm:$0xff]
        %v3936 = vld [vmem:[%s3933 + $0x10] sm:$0xff]
        %v3937 = vld [vmem:[%s3933 + $0x18] sm:$0xff]
        %v3938 = vld [vmem:[%s3933 + $0x20] sm:$0xff]
        %v3939 = vld [vmem:[%s3933 + $0x28] sm:$0xff]
        %v3940 = vld [vmem:[%s3933 + $0x30] sm:$0xff]
        %v3941 = vld [vmem:[%s3933 + $0x38] sm:$0xff]
        %v3942 = vrot.slane %v2850, 5
        %v3943 = vsel %vm2862, %v3942, 0
        %3945 = vmatprep.subr.mxu0 0.0
        %3946 = vmatpush1.msra.mxu0 %v3934
        %3947 = vmatprep.subr.mxu0 0.0
        %3948 = vmatpush1.msra.mxu0 %v3935
        %3949 = vmatprep.subr.mxu0 0.0
        %3950 = vmatpush1.msra.mxu0 %v3936
        %3951 = vmatprep.subr.mxu0 0.0
        %3952 = vmatpush1.msra.mxu0 %v3937
        %3953 = vmatprep.subr.mxu0 0.0
        %3954 = vmatpush1.msra.mxu0 %v3938
        %3955 = vmatprep.subr.mxu0 0.0
        %3956 = vmatpush1.msra.mxu0 %v3939
        %3957 = vmatprep.subr.mxu0 0.0
        %3958 = vmatpush1.msra.mxu0 %v3940
        %3959 = vmatprep.subr.mxu0 0.0
        %3960 = vmatpush1.msra.mxu0 %v3941
        %3961 = vmatprep.subr.mxu0 0.0
        %3962 = vmatpush1.msra.mxu0 0.0
        %3963 = vmatprep.subr.mxu0 0.0
        %3964 = vmatpush1.msra.mxu0 0.0
        %3965 = vmatprep.subr.mxu0 0.0
        %3966 = vmatpush1.msra.mxu0 0.0
        %3967 = vmatprep.subr.mxu0 0.0
        %3968 = vmatpush1.msra.mxu0 0.0
        %3969 = vmatprep.subr.mxu0 0.0
        %3970 = vmatpush1.msra.mxu0 0.0
        %3971 = vmatprep.subr.mxu0 0.0
        %3972 = vmatpush1.msra.mxu0 0.0
        %3973 = vmatprep.subr.mxu0 0.0
        %3974 = vmatpush1.msra.mxu0 0.0
        %3975 = vmatprep.subr.mxu0 0.0
        %3976 = vmatpush1.msra.mxu0 0.0
        %3977 = vmatprep.subr.mxu0 0.0
        %3978 = vmatpush1.msra.mxu0 0.0
        %3979 = vmatprep.subr.mxu0 0.0
        %3980 = vmatpush1.msra.mxu0 0.0
        %3981 = vmatprep.subr.mxu0 0.0
        %3982 = vmatpush1.msra.mxu0 0.0
        %3983 = vmatprep.subr.mxu0 0.0
        %3984 = vmatpush1.msra.mxu0 0.0
        %3985 = vmatprep.subr.mxu0 0.0
        %3986 = vmatpush1.msra.mxu0 0.0
        %3987 = vmatprep.subr.mxu0 0.0
        %3988 = vmatpush1.msra.mxu0 0.0
        %3989 = vmatprep.subr.mxu0 0.0
        %3990 = vmatpush1.msra.mxu0 0.0
        %3991 = vmatprep.subr.mxu0 0.0
        %3992 = vmatpush1.msra.mxu0 0.0
        %3993 = vmatprep.subr.mxu0 0.0
        %3994 = vmatpush1.msra.mxu0 0.0
        %3995 = vmatprep.subr.mxu0 0.0
        %3996 = vmatpush1.msra.mxu0 0.0
        %3997 = vmatprep.subr.mxu0 0.0
        %3998 = vmatpush1.msra.mxu0 0.0
        %3999 = vmatprep.subr.mxu0 0.0
        %4000 = vmatpush1.msra.mxu0 0.0
        %4001 = vmatprep.subr.mxu0 0.0
        %4002 = vmatpush1.msra.mxu0 0.0
        %4003 = vmatprep.subr.mxu0 0.0
        %4004 = vmatpush1.msra.mxu0 0.0
        %4005 = vmatprep.subr.mxu0 0.0
        %4006 = vmatpush1.msra.mxu0 0.0
        %4007 = vmatprep.subr.mxu0 0.0
        %4008 = vmatpush1.msra.mxu0 0.0
        %4009 = vmatprep.mubr.f32.mxu0 0.0
        %4010 = vmatmul.mubr.f32.gmra.mrb[0].mxu0 %v3943
        %v4011 = vpop.f32.mrb[0].mxu0
        %v4012 = vadd.f32 0.0, %v4011
        %v4013 = vpop.f32.mrb[0].mxu0
        %4014 = vdwg.mxu0
        %v4015 = vadd.f32 %v3932, %v4012
        %s4016 = scalar_lea.vmem [#allocation5], 896
        %v4017 = vld [vmem:[%s4016] sm:$0xff]
        %v4018 = vld [vmem:[%s4016 + $0x8] sm:$0xff]
        %v4019 = vld [vmem:[%s4016 + $0x10] sm:$0xff]
        %v4020 = vld [vmem:[%s4016 + $0x18] sm:$0xff]
        %v4021 = vld [vmem:[%s4016 + $0x20] sm:$0xff]
        %v4022 = vld [vmem:[%s4016 + $0x28] sm:$0xff]
        %v4023 = vld [vmem:[%s4016 + $0x30] sm:$0xff]
        %v4024 = vld [vmem:[%s4016 + $0x38] sm:$0xff]
        %v4025 = vrot.slane %v2850, 6
        %v4026 = vsel %vm2862, %v4025, 0
        %4028 = vmatprep.subr.mxu0 0.0
        %4029 = vmatpush1.msra.mxu0 %v4017
        %4030 = vmatprep.subr.mxu0 0.0
        %4031 = vmatpush1.msra.mxu0 %v4018
        %4032 = vmatprep.subr.mxu0 0.0
        %4033 = vmatpush1.msra.mxu0 %v4019
        %4034 = vmatprep.subr.mxu0 0.0
        %4035 = vmatpush1.msra.mxu0 %v4020
        %4036 = vmatprep.subr.mxu0 0.0
        %4037 = vmatpush1.msra.mxu0 %v4021
        %4038 = vmatprep.subr.mxu0 0.0
        %4039 = vmatpush1.msra.mxu0 %v4022
        %4040 = vmatprep.subr.mxu0 0.0
        %4041 = vmatpush1.msra.mxu0 %v4023
        %4042 = vmatprep.subr.mxu0 0.0
        %4043 = vmatpush1.msra.mxu0 %v4024
        %4044 = vmatprep.subr.mxu0 0.0
        %4045 = vmatpush1.msra.mxu0 0.0
        %4046 = vmatprep.subr.mxu0 0.0
        %4047 = vmatpush1.msra.mxu0 0.0
        %4048 = vmatprep.subr.mxu0 0.0
        %4049 = vmatpush1.msra.mxu0 0.0
        %4050 = vmatprep.subr.mxu0 0.0
        %4051 = vmatpush1.msra.mxu0 0.0
        %4052 = vmatprep.subr.mxu0 0.0
        %4053 = vmatpush1.msra.mxu0 0.0
        %4054 = vmatprep.subr.mxu0 0.0
        %4055 = vmatpush1.msra.mxu0 0.0
        %4056 = vmatprep.subr.mxu0 0.0
        %4057 = vmatpush1.msra.mxu0 0.0
        %4058 = vmatprep.subr.mxu0 0.0
        %4059 = vmatpush1.msra.mxu0 0.0
        %4060 = vmatprep.subr.mxu0 0.0
        %4061 = vmatpush1.msra.mxu0 0.0
        %4062 = vmatprep.subr.mxu0 0.0
        %4063 = vmatpush1.msra.mxu0 0.0
        %4064 = vmatprep.subr.mxu0 0.0
        %4065 = vmatpush1.msra.mxu0 0.0
        %4066 = vmatprep.subr.mxu0 0.0
        %4067 = vmatpush1.msra.mxu0 0.0
        %4068 = vmatprep.subr.mxu0 0.0
        %4069 = vmatpush1.msra.mxu0 0.0
        %4070 = vmatprep.subr.mxu0 0.0
        %4071 = vmatpush1.msra.mxu0 0.0
        %4072 = vmatprep.subr.mxu0 0.0
        %4073 = vmatpush1.msra.mxu0 0.0
        %4074 = vmatprep.subr.mxu0 0.0
        %4075 = vmatpush1.msra.mxu0 0.0
        %4076 = vmatprep.subr.mxu0 0.0
        %4077 = vmatpush1.msra.mxu0 0.0
        %4078 = vmatprep.subr.mxu0 0.0
        %4079 = vmatpush1.msra.mxu0 0.0
        %4080 = vmatprep.subr.mxu0 0.0
        %4081 = vmatpush1.msra.mxu0 0.0
        %4082 = vmatprep.subr.mxu0 0.0
        %4083 = vmatpush1.msra.mxu0 0.0
        %4084 = vmatprep.subr.mxu0 0.0
        %4085 = vmatpush1.msra.mxu0 0.0
        %4086 = vmatprep.subr.mxu0 0.0
        %4087 = vmatpush1.msra.mxu0 0.0
        %4088 = vmatprep.subr.mxu0 0.0
        %4089 = vmatpush1.msra.mxu0 0.0
        %4090 = vmatprep.subr.mxu0 0.0
        %4091 = vmatpush1.msra.mxu0 0.0
        %4092 = vmatprep.mubr.f32.mxu0 0.0
        %4093 = vmatmul.mubr.f32.gmra.mrb[0].mxu0 %v4026
        %v4094 = vpop.f32.mrb[0].mxu0
        %v4095 = vadd.f32 0.0, %v4094
        %v4096 = vpop.f32.mrb[0].mxu0
        %4097 = vdwg.mxu0
        %v4098 = vadd.f32 %v4015, %v4095
        %s4099 = scalar_lea.vmem [#allocation5], 960
        %v4100 = vld [vmem:[%s4099] sm:$0xff]
        %v4101 = vld [vmem:[%s4099 + $0x8] sm:$0xff]
        %v4102 = vld [vmem:[%s4099 + $0x10] sm:$0xff]
        %v4103 = vld [vmem:[%s4099 + $0x18] sm:$0xff]
        %v4104 = vld [vmem:[%s4099 + $0x20] sm:$0xff]
        %v4105 = vld [vmem:[%s4099 + $0x28] sm:$0xff]
        %v4106 = vld [vmem:[%s4099 + $0x30] sm:$0xff]
        %v4107 = vld [vmem:[%s4099 + $0x38] sm:$0xff]
        %v4108 = vrot.slane %v2850, 7
        %v4109 = vsel %vm2862, %v4108, 0
        %4111 = vmatprep.subr.mxu0 0.0
        %4112 = vmatpush1.msra.mxu0 %v4100
        %4113 = vmatprep.subr.mxu0 0.0
        %4114 = vmatpush1.msra.mxu0 %v4101
        %4115 = vmatprep.subr.mxu0 0.0
        %4116 = vmatpush1.msra.mxu0 %v4102
        %4117 = vmatprep.subr.mxu0 0.0
        %4118 = vmatpush1.msra.mxu0 %v4103
        %4119 = vmatprep.subr.mxu0 0.0
        %4120 = vmatpush1.msra.mxu0 %v4104
        %4121 = vmatprep.subr.mxu0 0.0
        %4122 = vmatpush1.msra.mxu0 %v4105
        %4123 = vmatprep.subr.mxu0 0.0
        %4124 = vmatpush1.msra.mxu0 %v4106
        %4125 = vmatprep.subr.mxu0 0.0
        %4126 = vmatpush1.msra.mxu0 %v4107
        %4127 = vmatprep.subr.mxu0 0.0
        %4128 = vmatpush1.msra.mxu0 0.0
        %4129 = vmatprep.subr.mxu0 0.0
        %4130 = vmatpush1.msra.mxu0 0.0
        %4131 = vmatprep.subr.mxu0 0.0
        %4132 = vmatpush1.msra.mxu0 0.0
        %4133 = vmatprep.subr.mxu0 0.0
        %4134 = vmatpush1.msra.mxu0 0.0
        %4135 = vmatprep.subr.mxu0 0.0
        %4136 = vmatpush1.msra.mxu0 0.0
        %4137 = vmatprep.subr.mxu0 0.0
        %4138 = vmatpush1.msra.mxu0 0.0
        %4139 = vmatprep.subr.mxu0 0.0
        %4140 = vmatpush1.msra.mxu0 0.0
        %4141 = vmatprep.subr.mxu0 0.0
        %4142 = vmatpush1.msra.mxu0 0.0
        %4143 = vmatprep.subr.mxu0 0.0
        %4144 = vmatpush1.msra.mxu0 0.0
        %4145 = vmatprep.subr.mxu0 0.0
        %4146 = vmatpush1.msra.mxu0 0.0
        %4147 = vmatprep.subr.mxu0 0.0
        %4148 = vmatpush1.msra.mxu0 0.0
        %4149 = vmatprep.subr.mxu0 0.0
        %4150 = vmatpush1.msra.mxu0 0.0
        %4151 = vmatprep.subr.mxu0 0.0
        %4152 = vmatpush1.msra.mxu0 0.0
        %4153 = vmatprep.subr.mxu0 0.0
        %4154 = vmatpush1.msra.mxu0 0.0
        %4155 = vmatprep.subr.mxu0 0.0
        %4156 = vmatpush1.msra.mxu0 0.0
        %4157 = vmatprep.subr.mxu0 0.0
        %4158 = vmatpush1.msra.mxu0 0.0
        %4159 = vmatprep.subr.mxu0 0.0
        %4160 = vmatpush1.msra.mxu0 0.0
        %4161 = vmatprep.subr.mxu0 0.0
        %4162 = vmatpush1.msra.mxu0 0.0
        %4163 = vmatprep.subr.mxu0 0.0
        %4164 = vmatpush1.msra.mxu0 0.0
        %4165 = vmatprep.subr.mxu0 0.0
        %4166 = vmatpush1.msra.mxu0 0.0
        %4167 = vmatprep.subr.mxu0 0.0
        %4168 = vmatpush1.msra.mxu0 0.0
        %4169 = vmatprep.subr.mxu0 0.0
        %4170 = vmatpush1.msra.mxu0 0.0
        %4171 = vmatprep.subr.mxu0 0.0
        %4172 = vmatpush1.msra.mxu0 0.0
        %4173 = vmatprep.subr.mxu0 0.0
        %4174 = vmatpush1.msra.mxu0 0.0
        %4175 = vmatprep.mubr.f32.mxu0 0.0
        %4176 = vmatmul.mubr.f32.gmra.mrb[0].mxu0 %v4109
        %v4177 = vpop.f32.mrb[0].mxu0
        %v4178 = vadd.f32 0.0, %v4177
        %v4179 = vpop.f32.mrb[0].mxu0
        %4180 = vdwg.mxu0
        %v4181 = vadd.f32 %v4098, %v4178
        %4182 = vst [vmem:[%s364] sm:$0x1] %v4181
        %s4183 = sand.u32 %s227, 1
        %s4184 = scalar_lea.sflag [#allocation4], %s4183
        %s4185 = sand.u32 %s227, 1
        %s4186 = scalar_lea.vmem [#allocation8], %s4185
        // Predicated region
        $region69: #{cnn_with_fuzzy_pooling.1} parent=55 // pred_check
          %p4187 = pneg %p237
        $region70: #{cnn_with_fuzzy_pooling.1} parent=55 // pred_check_branch
          %4189 = sbr.rel (%p4187) target = $region72
        $region71: #{cnn_with_fuzzy_pooling.1} parent=55 // pred_region
          %s4191 = ssub.s32 16, 16
          %4192 = vsyncadd %s4184, %s4191
          %s4193 = smul.addr %s25, 16
          %s4194 = scalar_lea.hbm %s9, %s4193
          %s4196 = sshll.u32 %s4186, 4
          %s4197 = int_to_ptr.vmem [resolvable:$true] %s4196
          %4199 = dma.vmem_to_hbm [thread:$0]  %s4197, 16, %s4194, %s4184
        $region72: #{cnn_with_fuzzy_pooling.1} parent=55 // pred_fallthru
          _
      $region56: #{cnn_with_fuzzy_pooling.1} parent=5 // pred_fallthru
        _
      %p4200 = scmp.le.s32.totalorder 2, %s20
      // Predicated region
      $region73: #{cnn_with_fuzzy_pooling.1} parent=5 // pred_check
        %p4201 = pneg %p4200
      $region74: #{cnn_with_fuzzy_pooling.1} parent=5 // pred_check_branch
        %4203 = sbr.rel (%p4201) target = $region76
      $region75: #{cnn_with_fuzzy_pooling.1} parent=5 // pred_region
        %s4204 = ssub.s32 %s20, 2
        // Predicated region
        $region77: #{cnn_with_fuzzy_pooling.1} parent=75 // pred_check
          %p4205 = pneg %p243
        $region78: #{cnn_with_fuzzy_pooling.1} parent=75 // pred_check_branch
          %4207 = sbr.rel (%p4205) target = $region80
        $region79: #{cnn_with_fuzzy_pooling.1} parent=75 // pred_region
          %s4208 = sand.u32 %s228, 1
          %s4209 = scalar_lea.sflag [#allocation4], %s4208
          %s4210 = sand.u32 %s228, 1
          %s4211 = scalar_lea.vmem [#allocation8], %s4210
          %4212 = dma.done %s4209, 16
        $region80: #{cnn_with_fuzzy_pooling.1} parent=75 // pred_fallthru
          _
      $region76: #{cnn_with_fuzzy_pooling.1} parent=5 // pred_fallthru
        _
    $region6: #{cnn_with_fuzzy_pooling.1} parent=1 // loop_footer
      %s24 = sadd.s32 1, %s20
    $region7: #{cnn_with_fuzzy_pooling.1} parent=1 // loop_footer_branch
      %19 = sbr.rel target = $region3
    $region8: #{cnn_with_fuzzy_pooling.1} parent=1 // loop_exit
      _
    %4213 = vsyncpa [#allocation3], 1
    %s4214 = scalar_lea.sflag [#allocation3], 1
    %4215 = vsyncpa %s4214, 1
    %4216 = vsyncpa [#allocation6], 1
    %4217 = vsyncpa [#allocation4], 1
    %s4218 = scalar_lea.sflag [#allocation4], 1
    %4219 = vsyncpa %s4218, 1

</llo_original>
